<compile_context>
chip_gen: v6e
topology: v6e:2x2x1
jax: 0.10.0
libtpu: 0.0.40
codegen_flags: <defaults>
</compile_context>

<pallas_src>
import jax
import jax.numpy as jnp
from jax import lax
from jax.experimental import pallas as pl
from jax.experimental.pallas import tpu as pltpu

C = 440              # channels
GROUPS = 55          # conv groups
CG = C // GROUPS     # channels per group (8)
KH = KW = 3
NTAPS = KH * KW      # 9
EPS = 1e-5

LANE = 128
C_PAD = 512                      # channels padded to a multiple of 128 lanes
N_TILES = C_PAD // LANE          # 4
GPT = LANE // CG                 # groups per 128-lane tile (16)
TILES_PER_STEP = 2               # two 128-lane tiles handled per grid step
GRID = N_TILES // TILES_PER_STEP  # 2 grid steps


def _conv_bn_relu_kernel(p_ref, w_ref, g_ref, b_ref, o_ref):
    # p_ref: (TILES_PER_STEP, rows, 9*128)  im2col patch, K ordered (tap, cin-lane)
    # w_ref: (TILES_PER_STEP, 9, 128, 128)  per-tap block-diagonal weight blocks
    # g_ref, b_ref: (TILES_PER_STEP, 1, 128) BN affine params
    # o_ref: (rows, TILES_PER_STEP*128)     lane-dense output block
    rows = o_ref.shape[0]
    inv_rows = 1.0 / rows

    for s in range(TILES_PER_STEP):          # static unroll over the 2 lane tiles
        acc = jnp.zeros((rows, LANE), jnp.float32)
        for k in range(NTAPS):               # 9 accumulating K=128 MXU matmuls;
            # lane-aligned static ref slices -> no relayout, low vreg pressure.
            acc += jnp.dot(p_ref[s, :, k * LANE:(k + 1) * LANE], w_ref[s, k],
                           preferred_element_type=jnp.float32)

        # BatchNorm2d, training mode (PyTorch default): per-channel batch mean
        # and biased variance over (N, H, W) == the rows here.  Single pass:
        # sum and sum-of-squares, var = E[x^2] - mean^2 (mean ~ 0 here, so no
        # cancellation concern).  Channels are lane-wise and disjoint per tile.
        mean = jnp.sum(acc, axis=0, keepdims=True) * inv_rows
        ex2 = jnp.sum(acc * acc, axis=0, keepdims=True) * inv_rows
        var = ex2 - mean * mean
        y = (acc - mean) * lax.rsqrt(var + EPS) * g_ref[s] + b_ref[s]

        # ReLU + lane-aligned store into the (rows, 256) output block.
        o_ref[:, s * LANE:(s + 1) * LANE] = jnp.maximum(y, 0.0)


def prepack_weight(w_grouped):
    """(Cout=440, Cin/g=8, 3, 3) grouped weight -> (4, 9, 128, 128) tile slabs.

    Tile t, tap k holds the 128x128 block-diagonal weight W[ci_lane, co_lane]
    for global channels [t*128, (t+1)*128); only the 16 (8x8) group blocks on
    the diagonal are nonzero.  Call ONCE at init, not per forward call.
    """
    w = w_grouped.astype(jnp.float32).reshape(GROUPS, CG, CG, KH, KW)  # (g, co, ci, kh, kw)
    wt = jnp.transpose(w, (0, 3, 4, 2, 1))                             # (g, kh, kw, ci, co)
    tiles = []
    for t in range(N_TILES):
        g0 = t * GPT
        ng = min(GPT, GROUPS - g0)       # last tile holds only 7 real groups
        blk = jnp.zeros((KH, KW, GPT, CG, GPT, CG), jnp.float32)
        idx = jnp.arange(ng)
        # advanced indices (idx, idx) -> indexed dim moves to front:
        # target shape (ng, KH, KW, CG, CG) matches wt[g0:g0+ng].
        blk = blk.at[:, :, idx, :, idx, :].set(wt[g0:g0 + ng])
        tiles.append(blk.reshape(NTAPS, LANE, LANE))
    return jnp.stack(tiles, axis=0)      # (4, 9, 128, 128)


@jax.jit
def conv_bn_relu(x_nchw, w_packed, gamma, beta):
    n, c, h, w = x_nchw.shape
    assert c == C
    rows = n * h * w

    # ---- wrapper glue (one XLA fusion): NCHW->NHWC, pad, hoisted im2col ----
    x_nhwc = jnp.transpose(x_nchw, (0, 2, 3, 1)).astype(jnp.float32)
    x_pad = jnp.pad(x_nhwc, ((0, 0), (1, 1), (1, 1), (0, C_PAD - C)))
    taps = [x_pad[:, kh:kh + h, kw:kw + w, :]
            for kh in range(KH) for kw in range(KW)]          # 9 x (n,h,w,512)
    patch = jnp.stack(taps, axis=3)                           # (n,h,w,9,512)
    patch = patch.reshape(rows, NTAPS, N_TILES, LANE)
    patch = jnp.transpose(patch, (2, 0, 1, 3)).reshape(N_TILES, rows, NTAPS * LANE)

    gamma_t = jnp.pad(gamma.astype(jnp.float32), (0, C_PAD - C)).reshape(N_TILES, 1, LANE)
    beta_t = jnp.pad(beta.astype(jnp.float32), (0, C_PAD - C)).reshape(N_TILES, 1, LANE)

    flops = 2 * rows * (NTAPS * LANE) * LANE * N_TILES
    bytes_accessed = (patch.size + w_packed.size + gamma_t.size + beta_t.size
                      + rows * C_PAD) * 4

    out = pl.pallas_call(
        _conv_bn_relu_kernel,
        out_shape=jax.ShapeDtypeStruct((rows, C_PAD), jnp.float32),
        grid=(GRID,),
        in_specs=[
            pl.BlockSpec((TILES_PER_STEP, rows, NTAPS * LANE), lambda t: (t, 0, 0)),
            pl.BlockSpec((TILES_PER_STEP, NTAPS, LANE, LANE), lambda t: (t, 0, 0, 0)),
            pl.BlockSpec((TILES_PER_STEP, 1, LANE), lambda t: (t, 0, 0)),
            pl.BlockSpec((TILES_PER_STEP, 1, LANE), lambda t: (t, 0, 0)),
        ],
        out_specs=pl.BlockSpec((rows, TILES_PER_STEP * LANE), lambda t: (0, t)),
        compiler_params=pltpu.CompilerParams(
            dimension_semantics=("parallel",)),
        cost_estimate=pl.CostEstimate(
            flops=flops, transcendentals=C_PAD, bytes_accessed=bytes_accessed),
    )(patch, w_packed, gamma_t, beta_t)

    # Drop the channel padding, back to NCHW (PyTorch convention).
    out = out[:, :C].reshape(n, h, w, C)
    return jnp.transpose(out, (0, 3, 1, 2))


def _reference(x_nchw, w_grouped, gamma, beta):
    """Pure-JAX reference: grouped conv + training-mode BN + ReLU."""
    y = lax.conv_general_dilated(
        x_nchw, w_grouped,
        window_strides=(1, 1),
        padding=((1, 1), (1, 1)),
        dimension_numbers=("NCHW", "OIHW", "NCHW"),
        feature_group_count=GROUPS,
    )
    mean = jnp.mean(y, axis=(0, 2, 3), keepdims=True)
    var = jnp.mean((y - mean) ** 2, axis=(0, 2, 3), keepdims=True)
    xhat = (y - mean) * lax.rsqrt(var + EPS)
    out = xhat * gamma.reshape(1, C, 1, 1) + beta.reshape(1, C, 1, 1)
    return jnp.maximum(out, 0.0)


if __name__ == "__main__":
    key = jax.random.PRNGKey(0)
    kx, kw, kg, kb = jax.random.split(key, 4)

    # Shapes the module forward implies: x (1, 440, 7, 7).
    x = jax.random.normal(kx, (1, C, 7, 7), dtype=jnp.float32)
    # Conv2d weight shape (out_channels, in_channels/groups, kH, kW).
    w = 0.1 * jax.random.normal(kw, (C, CG, KH, KW), dtype=jnp.float32)
    # BN affine params (exercise the affine path; module default is 1 / 0).
    gamma = 1.0 + 0.1 * jax.random.normal(kg, (C,), dtype=jnp.float32)
    beta = 0.1 * jax.random.normal(kb, (C,), dtype=jnp.float32)

    # One-time weight prepack (out of the per-call hot path).
    w_packed = jax.block_until_ready(prepack_weight(w))

    out = jax.block_until_ready(conv_bn_relu(x, w_packed, gamma, beta))
    ref = jax.block_until_ready(_reference(x, w, gamma, beta))

    assert out.shape == (1, C, 7, 7)
    assert jnp.allclose(out, ref, atol=1e-3, rtol=1e-3)

    print("KERNEL_OK")
</pallas_src>

<mosaic_0001>
module attributes {stable_mosaic.version = 11 : i64} {
  func.func @_conv_bn_relu_kernel(%arg0: i32, %arg1: memref<2x49x1152xf32, #tpu.memory_space<vmem>>, %arg2: memref<2x9x128x128xf32, #tpu.memory_space<vmem>>, %arg3: memref<2x1x128xf32, #tpu.memory_space<vmem>>, %arg4: memref<2x1x128xf32, #tpu.memory_space<vmem>>, %arg5: memref<49x256xf32, #tpu.memory_space<vmem>>) attributes {dimension_semantics = [#tpu.dimension_semantics<parallel>], iteration_bounds = array<i64: 2>, scalar_prefetch = 0 : i64, scratch_operands = 0 : i64, tpu.core_type = #tpu.core_type<tc>, window_params = [{transform_indices = @transform_0, window_bounds = array<i64: 2, 49, 1152>}, {transform_indices = @transform_1, window_bounds = array<i64: 2, 9, 128, 128>}, {transform_indices = @transform_2, window_bounds = array<i64: 2, 1, 128>}, {transform_indices = @transform_3, window_bounds = array<i64: 2, 1, 128>}, {transform_indices = @transform_4, window_bounds = array<i64: 49, 256>}]} {
    %cst = arith.constant 0.000000e+00 : f32
    %0 = vector.broadcast %cst : f32 to vector<49x128xf32>
    %c0 = arith.constant 0 : index
    %c0_0 = arith.constant 0 : index
    %c0_1 = arith.constant 0 : index
    %1 = vector.load %arg1[%c0, %c0_0, %c0_1] : memref<2x49x1152xf32, #tpu.memory_space<vmem>>, vector<1x49x128xf32>
    %2 = vector.shape_cast %1 : vector<1x49x128xf32> to vector<49x128xf32>
    %c0_2 = arith.constant 0 : index
    %c0_3 = arith.constant 0 : index
    %c0_4 = arith.constant 0 : index
    %c0_5 = arith.constant 0 : index
    %3 = vector.load %arg2[%c0_2, %c0_3, %c0_4, %c0_5] : memref<2x9x128x128xf32, #tpu.memory_space<vmem>>, vector<1x1x128x128xf32>
    %4 = vector.shape_cast %3 : vector<1x1x128x128xf32> to vector<128x128xf32>
    %cst_6 = arith.constant dense<0.000000e+00> : vector<49x128xf32>
    %5 = tpu.matmul %2, %4, %cst_6 {dimension_numbers = #tpu.dot_dimension_numbers<[1], [0], [0], [1], [0, 0, 1, 1], [], []>} : vector<49x128xf32>, vector<128x128xf32>, vector<49x128xf32> -> vector<49x128xf32>
    %6 = arith.addf %0, %5 : vector<49x128xf32>
    %c0_7 = arith.constant 0 : index
    %c0_8 = arith.constant 0 : index
    %c128 = arith.constant 128 : index
    %7 = vector.load %arg1[%c0_7, %c0_8, %c128] : memref<2x49x1152xf32, #tpu.memory_space<vmem>>, vector<1x49x128xf32>
    %8 = vector.shape_cast %7 : vector<1x49x128xf32> to vector<49x128xf32>
    %c0_9 = arith.constant 0 : index
    %c1 = arith.constant 1 : index
    %c0_10 = arith.constant 0 : index
    %c0_11 = arith.constant 0 : index
    %9 = vector.load %arg2[%c0_9, %c1, %c0_10, %c0_11] : memref<2x9x128x128xf32, #tpu.memory_space<vmem>>, vector<1x1x128x128xf32>
    %10 = vector.shape_cast %9 : vector<1x1x128x128xf32> to vector<128x128xf32>
    %cst_12 = arith.constant dense<0.000000e+00> : vector<49x128xf32>
    %11 = tpu.matmul %8, %10, %cst_12 {dimension_numbers = #tpu.dot_dimension_numbers<[1], [0], [0], [1], [0, 0, 1, 1], [], []>} : vector<49x128xf32>, vector<128x128xf32>, vector<49x128xf32> -> vector<49x128xf32>
    %12 = arith.addf %6, %11 : vector<49x128xf32>
    %c0_13 = arith.constant 0 : index
    %c0_14 = arith.constant 0 : index
    %c256 = arith.constant 256 : index
    %13 = vector.load %arg1[%c0_13, %c0_14, %c256] : memref<2x49x1152xf32, #tpu.memory_space<vmem>>, vector<1x49x128xf32>
    %14 = vector.shape_cast %13 : vector<1x49x128xf32> to vector<49x128xf32>
    %c0_15 = arith.constant 0 : index
    %c2 = arith.constant 2 : index
    %c0_16 = arith.constant 0 : index
    %c0_17 = arith.constant 0 : index
    %15 = vector.load %arg2[%c0_15, %c2, %c0_16, %c0_17] : memref<2x9x128x128xf32, #tpu.memory_space<vmem>>, vector<1x1x128x128xf32>
    %16 = vector.shape_cast %15 : vector<1x1x128x128xf32> to vector<128x128xf32>
    %cst_18 = arith.constant dense<0.000000e+00> : vector<49x128xf32>
    %17 = tpu.matmul %14, %16, %cst_18 {dimension_numbers = #tpu.dot_dimension_numbers<[1], [0], [0], [1], [0, 0, 1, 1], [], []>} : vector<49x128xf32>, vector<128x128xf32>, vector<49x128xf32> -> vector<49x128xf32>
    %18 = arith.addf %12, %17 : vector<49x128xf32>
    %c0_19 = arith.constant 0 : index
    %c0_20 = arith.constant 0 : index
    %c384 = arith.constant 384 : index
    %19 = vector.load %arg1[%c0_19, %c0_20, %c384] : memref<2x49x1152xf32, #tpu.memory_space<vmem>>, vector<1x49x128xf32>
    %20 = vector.shape_cast %19 : vector<1x49x128xf32> to vector<49x128xf32>
    %c0_21 = arith.constant 0 : index
    %c3 = arith.constant 3 : index
    %c0_22 = arith.constant 0 : index
    %c0_23 = arith.constant 0 : index
    %21 = vector.load %arg2[%c0_21, %c3, %c0_22, %c0_23] : memref<2x9x128x128xf32, #tpu.memory_space<vmem>>, vector<1x1x128x128xf32>
    %22 = vector.shape_cast %21 : vector<1x1x128x128xf32> to vector<128x128xf32>
    %cst_24 = arith.constant dense<0.000000e+00> : vector<49x128xf32>
    %23 = tpu.matmul %20, %22, %cst_24 {dimension_numbers = #tpu.dot_dimension_numbers<[1], [0], [0], [1], [0, 0, 1, 1], [], []>} : vector<49x128xf32>, vector<128x128xf32>, vector<49x128xf32> -> vector<49x128xf32>
    %24 = arith.addf %18, %23 : vector<49x128xf32>
    %c0_25 = arith.constant 0 : index
    %c0_26 = arith.constant 0 : index
    %c512 = arith.constant 512 : index
    %25 = vector.load %arg1[%c0_25, %c0_26, %c512] : memref<2x49x1152xf32, #tpu.memory_space<vmem>>, vector<1x49x128xf32>
    %26 = vector.shape_cast %25 : vector<1x49x128xf32> to vector<49x128xf32>
    %c0_27 = arith.constant 0 : index
    %c4 = arith.constant 4 : index
    %c0_28 = arith.constant 0 : index
    %c0_29 = arith.constant 0 : index
    %27 = vector.load %arg2[%c0_27, %c4, %c0_28, %c0_29] : memref<2x9x128x128xf32, #tpu.memory_space<vmem>>, vector<1x1x128x128xf32>
    %28 = vector.shape_cast %27 : vector<1x1x128x128xf32> to vector<128x128xf32>
    %cst_30 = arith.constant dense<0.000000e+00> : vector<49x128xf32>
    %29 = tpu.matmul %26, %28, %cst_30 {dimension_numbers = #tpu.dot_dimension_numbers<[1], [0], [0], [1], [0, 0, 1, 1], [], []>} : vector<49x128xf32>, vector<128x128xf32>, vector<49x128xf32> -> vector<49x128xf32>
    %30 = arith.addf %24, %29 : vector<49x128xf32>
    %c0_31 = arith.constant 0 : index
    %c0_32 = arith.constant 0 : index
    %c640 = arith.constant 640 : index
    %31 = vector.load %arg1[%c0_31, %c0_32, %c640] : memref<2x49x1152xf32, #tpu.memory_space<vmem>>, vector<1x49x128xf32>
    %32 = vector.shape_cast %31 : vector<1x49x128xf32> to vector<49x128xf32>
    %c0_33 = arith.constant 0 : index
    %c5 = arith.constant 5 : index
    %c0_34 = arith.constant 0 : index
    %c0_35 = arith.constant 0 : index
    %33 = vector.load %arg2[%c0_33, %c5, %c0_34, %c0_35] : memref<2x9x128x128xf32, #tpu.memory_space<vmem>>, vector<1x1x128x128xf32>
    %34 = vector.shape_cast %33 : vector<1x1x128x128xf32> to vector<128x128xf32>
    %cst_36 = arith.constant dense<0.000000e+00> : vector<49x128xf32>
    %35 = tpu.matmul %32, %34, %cst_36 {dimension_numbers = #tpu.dot_dimension_numbers<[1], [0], [0], [1], [0, 0, 1, 1], [], []>} : vector<49x128xf32>, vector<128x128xf32>, vector<49x128xf32> -> vector<49x128xf32>
    %36 = arith.addf %30, %35 : vector<49x128xf32>
    %c0_37 = arith.constant 0 : index
    %c0_38 = arith.constant 0 : index
    %c768 = arith.constant 768 : index
    %37 = vector.load %arg1[%c0_37, %c0_38, %c768] : memref<2x49x1152xf32, #tpu.memory_space<vmem>>, vector<1x49x128xf32>
    %38 = vector.shape_cast %37 : vector<1x49x128xf32> to vector<49x128xf32>
    %c0_39 = arith.constant 0 : index
    %c6 = arith.constant 6 : index
    %c0_40 = arith.constant 0 : index
    %c0_41 = arith.constant 0 : index
    %39 = vector.load %arg2[%c0_39, %c6, %c0_40, %c0_41] : memref<2x9x128x128xf32, #tpu.memory_space<vmem>>, vector<1x1x128x128xf32>
    %40 = vector.shape_cast %39 : vector<1x1x128x128xf32> to vector<128x128xf32>
    %cst_42 = arith.constant dense<0.000000e+00> : vector<49x128xf32>
    %41 = tpu.matmul %38, %40, %cst_42 {dimension_numbers = #tpu.dot_dimension_numbers<[1], [0], [0], [1], [0, 0, 1, 1], [], []>} : vector<49x128xf32>, vector<128x128xf32>, vector<49x128xf32> -> vector<49x128xf32>
    %42 = arith.addf %36, %41 : vector<49x128xf32>
    %c0_43 = arith.constant 0 : index
    %c0_44 = arith.constant 0 : index
    %c896 = arith.constant 896 : index
    %43 = vector.load %arg1[%c0_43, %c0_44, %c896] : memref<2x49x1152xf32, #tpu.memory_space<vmem>>, vector<1x49x128xf32>
    %44 = vector.shape_cast %43 : vector<1x49x128xf32> to vector<49x128xf32>
    %c0_45 = arith.constant 0 : index
    %c7 = arith.constant 7 : index
    %c0_46 = arith.constant 0 : index
    %c0_47 = arith.constant 0 : index
    %45 = vector.load %arg2[%c0_45, %c7, %c0_46, %c0_47] : memref<2x9x128x128xf32, #tpu.memory_space<vmem>>, vector<1x1x128x128xf32>
    %46 = vector.shape_cast %45 : vector<1x1x128x128xf32> to vector<128x128xf32>
    %cst_48 = arith.constant dense<0.000000e+00> : vector<49x128xf32>
    %47 = tpu.matmul %44, %46, %cst_48 {dimension_numbers = #tpu.dot_dimension_numbers<[1], [0], [0], [1], [0, 0, 1, 1], [], []>} : vector<49x128xf32>, vector<128x128xf32>, vector<49x128xf32> -> vector<49x128xf32>
    %48 = arith.addf %42, %47 : vector<49x128xf32>
    %c0_49 = arith.constant 0 : index
    %c0_50 = arith.constant 0 : index
    %c1024 = arith.constant 1024 : index
    %49 = vector.load %arg1[%c0_49, %c0_50, %c1024] : memref<2x49x1152xf32, #tpu.memory_space<vmem>>, vector<1x49x128xf32>
    %50 = vector.shape_cast %49 : vector<1x49x128xf32> to vector<49x128xf32>
    %c0_51 = arith.constant 0 : index
    %c8 = arith.constant 8 : index
    %c0_52 = arith.constant 0 : index
    %c0_53 = arith.constant 0 : index
    %51 = vector.load %arg2[%c0_51, %c8, %c0_52, %c0_53] : memref<2x9x128x128xf32, #tpu.memory_space<vmem>>, vector<1x1x128x128xf32>
    %52 = vector.shape_cast %51 : vector<1x1x128x128xf32> to vector<128x128xf32>
    %cst_54 = arith.constant dense<0.000000e+00> : vector<49x128xf32>
    %53 = tpu.matmul %50, %52, %cst_54 {dimension_numbers = #tpu.dot_dimension_numbers<[1], [0], [0], [1], [0, 0, 1, 1], [], []>} : vector<49x128xf32>, vector<128x128xf32>, vector<49x128xf32> -> vector<49x128xf32>
    %54 = arith.addf %48, %53 : vector<49x128xf32>
    %cst_55 = arith.constant dense<0.000000e+00> : vector<128xf32>
    %55 = vector.multi_reduction <add>, %54, %cst_55 [0] : vector<49x128xf32> to vector<128xf32>
    %56 = vector.shape_cast %55 : vector<128xf32> to vector<1x128xf32>
    %cst_56 = arith.constant 0.0204081628 : f32
    %57 = vector.broadcast %cst_56 : f32 to vector<1x128xf32>
    %58 = arith.mulf %56, %57 : vector<1x128xf32>
    %59 = arith.mulf %54, %54 : vector<49x128xf32>
    %cst_57 = arith.constant dense<0.000000e+00> : vector<128xf32>
    %60 = vector.multi_reduction <add>, %59, %cst_57 [0] : vector<49x128xf32> to vector<128xf32>
    %61 = vector.shape_cast %60 : vector<128xf32> to vector<1x128xf32>
    %cst_58 = arith.constant 0.0204081628 : f32
    %62 = vector.broadcast %cst_58 : f32 to vector<1x128xf32>
    %63 = arith.mulf %61, %62 : vector<1x128xf32>
    %64 = arith.mulf %58, %58 : vector<1x128xf32>
    %65 = arith.subf %63, %64 : vector<1x128xf32>
    %66 = vector.broadcast %58 : vector<1x128xf32> to vector<49x128xf32>
    %67 = arith.subf %54, %66 : vector<49x128xf32>
    %cst_59 = arith.constant 9.99999974E-6 : f32
    %68 = vector.broadcast %cst_59 : f32 to vector<1x128xf32>
    %69 = arith.addf %65, %68 : vector<1x128xf32>
    %70 = math.rsqrt %69 : vector<1x128xf32>
    %71 = vector.broadcast %70 : vector<1x128xf32> to vector<49x128xf32>
    %72 = arith.mulf %67, %71 : vector<49x128xf32>
    %c0_60 = arith.constant 0 : index
    %c0_61 = arith.constant 0 : index
    %c0_62 = arith.constant 0 : index
    %73 = vector.load %arg3[%c0_60, %c0_61, %c0_62] : memref<2x1x128xf32, #tpu.memory_space<vmem>>, vector<1x1x128xf32>
    %74 = vector.shape_cast %73 : vector<1x1x128xf32> to vector<1x128xf32>
    %75 = vector.broadcast %74 : vector<1x128xf32> to vector<49x128xf32>
    %76 = arith.mulf %72, %75 : vector<49x128xf32>
    %c0_63 = arith.constant 0 : index
    %c0_64 = arith.constant 0 : index
    %c0_65 = arith.constant 0 : index
    %77 = vector.load %arg4[%c0_63, %c0_64, %c0_65] : memref<2x1x128xf32, #tpu.memory_space<vmem>>, vector<1x1x128xf32>
    %78 = vector.shape_cast %77 : vector<1x1x128xf32> to vector<1x128xf32>
    %79 = vector.broadcast %78 : vector<1x128xf32> to vector<49x128xf32>
    %80 = arith.addf %76, %79 : vector<49x128xf32>
    %cst_66 = arith.constant 0.000000e+00 : f32
    %81 = vector.broadcast %cst_66 : f32 to vector<49x128xf32>
    %82 = arith.maximumf %80, %81 : vector<49x128xf32>
    %c0_67 = arith.constant 0 : index
    %c0_68 = arith.constant 0 : index
    %83 = vector.load %arg5[%c0_67, %c0_68] : memref<49x256xf32, #tpu.memory_space<vmem>>, vector<49x128xf32>
    tpu.vector_store %arg5[%c0_67, %c0_68], %82 {strides = array<i32>} : memref<49x256xf32, #tpu.memory_space<vmem>>, vector<49x128xf32>,
    %cst_69 = arith.constant 0.000000e+00 : f32
    %84 = vector.broadcast %cst_69 : f32 to vector<49x128xf32>
    %c1_70 = arith.constant 1 : index
    %c0_71 = arith.constant 0 : index
    %c0_72 = arith.constant 0 : index
    %85 = vector.load %arg1[%c1_70, %c0_71, %c0_72] : memref<2x49x1152xf32, #tpu.memory_space<vmem>>, vector<1x49x128xf32>
    %86 = vector.shape_cast %85 : vector<1x49x128xf32> to vector<49x128xf32>
    %c1_73 = arith.constant 1 : index
    %c0_74 = arith.constant 0 : index
    %c0_75 = arith.constant 0 : index
    %c0_76 = arith.constant 0 : index
    %87 = vector.load %arg2[%c1_73, %c0_74, %c0_75, %c0_76] : memref<2x9x128x128xf32, #tpu.memory_space<vmem>>, vector<1x1x128x128xf32>
    %88 = vector.shape_cast %87 : vector<1x1x128x128xf32> to vector<128x128xf32>
    %cst_77 = arith.constant dense<0.000000e+00> : vector<49x128xf32>
    %89 = tpu.matmul %86, %88, %cst_77 {dimension_numbers = #tpu.dot_dimension_numbers<[1], [0], [0], [1], [0, 0, 1, 1], [], []>} : vector<49x128xf32>, vector<128x128xf32>, vector<49x128xf32> -> vector<49x128xf32>
    %90 = arith.addf %84, %89 : vector<49x128xf32>
    %c1_78 = arith.constant 1 : index
    %c0_79 = arith.constant 0 : index
    %c128_80 = arith.constant 128 : index
    %91 = vector.load %arg1[%c1_78, %c0_79, %c128_80] : memref<2x49x1152xf32, #tpu.memory_space<vmem>>, vector<1x49x128xf32>
    %92 = vector.shape_cast %91 : vector<1x49x128xf32> to vector<49x128xf32>
    %c1_81 = arith.constant 1 : index
    %c1_82 = arith.constant 1 : index
    %c0_83 = arith.constant 0 : index
    %c0_84 = arith.constant 0 : index
    %93 = vector.load %arg2[%c1_81, %c1_82, %c0_83, %c0_84] : memref<2x9x128x128xf32, #tpu.memory_space<vmem>>, vector<1x1x128x128xf32>
    %94 = vector.shape_cast %93 : vector<1x1x128x128xf32> to vector<128x128xf32>
    %cst_85 = arith.constant dense<0.000000e+00> : vector<49x128xf32>
    %95 = tpu.matmul %92, %94, %cst_85 {dimension_numbers = #tpu.dot_dimension_numbers<[1], [0], [0], [1], [0, 0, 1, 1], [], []>} : vector<49x128xf32>, vector<128x128xf32>, vector<49x128xf32> -> vector<49x128xf32>
    %96 = arith.addf %90, %95 : vector<49x128xf32>
    %c1_86 = arith.constant 1 : index
    %c0_87 = arith.constant 0 : index
    %c256_88 = arith.constant 256 : index
    %97 = vector.load %arg1[%c1_86, %c0_87, %c256_88] : memref<2x49x1152xf32, #tpu.memory_space<vmem>>, vector<1x49x128xf32>
    %98 = vector.shape_cast %97 : vector<1x49x128xf32> to vector<49x128xf32>
    %c1_89 = arith.constant 1 : index
    %c2_90 = arith.constant 2 : index
    %c0_91 = arith.constant 0 : index
    %c0_92 = arith.constant 0 : index
    %99 = vector.load %arg2[%c1_89, %c2_90, %c0_91, %c0_92] : memref<2x9x128x128xf32, #tpu.memory_space<vmem>>, vector<1x1x128x128xf32>
    %100 = vector.shape_cast %99 : vector<1x1x128x128xf32> to vector<128x128xf32>
    %cst_93 = arith.constant dense<0.000000e+00> : vector<49x128xf32>
    %101 = tpu.matmul %98, %100, %cst_93 {dimension_numbers = #tpu.dot_dimension_numbers<[1], [0], [0], [1], [0, 0, 1, 1], [], []>} : vector<49x128xf32>, vector<128x128xf32>, vector<49x128xf32> -> vector<49x128xf32>
    %102 = arith.addf %96, %101 : vector<49x128xf32>
    %c1_94 = arith.constant 1 : index
    %c0_95 = arith.constant 0 : index
    %c384_96 = arith.constant 384 : index
    %103 = vector.load %arg1[%c1_94, %c0_95, %c384_96] : memref<2x49x1152xf32, #tpu.memory_space<vmem>>, vector<1x49x128xf32>
    %104 = vector.shape_cast %103 : vector<1x49x128xf32> to vector<49x128xf32>
    %c1_97 = arith.constant 1 : index
    %c3_98 = arith.constant 3 : index
    %c0_99 = arith.constant 0 : index
    %c0_100 = arith.constant 0 : index
    %105 = vector.load %arg2[%c1_97, %c3_98, %c0_99, %c0_100] : memref<2x9x128x128xf32, #tpu.memory_space<vmem>>, vector<1x1x128x128xf32>
    %106 = vector.shape_cast %105 : vector<1x1x128x128xf32> to vector<128x128xf32>
    %cst_101 = arith.constant dense<0.000000e+00> : vector<49x128xf32>
    %107 = tpu.matmul %104, %106, %cst_101 {dimension_numbers = #tpu.dot_dimension_numbers<[1], [0], [0], [1], [0, 0, 1, 1], [], []>} : vector<49x128xf32>, vector<128x128xf32>, vector<49x128xf32> -> vector<49x128xf32>
    %108 = arith.addf %102, %107 : vector<49x128xf32>
    %c1_102 = arith.constant 1 : index
    %c0_103 = arith.constant 0 : index
    %c512_104 = arith.constant 512 : index
    %109 = vector.load %arg1[%c1_102, %c0_103, %c512_104] : memref<2x49x1152xf32, #tpu.memory_space<vmem>>, vector<1x49x128xf32>
    %110 = vector.shape_cast %109 : vector<1x49x128xf32> to vector<49x128xf32>
    %c1_105 = arith.constant 1 : index
    %c4_106 = arith.constant 4 : index
    %c0_107 = arith.constant 0 : index
    %c0_108 = arith.constant 0 : index
    %111 = vector.load %arg2[%c1_105, %c4_106, %c0_107, %c0_108] : memref<2x9x128x128xf32, #tpu.memory_space<vmem>>, vector<1x1x128x128xf32>
    %112 = vector.shape_cast %111 : vector<1x1x128x128xf32> to vector<128x128xf32>
    %cst_109 = arith.constant dense<0.000000e+00> : vector<49x128xf32>
    %113 = tpu.matmul %110, %112, %cst_109 {dimension_numbers = #tpu.dot_dimension_numbers<[1], [0], [0], [1], [0, 0, 1, 1], [], []>} : vector<49x128xf32>, vector<128x128xf32>, vector<49x128xf32> -> vector<49x128xf32>
    %114 = arith.addf %108, %113 : vector<49x128xf32>
    %c1_110 = arith.constant 1 : index
    %c0_111 = arith.constant 0 : index
    %c640_112 = arith.constant 640 : index
    %115 = vector.load %arg1[%c1_110, %c0_111, %c640_112] : memref<2x49x1152xf32, #tpu.memory_space<vmem>>, vector<1x49x128xf32>
    %116 = vector.shape_cast %115 : vector<1x49x128xf32> to vector<49x128xf32>
    %c1_113 = arith.constant 1 : index
    %c5_114 = arith.constant 5 : index
    %c0_115 = arith.constant 0 : index
    %c0_116 = arith.constant 0 : index
    %117 = vector.load %arg2[%c1_113, %c5_114, %c0_115, %c0_116] : memref<2x9x128x128xf32, #tpu.memory_space<vmem>>, vector<1x1x128x128xf32>
    %118 = vector.shape_cast %117 : vector<1x1x128x128xf32> to vector<128x128xf32>
    %cst_117 = arith.constant dense<0.000000e+00> : vector<49x128xf32>
    %119 = tpu.matmul %116, %118, %cst_117 {dimension_numbers = #tpu.dot_dimension_numbers<[1], [0], [0], [1], [0, 0, 1, 1], [], []>} : vector<49x128xf32>, vector<128x128xf32>, vector<49x128xf32> -> vector<49x128xf32>
    %120 = arith.addf %114, %119 : vector<49x128xf32>
    %c1_118 = arith.constant 1 : index
    %c0_119 = arith.constant 0 : index
    %c768_120 = arith.constant 768 : index
    %121 = vector.load %arg1[%c1_118, %c0_119, %c768_120] : memref<2x49x1152xf32, #tpu.memory_space<vmem>>, vector<1x49x128xf32>
    %122 = vector.shape_cast %121 : vector<1x49x128xf32> to vector<49x128xf32>
    %c1_121 = arith.constant 1 : index
    %c6_122 = arith.constant 6 : index
    %c0_123 = arith.constant 0 : index
    %c0_124 = arith.constant 0 : index
    %123 = vector.load %arg2[%c1_121, %c6_122, %c0_123, %c0_124] : memref<2x9x128x128xf32, #tpu.memory_space<vmem>>, vector<1x1x128x128xf32>
    %124 = vector.shape_cast %123 : vector<1x1x128x128xf32> to vector<128x128xf32>
    %cst_125 = arith.constant dense<0.000000e+00> : vector<49x128xf32>
    %125 = tpu.matmul %122, %124, %cst_125 {dimension_numbers = #tpu.dot_dimension_numbers<[1], [0], [0], [1], [0, 0, 1, 1], [], []>} : vector<49x128xf32>, vector<128x128xf32>, vector<49x128xf32> -> vector<49x128xf32>
    %126 = arith.addf %120, %125 : vector<49x128xf32>
    %c1_126 = arith.constant 1 : index
    %c0_127 = arith.constant 0 : index
    %c896_128 = arith.constant 896 : index
    %127 = vector.load %arg1[%c1_126, %c0_127, %c896_128] : memref<2x49x1152xf32, #tpu.memory_space<vmem>>, vector<1x49x128xf32>
    %128 = vector.shape_cast %127 : vector<1x49x128xf32> to vector<49x128xf32>
    %c1_129 = arith.constant 1 : index
    %c7_130 = arith.constant 7 : index
    %c0_131 = arith.constant 0 : index
    %c0_132 = arith.constant 0 : index
    %129 = vector.load %arg2[%c1_129, %c7_130, %c0_131, %c0_132] : memref<2x9x128x128xf32, #tpu.memory_space<vmem>>, vector<1x1x128x128xf32>
    %130 = vector.shape_cast %129 : vector<1x1x128x128xf32> to vector<128x128xf32>
    %cst_133 = arith.constant dense<0.000000e+00> : vector<49x128xf32>
    %131 = tpu.matmul %128, %130, %cst_133 {dimension_numbers = #tpu.dot_dimension_numbers<[1], [0], [0], [1], [0, 0, 1, 1], [], []>} : vector<49x128xf32>, vector<128x128xf32>, vector<49x128xf32> -> vector<49x128xf32>
    %132 = arith.addf %126, %131 : vector<49x128xf32>
    %c1_134 = arith.constant 1 : index
    %c0_135 = arith.constant 0 : index
    %c1024_136 = arith.constant 1024 : index
    %133 = vector.load %arg1[%c1_134, %c0_135, %c1024_136] : memref<2x49x1152xf32, #tpu.memory_space<vmem>>, vector<1x49x128xf32>
    %134 = vector.shape_cast %133 : vector<1x49x128xf32> to vector<49x128xf32>
    %c1_137 = arith.constant 1 : index
    %c8_138 = arith.constant 8 : index
    %c0_139 = arith.constant 0 : index
    %c0_140 = arith.constant 0 : index
    %135 = vector.load %arg2[%c1_137, %c8_138, %c0_139, %c0_140] : memref<2x9x128x128xf32, #tpu.memory_space<vmem>>, vector<1x1x128x128xf32>
    %136 = vector.shape_cast %135 : vector<1x1x128x128xf32> to vector<128x128xf32>
    %cst_141 = arith.constant dense<0.000000e+00> : vector<49x128xf32>
    %137 = tpu.matmul %134, %136, %cst_141 {dimension_numbers = #tpu.dot_dimension_numbers<[1], [0], [0], [1], [0, 0, 1, 1], [], []>} : vector<49x128xf32>, vector<128x128xf32>, vector<49x128xf32> -> vector<49x128xf32>
    %138 = arith.addf %132, %137 : vector<49x128xf32>
    %cst_142 = arith.constant dense<0.000000e+00> : vector<128xf32>
    %139 = vector.multi_reduction <add>, %138, %cst_142 [0] : vector<49x128xf32> to vector<128xf32>
    %140 = vector.shape_cast %139 : vector<128xf32> to vector<1x128xf32>
    %cst_143 = arith.constant 0.0204081628 : f32
    %141 = vector.broadcast %cst_143 : f32 to vector<1x128xf32>
    %142 = arith.mulf %140, %141 : vector<1x128xf32>
    %143 = arith.mulf %138, %138 : vector<49x128xf32>
    %cst_144 = arith.constant dense<0.000000e+00> : vector<128xf32>
    %144 = vector.multi_reduction <add>, %143, %cst_144 [0] : vector<49x128xf32> to vector<128xf32>
    %145 = vector.shape_cast %144 : vector<128xf32> to vector<1x128xf32>
    %cst_145 = arith.constant 0.0204081628 : f32
    %146 = vector.broadcast %cst_145 : f32 to vector<1x128xf32>
    %147 = arith.mulf %145, %146 : vector<1x128xf32>
    %148 = arith.mulf %142, %142 : vector<1x128xf32>
    %149 = arith.subf %147, %148 : vector<1x128xf32>
    %150 = vector.broadcast %142 : vector<1x128xf32> to vector<49x128xf32>
    %151 = arith.subf %138, %150 : vector<49x128xf32>
    %cst_146 = arith.constant 9.99999974E-6 : f32
    %152 = vector.broadcast %cst_146 : f32 to vector<1x128xf32>
    %153 = arith.addf %149, %152 : vector<1x128xf32>
    %154 = math.rsqrt %153 : vector<1x128xf32>
    %155 = vector.broadcast %154 : vector<1x128xf32> to vector<49x128xf32>
    %156 = arith.mulf %151, %155 : vector<49x128xf32>
    %c1_147 = arith.constant 1 : index
    %c0_148 = arith.constant 0 : index
    %c0_149 = arith.constant 0 : index
    %157 = vector.load %arg3[%c1_147, %c0_148, %c0_149] : memref<2x1x128xf32, #tpu.memory_space<vmem>>, vector<1x1x128xf32>
    %158 = vector.shape_cast %157 : vector<1x1x128xf32> to vector<1x128xf32>
    %159 = vector.broadcast %158 : vector<1x128xf32> to vector<49x128xf32>
    %160 = arith.mulf %156, %159 : vector<49x128xf32>
    %c1_150 = arith.constant 1 : index
    %c0_151 = arith.constant 0 : index
    %c0_152 = arith.constant 0 : index
    %161 = vector.load %arg4[%c1_150, %c0_151, %c0_152] : memref<2x1x128xf32, #tpu.memory_space<vmem>>, vector<1x1x128xf32>
    %162 = vector.shape_cast %161 : vector<1x1x128xf32> to vector<1x128xf32>
    %163 = vector.broadcast %162 : vector<1x128xf32> to vector<49x128xf32>
    %164 = arith.addf %160, %163 : vector<49x128xf32>
    %cst_153 = arith.constant 0.000000e+00 : f32
    %165 = vector.broadcast %cst_153 : f32 to vector<49x128xf32>
    %166 = arith.maximumf %164, %165 : vector<49x128xf32>
    %c0_154 = arith.constant 0 : index
    %c128_155 = arith.constant 128 : index
    %167 = vector.load %arg5[%c0_154, %c128_155] : memref<49x256xf32, #tpu.memory_space<vmem>>, vector<49x128xf32>
    tpu.vector_store %arg5[%c0_154, %c128_155], %166 {strides = array<i32>} : memref<49x256xf32, #tpu.memory_space<vmem>>, vector<49x128xf32>,
    return
  }
  func.func @transform_0(%arg0: i32) -> (i32, i32, i32) {
    %c0_i32 = arith.constant 0 : i32
    %c0_i32_0 = arith.constant 0 : i32
    %c0_i32_1 = arith.constant 0 : i32
    return %arg0, %c0_i32, %c0_i32_0 : i32, i32, i32
  }
  func.func @transform_1(%arg0: i32) -> (i32, i32, i32, i32) {
    %c0_i32 = arith.constant 0 : i32
    %c0_i32_0 = arith.constant 0 : i32
    %c0_i32_1 = arith.constant 0 : i32
    %c0_i32_2 = arith.constant 0 : i32
    return %arg0, %c0_i32, %c0_i32_0, %c0_i32_1 : i32, i32, i32, i32
  }
  func.func @transform_2(%arg0: i32) -> (i32, i32, i32) {
    %c0_i32 = arith.constant 0 : i32
    %c0_i32_0 = arith.constant 0 : i32
    %c0_i32_1 = arith.constant 0 : i32
    return %arg0, %c0_i32, %c0_i32_0 : i32, i32, i32
  }
  func.func @transform_3(%arg0: i32) -> (i32, i32, i32) {
    %c0_i32 = arith.constant 0 : i32
    %c0_i32_0 = arith.constant 0 : i32
    %c0_i32_1 = arith.constant 0 : i32
    return %arg0, %c0_i32, %c0_i32_0 : i32, i32, i32
  }
  func.func @transform_4(%arg0: i32) -> (i32, i32) {
    %c0_i32 = arith.constant 0 : i32
    %c0_i32_0 = arith.constant 0 : i32
    return %c0_i32, %arg0 : i32, i32
  }
}

</mosaic_0001>

<llo_original>
// kernel: conv_bn_relu.1
$region0: #{conv_bn_relu.1}
  #allocation0 [shape = 'u32[]', space=smem, size = 0x4, offset = 0x4, fixed_abs, tag = 'smem constant byte address 0x4 - core index']
  #allocation1 [shape = 'u32[144,128]{1,0:T(1,128)}', space=vmem, size = 0x12000, scoped, tag = 'internal scratch']
  %s0 = inlined_call_operand.vmem [shape: f32[4,49,1152], index: 0, kind: input, shape index: {}]
  %s1 = inlined_call_operand.vmem [shape: f32[4,9,128,128], index: 1, kind: input, shape index: {}]
  %s2 = inlined_call_operand.vmem [shape: f32[4,1,128], index: 2, kind: input, shape index: {}]
  %s3 = inlined_call_operand.vmem [shape: f32[4,1,128], index: 3, kind: input, shape index: {}]
  %s4 = inlined_call_operand.vmem [shape: f32[49,512], index: 4, kind: output, shape index: {}]
  %s5 = sld [smem:[#allocation0]]
  $region68: #{conv_bn_relu.1} parent=0
    _
  %s7 = ssub.s32 1, %s5
  %s8 = scalar_select 0, %s7, %s5
  $region1: #{conv_bn_relu.1} parent=0
    #allocation2 [shape = 'u8[114688]{0}', space=vmem, size = 0x1c000, scoped, tag = 'output window, operand 0']
    loop: start=0, step=1, limit=4
    $region2: #{conv_bn_relu.1} parent=1 // loop_pre_header
      _
    $region3: #{conv_bn_relu.1} parent=1 // loop_header
      %s10 = sphi 0, %s14
      %p11 = scmp.ge.s32.totalorder %s10, 4
      %s20 = sphi 0, %s22
      %s23 = sphi 0, %s20
      %s24 = sphi 0, %s23
      %s40 = sphi 0, %s24
      %s46 = sphi 0, %s48
      %s49 = sphi 0, %s46
      %s50 = sphi 0, %s49
      %s66 = sphi 0, %s50
      %s72 = sphi 0, %s74
      %s75 = sphi 0, %s72
      %s76 = sphi 0, %s75
      %s92 = sphi 0, %s76
      %s98 = sphi 0, %s100
      %s101 = sphi 0, %s98
      %s102 = sphi 0, %s101
      %s118 = sphi 0, %s102
      %s124 = sphi 0, %s126
      %s127 = sphi 0, %s124
      %s128 = sphi 0, %s127
      %s144 = sphi 0, %s128
    $region4: #{conv_bn_relu.1} parent=1 // loop_header_branch
      %13 = sbr.rel (%p11) target = $region8
    $region5: #{conv_bn_relu.1} parent=1 // loop_body
      %s15 = ssub.s32 %s10, 1
      %s16 = ssub.s32 %s10, 2
      %s17 = sadd.s32 %s10, 1
      %s18 = ssub.s32 %s10, %s17
      %p19 = scmp.eq.s32.totalorder %s18, 0
      %s21 = sadd.s32 %s20, 1
      %s22 = scalar_select %p19, %s20, %s21
      %p25 = pneg %p19
      %p26 = scmp.eq.s32.totalorder %s10, 1
      %p27 = por %p25, %p26
      %p28 = scmp.ne.s32.totalorder %s20, %s23
      %p29 = scmp.eq.s32.totalorder %s10, 0
      %p30 = por %p28, %p29
      %p31 = scmp.ne.s32.totalorder %s20, %s23
      %p32 = scmp.eq.s32.totalorder %s15, 1
      %p33 = por %p31, %p32
      %p34 = scmp.ne.s32.totalorder %s23, %s24
      %p35 = scmp.eq.s32.totalorder %s15, 0
      %p36 = por %p34, %p35
      %p37 = scmp.ne.s32.totalorder %s23, %s24
      %p38 = scmp.eq.s32.totalorder %s16, 1
      %p39 = por %p37, %p38
      %p41 = scmp.ne.s32.totalorder %s24, %s40
      %p42 = scmp.eq.s32.totalorder %s16, 0
      %p43 = por %p41, %p42
      %s44 = ssub.s32 %s10, %s17
      %p45 = scmp.eq.s32.totalorder %s44, 0
      %s47 = sadd.s32 %s46, 1
      %s48 = scalar_select %p45, %s46, %s47
      %p51 = pneg %p45
      %p52 = scmp.eq.s32.totalorder %s10, 1
      %p53 = por %p51, %p52
      %p54 = scmp.ne.s32.totalorder %s46, %s49
      %p55 = scmp.eq.s32.totalorder %s10, 0
      %p56 = por %p54, %p55
      %p57 = scmp.ne.s32.totalorder %s46, %s49
      %p58 = scmp.eq.s32.totalorder %s15, 1
      %p59 = por %p57, %p58
      %p60 = scmp.ne.s32.totalorder %s49, %s50
      %p61 = scmp.eq.s32.totalorder %s15, 0
      %p62 = por %p60, %p61
      %p63 = scmp.ne.s32.totalorder %s49, %s50
      %p64 = scmp.eq.s32.totalorder %s16, 1
      %p65 = por %p63, %p64
      %p67 = scmp.ne.s32.totalorder %s50, %s66
      %p68 = scmp.eq.s32.totalorder %s16, 0
      %p69 = por %p67, %p68
      %s70 = ssub.s32 %s10, %s17
      %p71 = scmp.eq.s32.totalorder %s70, 0
      %s73 = sadd.s32 %s72, 1
      %s74 = scalar_select %p71, %s72, %s73
      %p77 = pneg %p71
      %p78 = scmp.eq.s32.totalorder %s10, 1
      %p79 = por %p77, %p78
      %p80 = scmp.ne.s32.totalorder %s72, %s75
      %p81 = scmp.eq.s32.totalorder %s10, 0
      %p82 = por %p80, %p81
      %p83 = scmp.ne.s32.totalorder %s72, %s75
      %p84 = scmp.eq.s32.totalorder %s15, 1
      %p85 = por %p83, %p84
      %p86 = scmp.ne.s32.totalorder %s75, %s76
      %p87 = scmp.eq.s32.totalorder %s15, 0
      %p88 = por %p86, %p87
      %p89 = scmp.ne.s32.totalorder %s75, %s76
      %p90 = scmp.eq.s32.totalorder %s16, 1
      %p91 = por %p89, %p90
      %p93 = scmp.ne.s32.totalorder %s76, %s92
      %p94 = scmp.eq.s32.totalorder %s16, 0
      %p95 = por %p93, %p94
      %s96 = ssub.s32 %s10, %s17
      %p97 = scmp.eq.s32.totalorder %s96, 0
      %s99 = sadd.s32 %s98, 1
      %s100 = scalar_select %p97, %s98, %s99
      %p103 = pneg %p97
      %p104 = scmp.eq.s32.totalorder %s10, 1
      %p105 = por %p103, %p104
      %p106 = scmp.ne.s32.totalorder %s98, %s101
      %p107 = scmp.eq.s32.totalorder %s10, 0
      %p108 = por %p106, %p107
      %p109 = scmp.ne.s32.totalorder %s98, %s101
      %p110 = scmp.eq.s32.totalorder %s15, 1
      %p111 = por %p109, %p110
      %p112 = scmp.ne.s32.totalorder %s101, %s102
      %p113 = scmp.eq.s32.totalorder %s15, 0
      %p114 = por %p112, %p113
      %p115 = scmp.ne.s32.totalorder %s101, %s102
      %p116 = scmp.eq.s32.totalorder %s16, 1
      %p117 = por %p115, %p116
      %p119 = scmp.ne.s32.totalorder %s102, %s118
      %p120 = scmp.eq.s32.totalorder %s16, 0
      %p121 = por %p119, %p120
      %s122 = ssub.s32 %s10, %s17
      %p123 = scmp.eq.s32.totalorder %s122, 0
      %s125 = sadd.s32 %s124, 1
      %s126 = scalar_select %p123, %s124, %s125
      %p129 = pneg %p123
      %p130 = scmp.eq.s32.totalorder %s10, 1
      %p131 = por %p129, %p130
      %p132 = scmp.ne.s32.totalorder %s124, %s127
      %p133 = scmp.eq.s32.totalorder %s10, 0
      %p134 = por %p132, %p133
      %p135 = scmp.ne.s32.totalorder %s124, %s127
      %p136 = scmp.eq.s32.totalorder %s15, 1
      %p137 = por %p135, %p136
      %p138 = scmp.ne.s32.totalorder %s127, %s128
      %p139 = scmp.eq.s32.totalorder %s15, 0
      %p140 = por %p138, %p139
      %p141 = scmp.ne.s32.totalorder %s127, %s128
      %p142 = scmp.eq.s32.totalorder %s16, 1
      %p143 = por %p141, %p142
      %p145 = scmp.ne.s32.totalorder %s128, %s144
      %p146 = scmp.eq.s32.totalorder %s16, 0
      %p147 = por %p145, %p146
      %p148 = scmp.le.s32.totalorder 1, %s10
      %p149 = scmp.lt.s32.totalorder %s10, 3
      %p150 = pnand %p148, %p149
      %p151 = pneg %p150
      // Predicated region
      $region9: #{conv_bn_relu.1} parent=5 // pred_check
        _
      $region10: #{conv_bn_relu.1} parent=5 // pred_check_branch
        %153 = sbr.rel (%p150) target = $region12
      $region11: #{conv_bn_relu.1} parent=5 // pred_region
        %s154 = ssub.s32 %s10, 1
      $region12: #{conv_bn_relu.1} parent=5 // pred_fallthru
        _
      %p155 = scmp.lt.s32.totalorder %s10, 2
      // Predicated region
      $region13: #{conv_bn_relu.1} parent=5 // pred_check
        %p156 = pneg %p155
      $region14: #{conv_bn_relu.1} parent=5 // pred_check_branch
        %158 = sbr.rel (%p156) target = $region16
      $region15: #{conv_bn_relu.1} parent=5 // pred_region
        // Predicated region
        $region17: #{conv_bn_relu.1} parent=15 // pred_check
          %p159 = pneg %p30
        $region18: #{conv_bn_relu.1} parent=15 // pred_check_branch
          %161 = sbr.rel (%p159) target = $region20
        $region19: #{conv_bn_relu.1} parent=15 // pred_region
          %s162 = smul.u32 2, %s10
          %p163 = scmp.lt.s32.totalorder %s162, 3
          %s164 = scalar_select %p163, %s162, 3
          %s165 = smul.addr %s164, 63
          %s166 = smul.addr %s165, 8
          %s167 = scalar_lea.vmem %s0, %s166
          %s168 = smul.u32 2, %s10
        $region20: #{conv_bn_relu.1} parent=15 // pred_fallthru
          _
        // Predicated region
        $region21: #{conv_bn_relu.1} parent=15 // pred_check
          %p169 = pneg %p56
        $region22: #{conv_bn_relu.1} parent=15 // pred_check_branch
          %171 = sbr.rel (%p169) target = $region24
        $region23: #{conv_bn_relu.1} parent=15 // pred_region
          %s172 = smul.u32 2, %s10
          %p173 = scmp.lt.s32.totalorder %s172, 3
          %s174 = scalar_select %p173, %s172, 3
          %s175 = smul.addr %s174, 144
          %s176 = smul.addr %s175, 8
          %s177 = scalar_lea.vmem %s1, %s176
          %s178 = smul.u32 2, %s10
        $region24: #{conv_bn_relu.1} parent=15 // pred_fallthru
          _
        // Predicated region
        $region25: #{conv_bn_relu.1} parent=15 // pred_check
          %p179 = pneg %p82
        $region26: #{conv_bn_relu.1} parent=15 // pred_check_branch
          %181 = sbr.rel (%p179) target = $region28
        $region27: #{conv_bn_relu.1} parent=15 // pred_region
          %s182 = smul.u32 2, %s10
          %p183 = scmp.lt.s32.totalorder %s182, 3
          %s184 = scalar_select %p183, %s182, 3
          %s185 = scalar_lea.vmem %s2, %s184
          %s186 = smul.u32 2, %s10
        $region28: #{conv_bn_relu.1} parent=15 // pred_fallthru
          _
        // Predicated region
        $region29: #{conv_bn_relu.1} parent=15 // pred_check
          %p187 = pneg %p108
        $region30: #{conv_bn_relu.1} parent=15 // pred_check_branch
          %189 = sbr.rel (%p187) target = $region32
        $region31: #{conv_bn_relu.1} parent=15 // pred_region
          %s190 = smul.u32 2, %s10
          %p191 = scmp.lt.s32.totalorder %s190, 3
          %s192 = scalar_select %p191, %s190, 3
          %s193 = scalar_lea.vmem %s3, %s192
          %s194 = smul.u32 2, %s10
        $region32: #{conv_bn_relu.1} parent=15 // pred_fallthru
          _
      $region16: #{conv_bn_relu.1} parent=5 // pred_fallthru
        _
      %p195 = scmp.le.s32.totalorder 1, %s10
      %p196 = scmp.lt.s32.totalorder %s10, 3
      %p197 = pnand %p195, %p196
      %p198 = pneg %p197
      // Predicated region
      $region33: #{conv_bn_relu.1} parent=5 // pred_check
        _
      $region34: #{conv_bn_relu.1} parent=5 // pred_check_branch
        %200 = sbr.rel (%p197) target = $region36
      $region35: #{conv_bn_relu.1} parent=5 // pred_region
        %s201 = ssub.s32 %s10, 1
        %s202 = smul.u32 2, %s15
        %p203 = scmp.lt.s32.totalorder %s202, 3
        %s204 = scalar_select %p203, %s202, 3
        %s205 = smul.addr %s204, 63
        %s206 = smul.addr %s205, 8
        %s207 = scalar_lea.vmem %s0, %s206
        %p208 = pneg %p36
        %p209 = pneg %p33
        %s210 = smul.u32 2, %s15
        %p211 = scmp.lt.s32.totalorder %s210, 3
        %s212 = scalar_select %p211, %s210, 3
        %s213 = smul.addr %s212, 144
        %s214 = smul.addr %s213, 8
        %s215 = scalar_lea.vmem %s1, %s214
        %p216 = pneg %p62
        %p217 = pneg %p59
        %s218 = smul.u32 2, %s15
        %p219 = scmp.lt.s32.totalorder %s218, 3
        %s220 = scalar_select %p219, %s218, 3
        %s221 = scalar_lea.vmem %s2, %s220
        %p222 = pneg %p88
        %p223 = pneg %p85
        %s224 = smul.u32 2, %s15
        %p225 = scmp.lt.s32.totalorder %s224, 3
        %s226 = scalar_select %p225, %s224, 3
        %s227 = scalar_lea.vmem %s3, %s226
        %p228 = pneg %p114
        %p229 = pneg %p111
        %p230 = pneg %p140
        %p231 = pneg %p137
        %s232 = sand.u32 %s127, 1
        %s233 = sand.u32 %s127, 1
        %s234 = smul.addr %s233, 112
        %s235 = scalar_lea.vmem [#allocation2], %s234
        %s236 = smul.u32 2, %s15
        %p237 = scmp.lt.s32.totalorder %s236, 3
        %s238 = scalar_select %p237, %s236, 3
        %s239 = smul.addr %s238, 63
        %s240 = smul.addr %s239, 8
        %s241 = scalar_lea.vmem %s0, %s240
        %s242 = smul.u32 2, %s15
        %s243 = smul.u32 2, %s15
        %p244 = scmp.lt.s32.totalorder %s243, 3
        %s245 = scalar_select %p244, %s243, 3
        %s246 = smul.addr %s245, 144
        %s247 = smul.addr %s246, 8
        %s248 = scalar_lea.vmem %s1, %s247
        %s249 = smul.u32 2, %s15
        %s250 = smul.u32 2, %s15
        %p251 = scmp.lt.s32.totalorder %s250, 3
        %s252 = scalar_select %p251, %s250, 3
        %s253 = scalar_lea.vmem %s2, %s252
        %s254 = smul.u32 2, %s15
        %s255 = smul.u32 2, %s15
        %p256 = scmp.lt.s32.totalorder %s255, 3
        %s257 = scalar_select %p256, %s255, 3
        %s258 = scalar_lea.vmem %s3, %s257
        %s259 = smul.u32 2, %s15
        %s260 = smul.u32 2, %s15
        %v261 = vld [vmem:[%s241] sm:$0xff]
        %v262 = vld [vmem:[%s241 + $0x48] sm:$0xff]
        %v263 = vld [vmem:[%s241 + $0x90] sm:$0xff]
        %v264 = vld [vmem:[%s241 + $0xd8] sm:$0xff]
        %v265 = vld [vmem:[%s241 + $0x120] sm:$0xff]
        %v266 = vld [vmem:[%s241 + $0x168] sm:$0xff]
        %v267 = vld [vmem:[%s241 + $0x1b0] sm:$0x1]
        %v268 = vld [vmem:[%s248] sm:$0xff]
        %v269 = vld [vmem:[%s248 + $0x8] sm:$0xff]
        %v270 = vld [vmem:[%s248 + $0x10] sm:$0xff]
        %v271 = vld [vmem:[%s248 + $0x18] sm:$0xff]
        %v272 = vld [vmem:[%s248 + $0x20] sm:$0xff]
        %v273 = vld [vmem:[%s248 + $0x28] sm:$0xff]
        %v274 = vld [vmem:[%s248 + $0x30] sm:$0xff]
        %v275 = vld [vmem:[%s248 + $0x38] sm:$0xff]
        %v276 = vld [vmem:[%s248 + $0x40] sm:$0xff]
        %v277 = vld [vmem:[%s248 + $0x48] sm:$0xff]
        %v278 = vld [vmem:[%s248 + $0x50] sm:$0xff]
        %v279 = vld [vmem:[%s248 + $0x58] sm:$0xff]
        %v280 = vld [vmem:[%s248 + $0x60] sm:$0xff]
        %v281 = vld [vmem:[%s248 + $0x68] sm:$0xff]
        %v282 = vld [vmem:[%s248 + $0x70] sm:$0xff]
        %v283 = vld [vmem:[%s248 + $0x78] sm:$0xff]
        %v284 = vld [vmem:[%s241 + $0x8] sm:$0xff]
        %v285 = vld [vmem:[%s241 + $0x50] sm:$0xff]
        %v286 = vld [vmem:[%s241 + $0x98] sm:$0xff]
        %v287 = vld [vmem:[%s241 + $0xe0] sm:$0xff]
        %v288 = vld [vmem:[%s241 + $0x128] sm:$0xff]
        %v289 = vld [vmem:[%s241 + $0x170] sm:$0xff]
        %v290 = vld [vmem:[%s241 + $0x1b8] sm:$0x1]
        %s291 = scalar_lea.vmem %s248, 128
        %v292 = vld [vmem:[%s291] sm:$0xff]
        %v293 = vld [vmem:[%s291 + $0x8] sm:$0xff]
        %v294 = vld [vmem:[%s291 + $0x10] sm:$0xff]
        %v295 = vld [vmem:[%s291 + $0x18] sm:$0xff]
        %v296 = vld [vmem:[%s291 + $0x20] sm:$0xff]
        %v297 = vld [vmem:[%s291 + $0x28] sm:$0xff]
        %v298 = vld [vmem:[%s291 + $0x30] sm:$0xff]
        %v299 = vld [vmem:[%s291 + $0x38] sm:$0xff]
        %v300 = vld [vmem:[%s291 + $0x40] sm:$0xff]
        %v301 = vld [vmem:[%s291 + $0x48] sm:$0xff]
        %v302 = vld [vmem:[%s291 + $0x50] sm:$0xff]
        %v303 = vld [vmem:[%s291 + $0x58] sm:$0xff]
        %v304 = vld [vmem:[%s291 + $0x60] sm:$0xff]
        %v305 = vld [vmem:[%s291 + $0x68] sm:$0xff]
        %v306 = vld [vmem:[%s291 + $0x70] sm:$0xff]
        %v307 = vld [vmem:[%s291 + $0x78] sm:$0xff]
        %308 = vmatprep.subr.mxu0 0.0
        %309 = vmatpush1.msra.mxu0 %v307
        %310 = vmatprep.subr.mxu0 0.0
        %311 = vmatpush1.msra.mxu0 %v306
        %312 = vmatprep.subr.mxu0 0.0
        %313 = vmatpush1.msra.mxu0 %v305
        %314 = vmatprep.subr.mxu0 0.0
        %315 = vmatpush1.msra.mxu0 %v304
        %316 = vmatprep.subr.mxu0 0.0
        %317 = vmatpush1.msra.mxu0 %v303
        %318 = vmatprep.subr.mxu0 0.0
        %319 = vmatpush1.msra.mxu0 %v302
        %320 = vmatprep.subr.mxu0 0.0
        %321 = vmatpush1.msra.mxu0 %v301
        %322 = vmatprep.subr.mxu0 0.0
        %323 = vmatpush1.msra.mxu0 %v300
        %324 = vmatprep.subr.mxu0 0.0
        %325 = vmatpush1.msra.mxu0 %v299
        %326 = vmatprep.subr.mxu0 0.0
        %327 = vmatpush1.msra.mxu0 %v298
        %328 = vmatprep.subr.mxu0 0.0
        %329 = vmatpush1.msra.mxu0 %v297
        %330 = vmatprep.subr.mxu0 0.0
        %331 = vmatpush1.msra.mxu0 %v296
        %332 = vmatprep.subr.mxu0 0.0
        %333 = vmatpush1.msra.mxu0 %v295
        %334 = vmatprep.subr.mxu0 0.0
        %335 = vmatpush1.msra.mxu0 %v294
        %336 = vmatprep.subr.mxu0 0.0
        %337 = vmatpush1.msra.mxu0 %v293
        %338 = vmatprep.subr.mxu0 0.0
        %339 = vmatpush1.msra.mxu0 %v292
        %340 = vmatprep.subr.mxu0 0.0
        %341 = vmatpush2.msra.mxu0 0.0
        %342 = vmatprep.subr.mxu0 0.0
        %343 = vmatpush2.msra.mxu0 0.0
        %344 = vmatprep.subr.mxu0 0.0
        %345 = vmatpush2.msra.mxu0 0.0
        %346 = vmatprep.subr.mxu0 0.0
        %347 = vmatpush2.msra.mxu0 0.0
        %348 = vmatprep.subr.mxu0 0.0
        %349 = vmatpush2.msra.mxu0 0.0
        %350 = vmatprep.subr.mxu0 0.0
        %351 = vmatpush2.msra.mxu0 0.0
        %352 = vmatprep.subr.mxu0 0.0
        %353 = vmatpush2.msra.mxu0 0.0
        %354 = vmatprep.subr.mxu0 0.0
        %355 = vmatpush2.msra.mxu0 0.0
        %356 = vmatprep.subr.mxu0 0.0
        %357 = vmatpush2.msra.mxu0 0.0
        %358 = vmatprep.subr.mxu0 0.0
        %359 = vmatpush2.msra.mxu0 0.0
        %360 = vmatprep.subr.mxu0 0.0
        %361 = vmatpush2.msra.mxu0 0.0
        %362 = vmatprep.subr.mxu0 0.0
        %363 = vmatpush2.msra.mxu0 0.0
        %364 = vmatprep.subr.mxu0 0.0
        %365 = vmatpush2.msra.mxu0 0.0
        %366 = vmatprep.subr.mxu0 0.0
        %367 = vmatpush2.msra.mxu0 0.0
        %368 = vmatprep.subr.mxu0 0.0
        %369 = vmatpush2.msra.mxu0 0.0
        %370 = vmatprep.subr.mxu0 0.0
        %371 = vmatpush2.msra.mxu0 0.0
        %372 = vmatprep.mubr.f32.mxu0 0.0
        %373 = vmatmul.mubr.f32.gmra.mxu0 %v284
        %v374 = vpop.f32.mrf.mxu0
        %v375 = vadd.f32 0.0, %v374
        %v376 = vpop.f32.mrf.mxu0
        %377 = vmatprep.mubr.f32.mxu0 0.0
        %378 = vmatmul.mubr.f32.gmra.mxu0 %v285
        %v379 = vpop.f32.mrf.mxu0
        %v380 = vadd.f32 0.0, %v379
        %v381 = vpop.f32.mrf.mxu0
        %382 = vmatprep.mubr.f32.mxu0 0.0
        %383 = vmatmul.mubr.f32.gmra.mxu0 %v286
        %v384 = vpop.f32.mrf.mxu0
        %v385 = vadd.f32 0.0, %v384
        %v386 = vpop.f32.mrf.mxu0
        %387 = vmatprep.mubr.f32.mxu0 0.0
        %388 = vmatmul.mubr.f32.gmra.mxu0 %v287
        %v389 = vpop.f32.mrf.mxu0
        %v390 = vadd.f32 0.0, %v389
        %v391 = vpop.f32.mrf.mxu0
        %392 = vmatprep.mubr.f32.mxu0 0.0
        %393 = vmatmul.mubr.f32.gmra.mxu0 %v288
        %v394 = vpop.f32.mrf.mxu0
        %v395 = vadd.f32 0.0, %v394
        %v396 = vpop.f32.mrf.mxu0
        %397 = vmatprep.mubr.f32.mxu0 0.0
        %398 = vmatmul.mubr.f32.gmra.mxu0 %v289
        %v399 = vpop.f32.mrf.mxu0
        %v400 = vadd.f32 0.0, %v399
        %v401 = vpop.f32.mrf.mxu0
        %402 = vmatprep.mubr.f32.mxu0 0.0
        %403 = vmatmul.mubr.f32.gmra.mxu0 %v290
        %v404 = vpop.f32.mrf.mxu0
        %v405 = vadd.f32 0.0, %v404
        %v406 = vpop.f32.mrf.mxu0
        %407 = vdwg.mxu0
        %408 = vmatprep.subr.mxu0 0.0
        %409 = vmatpush1.msra.mxu0 %v283
        %410 = vmatprep.subr.mxu0 0.0
        %411 = vmatpush1.msra.mxu0 %v282
        %412 = vmatprep.subr.mxu0 0.0
        %413 = vmatpush1.msra.mxu0 %v281
        %414 = vmatprep.subr.mxu0 0.0
        %415 = vmatpush1.msra.mxu0 %v280
        %416 = vmatprep.subr.mxu0 0.0
        %417 = vmatpush1.msra.mxu0 %v279
        %418 = vmatprep.subr.mxu0 0.0
        %419 = vmatpush1.msra.mxu0 %v278
        %420 = vmatprep.subr.mxu0 0.0
        %421 = vmatpush1.msra.mxu0 %v277
        %422 = vmatprep.subr.mxu0 0.0
        %423 = vmatpush1.msra.mxu0 %v276
        %424 = vmatprep.subr.mxu0 0.0
        %425 = vmatpush1.msra.mxu0 %v275
        %426 = vmatprep.subr.mxu0 0.0
        %427 = vmatpush1.msra.mxu0 %v274
        %428 = vmatprep.subr.mxu0 0.0
        %429 = vmatpush1.msra.mxu0 %v273
        %430 = vmatprep.subr.mxu0 0.0
        %431 = vmatpush1.msra.mxu0 %v272
        %432 = vmatprep.subr.mxu0 0.0
        %433 = vmatpush1.msra.mxu0 %v271
        %434 = vmatprep.subr.mxu0 0.0
        %435 = vmatpush1.msra.mxu0 %v270
        %436 = vmatprep.subr.mxu0 0.0
        %437 = vmatpush1.msra.mxu0 %v269
        %438 = vmatprep.subr.mxu0 0.0
        %439 = vmatpush1.msra.mxu0 %v268
        %440 = vmatprep.subr.mxu0 0.0
        %441 = vmatpush2.msra.mxu0 0.0
        %442 = vmatprep.subr.mxu0 0.0
        %443 = vmatpush2.msra.mxu0 0.0
        %444 = vmatprep.subr.mxu0 0.0
        %445 = vmatpush2.msra.mxu0 0.0
        %446 = vmatprep.subr.mxu0 0.0
        %447 = vmatpush2.msra.mxu0 0.0
        %448 = vmatprep.subr.mxu0 0.0
        %449 = vmatpush2.msra.mxu0 0.0
        %450 = vmatprep.subr.mxu0 0.0
        %451 = vmatpush2.msra.mxu0 0.0
        %452 = vmatprep.subr.mxu0 0.0
        %453 = vmatpush2.msra.mxu0 0.0
        %454 = vmatprep.subr.mxu0 0.0
        %455 = vmatpush2.msra.mxu0 0.0
        %456 = vmatprep.subr.mxu0 0.0
        %457 = vmatpush2.msra.mxu0 0.0
        %458 = vmatprep.subr.mxu0 0.0
        %459 = vmatpush2.msra.mxu0 0.0
        %460 = vmatprep.subr.mxu0 0.0
        %461 = vmatpush2.msra.mxu0 0.0
        %462 = vmatprep.subr.mxu0 0.0
        %463 = vmatpush2.msra.mxu0 0.0
        %464 = vmatprep.subr.mxu0 0.0
        %465 = vmatpush2.msra.mxu0 0.0
        %466 = vmatprep.subr.mxu0 0.0
        %467 = vmatpush2.msra.mxu0 0.0
        %468 = vmatprep.subr.mxu0 0.0
        %469 = vmatpush2.msra.mxu0 0.0
        %470 = vmatprep.subr.mxu0 0.0
        %471 = vmatpush2.msra.mxu0 0.0
        %472 = vmatprep.mubr.f32.mxu0 0.0
        %473 = vmatmul.mubr.f32.gmra.mxu0 %v261
        %v474 = vpop.f32.mrf.mxu0
        %v475 = vadd.f32 %v375, %v474
        %v476 = vpop.f32.mrf.mxu0
        %477 = vmatprep.mubr.f32.mxu0 0.0
        %478 = vmatmul.mubr.f32.gmra.mxu0 %v262
        %v479 = vpop.f32.mrf.mxu0
        %v480 = vadd.f32 %v380, %v479
        %v481 = vpop.f32.mrf.mxu0
        %482 = vmatprep.mubr.f32.mxu0 0.0
        %483 = vmatmul.mubr.f32.gmra.mxu0 %v263
        %v484 = vpop.f32.mrf.mxu0
        %v485 = vadd.f32 %v385, %v484
        %v486 = vpop.f32.mrf.mxu0
        %487 = vmatprep.mubr.f32.mxu0 0.0
        %488 = vmatmul.mubr.f32.gmra.mxu0 %v264
        %v489 = vpop.f32.mrf.mxu0
        %v490 = vadd.f32 %v390, %v489
        %v491 = vpop.f32.mrf.mxu0
        %492 = vmatprep.mubr.f32.mxu0 0.0
        %493 = vmatmul.mubr.f32.gmra.mxu0 %v265
        %v494 = vpop.f32.mrf.mxu0
        %v495 = vadd.f32 %v395, %v494
        %v496 = vpop.f32.mrf.mxu0
        %497 = vmatprep.mubr.f32.mxu0 0.0
        %498 = vmatmul.mubr.f32.gmra.mxu0 %v266
        %v499 = vpop.f32.mrf.mxu0
        %v500 = vadd.f32 %v400, %v499
        %v501 = vpop.f32.mrf.mxu0
        %502 = vmatprep.mubr.f32.mxu0 0.0
        %503 = vmatmul.mubr.f32.gmra.mxu0 %v267
        %v504 = vpop.f32.mrf.mxu0
        %v505 = vadd.f32 %v405, %v504
        %v506 = vpop.f32.mrf.mxu0
        %507 = vdwg.mxu0
        %v508 = vld [vmem:[%s241 + $0x10] sm:$0xff]
        %v509 = vld [vmem:[%s241 + $0x58] sm:$0xff]
        %v510 = vld [vmem:[%s241 + $0xa0] sm:$0xff]
        %v511 = vld [vmem:[%s241 + $0xe8] sm:$0xff]
        %v512 = vld [vmem:[%s241 + $0x130] sm:$0xff]
        %v513 = vld [vmem:[%s241 + $0x178] sm:$0xff]
        %v514 = vld [vmem:[%s241 + $0x1c0] sm:$0x1]
        %s515 = scalar_lea.vmem %s248, 256
        %v516 = vld [vmem:[%s515] sm:$0xff]
        %v517 = vld [vmem:[%s515 + $0x8] sm:$0xff]
        %v518 = vld [vmem:[%s515 + $0x10] sm:$0xff]
        %v519 = vld [vmem:[%s515 + $0x18] sm:$0xff]
        %v520 = vld [vmem:[%s515 + $0x20] sm:$0xff]
        %v521 = vld [vmem:[%s515 + $0x28] sm:$0xff]
        %v522 = vld [vmem:[%s515 + $0x30] sm:$0xff]
        %v523 = vld [vmem:[%s515 + $0x38] sm:$0xff]
        %v524 = vld [vmem:[%s515 + $0x40] sm:$0xff]
        %v525 = vld [vmem:[%s515 + $0x48] sm:$0xff]
        %v526 = vld [vmem:[%s515 + $0x50] sm:$0xff]
        %v527 = vld [vmem:[%s515 + $0x58] sm:$0xff]
        %v528 = vld [vmem:[%s515 + $0x60] sm:$0xff]
        %v529 = vld [vmem:[%s515 + $0x68] sm:$0xff]
        %v530 = vld [vmem:[%s515 + $0x70] sm:$0xff]
        %v531 = vld [vmem:[%s515 + $0x78] sm:$0xff]
        %532 = vmatprep.subr.mxu0 0.0
        %533 = vmatpush1.msra.mxu0 %v531
        %534 = vmatprep.subr.mxu0 0.0
        %535 = vmatpush1.msra.mxu0 %v530
        %536 = vmatprep.subr.mxu0 0.0
        %537 = vmatpush1.msra.mxu0 %v529
        %538 = vmatprep.subr.mxu0 0.0
        %539 = vmatpush1.msra.mxu0 %v528
        %540 = vmatprep.subr.mxu0 0.0
        %541 = vmatpush1.msra.mxu0 %v527
        %542 = vmatprep.subr.mxu0 0.0
        %543 = vmatpush1.msra.mxu0 %v526
        %544 = vmatprep.subr.mxu0 0.0
        %545 = vmatpush1.msra.mxu0 %v525
        %546 = vmatprep.subr.mxu0 0.0
        %547 = vmatpush1.msra.mxu0 %v524
        %548 = vmatprep.subr.mxu0 0.0
        %549 = vmatpush1.msra.mxu0 %v523
        %550 = vmatprep.subr.mxu0 0.0
        %551 = vmatpush1.msra.mxu0 %v522
        %552 = vmatprep.subr.mxu0 0.0
        %553 = vmatpush1.msra.mxu0 %v521
        %554 = vmatprep.subr.mxu0 0.0
        %555 = vmatpush1.msra.mxu0 %v520
        %556 = vmatprep.subr.mxu0 0.0
        %557 = vmatpush1.msra.mxu0 %v519
        %558 = vmatprep.subr.mxu0 0.0
        %559 = vmatpush1.msra.mxu0 %v518
        %560 = vmatprep.subr.mxu0 0.0
        %561 = vmatpush1.msra.mxu0 %v517
        %562 = vmatprep.subr.mxu0 0.0
        %563 = vmatpush1.msra.mxu0 %v516
        %564 = vmatprep.subr.mxu0 0.0
        %565 = vmatpush2.msra.mxu0 0.0
        %566 = vmatprep.subr.mxu0 0.0
        %567 = vmatpush2.msra.mxu0 0.0
        %568 = vmatprep.subr.mxu0 0.0
        %569 = vmatpush2.msra.mxu0 0.0
        %570 = vmatprep.subr.mxu0 0.0
        %571 = vmatpush2.msra.mxu0 0.0
        %572 = vmatprep.subr.mxu0 0.0
        %573 = vmatpush2.msra.mxu0 0.0
        %574 = vmatprep.subr.mxu0 0.0
        %575 = vmatpush2.msra.mxu0 0.0
        %576 = vmatprep.subr.mxu0 0.0
        %577 = vmatpush2.msra.mxu0 0.0
        %578 = vmatprep.subr.mxu0 0.0
        %579 = vmatpush2.msra.mxu0 0.0
        %580 = vmatprep.subr.mxu0 0.0
        %581 = vmatpush2.msra.mxu0 0.0
        %582 = vmatprep.subr.mxu0 0.0
        %583 = vmatpush2.msra.mxu0 0.0
        %584 = vmatprep.subr.mxu0 0.0
        %585 = vmatpush2.msra.mxu0 0.0
        %586 = vmatprep.subr.mxu0 0.0
        %587 = vmatpush2.msra.mxu0 0.0
        %588 = vmatprep.subr.mxu0 0.0
        %589 = vmatpush2.msra.mxu0 0.0
        %590 = vmatprep.subr.mxu0 0.0
        %591 = vmatpush2.msra.mxu0 0.0
        %592 = vmatprep.subr.mxu0 0.0
        %593 = vmatpush2.msra.mxu0 0.0
        %594 = vmatprep.subr.mxu0 0.0
        %595 = vmatpush2.msra.mxu0 0.0
        %596 = vmatprep.mubr.f32.mxu0 0.0
        %597 = vmatmul.mubr.f32.gmra.mxu0 %v508
        %v598 = vpop.f32.mrf.mxu0
        %v599 = vadd.f32 0.0, %v598
        %v600 = vpop.f32.mrf.mxu0
        %601 = vmatprep.mubr.f32.mxu0 0.0
        %602 = vmatmul.mubr.f32.gmra.mxu0 %v509
        %v603 = vpop.f32.mrf.mxu0
        %v604 = vadd.f32 0.0, %v603
        %v605 = vpop.f32.mrf.mxu0
        %606 = vmatprep.mubr.f32.mxu0 0.0
        %607 = vmatmul.mubr.f32.gmra.mxu0 %v510
        %v608 = vpop.f32.mrf.mxu0
        %v609 = vadd.f32 0.0, %v608
        %v610 = vpop.f32.mrf.mxu0
        %611 = vmatprep.mubr.f32.mxu0 0.0
        %612 = vmatmul.mubr.f32.gmra.mxu0 %v511
        %v613 = vpop.f32.mrf.mxu0
        %v614 = vadd.f32 0.0, %v613
        %v615 = vpop.f32.mrf.mxu0
        %616 = vmatprep.mubr.f32.mxu0 0.0
        %617 = vmatmul.mubr.f32.gmra.mxu0 %v512
        %v618 = vpop.f32.mrf.mxu0
        %v619 = vadd.f32 0.0, %v618
        %v620 = vpop.f32.mrf.mxu0
        %621 = vmatprep.mubr.f32.mxu0 0.0
        %622 = vmatmul.mubr.f32.gmra.mxu0 %v513
        %v623 = vpop.f32.mrf.mxu0
        %v624 = vadd.f32 0.0, %v623
        %v625 = vpop.f32.mrf.mxu0
        %626 = vmatprep.mubr.f32.mxu0 0.0
        %627 = vmatmul.mubr.f32.gmra.mxu0 %v514
        %v628 = vpop.f32.mrf.mxu0
        %v629 = vadd.f32 0.0, %v628
        %v630 = vpop.f32.mrf.mxu0
        %631 = vdwg.mxu0
        %v632 = vadd.f32 %v475, %v599
        %v633 = vadd.f32 %v480, %v604
        %v634 = vadd.f32 %v485, %v609
        %v635 = vadd.f32 %v490, %v614
        %v636 = vadd.f32 %v495, %v619
        %v637 = vadd.f32 %v500, %v624
        %v638 = vadd.f32 %v505, %v629
        %v639 = vld [vmem:[%s241 + $0x18] sm:$0xff]
        %v640 = vld [vmem:[%s241 + $0x60] sm:$0xff]
        %v641 = vld [vmem:[%s241 + $0xa8] sm:$0xff]
        %v642 = vld [vmem:[%s241 + $0xf0] sm:$0xff]
        %v643 = vld [vmem:[%s241 + $0x138] sm:$0xff]
        %v644 = vld [vmem:[%s241 + $0x180] sm:$0xff]
        %v645 = vld [vmem:[%s241 + $0x1c8] sm:$0x1]
        %s646 = scalar_lea.vmem %s248, 384
        %v647 = vld [vmem:[%s646] sm:$0xff]
        %v648 = vld [vmem:[%s646 + $0x8] sm:$0xff]
        %v649 = vld [vmem:[%s646 + $0x10] sm:$0xff]
        %v650 = vld [vmem:[%s646 + $0x18] sm:$0xff]
        %v651 = vld [vmem:[%s646 + $0x20] sm:$0xff]
        %v652 = vld [vmem:[%s646 + $0x28] sm:$0xff]
        %v653 = vld [vmem:[%s646 + $0x30] sm:$0xff]
        %v654 = vld [vmem:[%s646 + $0x38] sm:$0xff]
        %v655 = vld [vmem:[%s646 + $0x40] sm:$0xff]
        %v656 = vld [vmem:[%s646 + $0x48] sm:$0xff]
        %v657 = vld [vmem:[%s646 + $0x50] sm:$0xff]
        %v658 = vld [vmem:[%s646 + $0x58] sm:$0xff]
        %v659 = vld [vmem:[%s646 + $0x60] sm:$0xff]
        %v660 = vld [vmem:[%s646 + $0x68] sm:$0xff]
        %v661 = vld [vmem:[%s646 + $0x70] sm:$0xff]
        %v662 = vld [vmem:[%s646 + $0x78] sm:$0xff]
        %663 = vmatprep.subr.mxu0 0.0
        %664 = vmatpush1.msra.mxu0 %v662
        %665 = vmatprep.subr.mxu0 0.0
        %666 = vmatpush1.msra.mxu0 %v661
        %667 = vmatprep.subr.mxu0 0.0
        %668 = vmatpush1.msra.mxu0 %v660
        %669 = vmatprep.subr.mxu0 0.0
        %670 = vmatpush1.msra.mxu0 %v659
        %671 = vmatprep.subr.mxu0 0.0
        %672 = vmatpush1.msra.mxu0 %v658
        %673 = vmatprep.subr.mxu0 0.0
        %674 = vmatpush1.msra.mxu0 %v657
        %675 = vmatprep.subr.mxu0 0.0
        %676 = vmatpush1.msra.mxu0 %v656
        %677 = vmatprep.subr.mxu0 0.0
        %678 = vmatpush1.msra.mxu0 %v655
        %679 = vmatprep.subr.mxu0 0.0
        %680 = vmatpush1.msra.mxu0 %v654
        %681 = vmatprep.subr.mxu0 0.0
        %682 = vmatpush1.msra.mxu0 %v653
        %683 = vmatprep.subr.mxu0 0.0
        %684 = vmatpush1.msra.mxu0 %v652
        %685 = vmatprep.subr.mxu0 0.0
        %686 = vmatpush1.msra.mxu0 %v651
        %687 = vmatprep.subr.mxu0 0.0
        %688 = vmatpush1.msra.mxu0 %v650
        %689 = vmatprep.subr.mxu0 0.0
        %690 = vmatpush1.msra.mxu0 %v649
        %691 = vmatprep.subr.mxu0 0.0
        %692 = vmatpush1.msra.mxu0 %v648
        %693 = vmatprep.subr.mxu0 0.0
        %694 = vmatpush1.msra.mxu0 %v647
        %695 = vmatprep.subr.mxu0 0.0
        %696 = vmatpush2.msra.mxu0 0.0
        %697 = vmatprep.subr.mxu0 0.0
        %698 = vmatpush2.msra.mxu0 0.0
        %699 = vmatprep.subr.mxu0 0.0
        %700 = vmatpush2.msra.mxu0 0.0
        %701 = vmatprep.subr.mxu0 0.0
        %702 = vmatpush2.msra.mxu0 0.0
        %703 = vmatprep.subr.mxu0 0.0
        %704 = vmatpush2.msra.mxu0 0.0
        %705 = vmatprep.subr.mxu0 0.0
        %706 = vmatpush2.msra.mxu0 0.0
        %707 = vmatprep.subr.mxu0 0.0
        %708 = vmatpush2.msra.mxu0 0.0
        %709 = vmatprep.subr.mxu0 0.0
        %710 = vmatpush2.msra.mxu0 0.0
        %711 = vmatprep.subr.mxu0 0.0
        %712 = vmatpush2.msra.mxu0 0.0
        %713 = vmatprep.subr.mxu0 0.0
        %714 = vmatpush2.msra.mxu0 0.0
        %715 = vmatprep.subr.mxu0 0.0
        %716 = vmatpush2.msra.mxu0 0.0
        %717 = vmatprep.subr.mxu0 0.0
        %718 = vmatpush2.msra.mxu0 0.0
        %719 = vmatprep.subr.mxu0 0.0
        %720 = vmatpush2.msra.mxu0 0.0
        %721 = vmatprep.subr.mxu0 0.0
        %722 = vmatpush2.msra.mxu0 0.0
        %723 = vmatprep.subr.mxu0 0.0
        %724 = vmatpush2.msra.mxu0 0.0
        %725 = vmatprep.subr.mxu0 0.0
        %726 = vmatpush2.msra.mxu0 0.0
        %727 = vmatprep.mubr.f32.mxu0 0.0
        %728 = vmatmul.mubr.f32.gmra.mxu0 %v639
        %v729 = vpop.f32.mrf.mxu0
        %v730 = vadd.f32 0.0, %v729
        %v731 = vpop.f32.mrf.mxu0
        %732 = vmatprep.mubr.f32.mxu0 0.0
        %733 = vmatmul.mubr.f32.gmra.mxu0 %v640
        %v734 = vpop.f32.mrf.mxu0
        %v735 = vadd.f32 0.0, %v734
        %v736 = vpop.f32.mrf.mxu0
        %737 = vmatprep.mubr.f32.mxu0 0.0
        %738 = vmatmul.mubr.f32.gmra.mxu0 %v641
        %v739 = vpop.f32.mrf.mxu0
        %v740 = vadd.f32 0.0, %v739
        %v741 = vpop.f32.mrf.mxu0
        %742 = vmatprep.mubr.f32.mxu0 0.0
        %743 = vmatmul.mubr.f32.gmra.mxu0 %v642
        %v744 = vpop.f32.mrf.mxu0
        %v745 = vadd.f32 0.0, %v744
        %v746 = vpop.f32.mrf.mxu0
        %747 = vmatprep.mubr.f32.mxu0 0.0
        %748 = vmatmul.mubr.f32.gmra.mxu0 %v643
        %v749 = vpop.f32.mrf.mxu0
        %v750 = vadd.f32 0.0, %v749
        %v751 = vpop.f32.mrf.mxu0
        %752 = vmatprep.mubr.f32.mxu0 0.0
        %753 = vmatmul.mubr.f32.gmra.mxu0 %v644
        %v754 = vpop.f32.mrf.mxu0
        %v755 = vadd.f32 0.0, %v754
        %v756 = vpop.f32.mrf.mxu0
        %757 = vmatprep.mubr.f32.mxu0 0.0
        %758 = vmatmul.mubr.f32.gmra.mxu0 %v645
        %v759 = vpop.f32.mrf.mxu0
        %v760 = vadd.f32 0.0, %v759
        %v761 = vpop.f32.mrf.mxu0
        %762 = vdwg.mxu0
        %v763 = vadd.f32 %v632, %v730
        %v764 = vadd.f32 %v633, %v735
        %v765 = vadd.f32 %v634, %v740
        %v766 = vadd.f32 %v635, %v745
        %v767 = vadd.f32 %v636, %v750
        %v768 = vadd.f32 %v637, %v755
        %v769 = vadd.f32 %v638, %v760
        %v770 = vld [vmem:[%s241 + $0x20] sm:$0xff]
        %v771 = vld [vmem:[%s241 + $0x68] sm:$0xff]
        %v772 = vld [vmem:[%s241 + $0xb0] sm:$0xff]
        %v773 = vld [vmem:[%s241 + $0xf8] sm:$0xff]
        %v774 = vld [vmem:[%s241 + $0x140] sm:$0xff]
        %v775 = vld [vmem:[%s241 + $0x188] sm:$0xff]
        %v776 = vld [vmem:[%s241 + $0x1d0] sm:$0x1]
        %s777 = scalar_lea.vmem %s248, 512
        %v778 = vld [vmem:[%s777] sm:$0xff]
        %v779 = vld [vmem:[%s777 + $0x8] sm:$0xff]
        %v780 = vld [vmem:[%s777 + $0x10] sm:$0xff]
        %v781 = vld [vmem:[%s777 + $0x18] sm:$0xff]
        %v782 = vld [vmem:[%s777 + $0x20] sm:$0xff]
        %v783 = vld [vmem:[%s777 + $0x28] sm:$0xff]
        %v784 = vld [vmem:[%s777 + $0x30] sm:$0xff]
        %v785 = vld [vmem:[%s777 + $0x38] sm:$0xff]
        %v786 = vld [vmem:[%s777 + $0x40] sm:$0xff]
        %v787 = vld [vmem:[%s777 + $0x48] sm:$0xff]
        %v788 = vld [vmem:[%s777 + $0x50] sm:$0xff]
        %v789 = vld [vmem:[%s777 + $0x58] sm:$0xff]
        %v790 = vld [vmem:[%s777 + $0x60] sm:$0xff]
        %v791 = vld [vmem:[%s777 + $0x68] sm:$0xff]
        %v792 = vld [vmem:[%s777 + $0x70] sm:$0xff]
        %v793 = vld [vmem:[%s777 + $0x78] sm:$0xff]
        %794 = vmatprep.subr.mxu0 0.0
        %795 = vmatpush1.msra.mxu0 %v793
        %796 = vmatprep.subr.mxu0 0.0
        %797 = vmatpush1.msra.mxu0 %v792
        %798 = vmatprep.subr.mxu0 0.0
        %799 = vmatpush1.msra.mxu0 %v791
        %800 = vmatprep.subr.mxu0 0.0
        %801 = vmatpush1.msra.mxu0 %v790
        %802 = vmatprep.subr.mxu0 0.0
        %803 = vmatpush1.msra.mxu0 %v789
        %804 = vmatprep.subr.mxu0 0.0
        %805 = vmatpush1.msra.mxu0 %v788
        %806 = vmatprep.subr.mxu0 0.0
        %807 = vmatpush1.msra.mxu0 %v787
        %808 = vmatprep.subr.mxu0 0.0
        %809 = vmatpush1.msra.mxu0 %v786
        %810 = vmatprep.subr.mxu0 0.0
        %811 = vmatpush1.msra.mxu0 %v785
        %812 = vmatprep.subr.mxu0 0.0
        %813 = vmatpush1.msra.mxu0 %v784
        %814 = vmatprep.subr.mxu0 0.0
        %815 = vmatpush1.msra.mxu0 %v783
        %816 = vmatprep.subr.mxu0 0.0
        %817 = vmatpush1.msra.mxu0 %v782
        %818 = vmatprep.subr.mxu0 0.0
        %819 = vmatpush1.msra.mxu0 %v781
        %820 = vmatprep.subr.mxu0 0.0
        %821 = vmatpush1.msra.mxu0 %v780
        %822 = vmatprep.subr.mxu0 0.0
        %823 = vmatpush1.msra.mxu0 %v779
        %824 = vmatprep.subr.mxu0 0.0
        %825 = vmatpush1.msra.mxu0 %v778
        %826 = vmatprep.subr.mxu0 0.0
        %827 = vmatpush2.msra.mxu0 0.0
        %828 = vmatprep.subr.mxu0 0.0
        %829 = vmatpush2.msra.mxu0 0.0
        %830 = vmatprep.subr.mxu0 0.0
        %831 = vmatpush2.msra.mxu0 0.0
        %832 = vmatprep.subr.mxu0 0.0
        %833 = vmatpush2.msra.mxu0 0.0
        %834 = vmatprep.subr.mxu0 0.0
        %835 = vmatpush2.msra.mxu0 0.0
        %836 = vmatprep.subr.mxu0 0.0
        %837 = vmatpush2.msra.mxu0 0.0
        %838 = vmatprep.subr.mxu0 0.0
        %839 = vmatpush2.msra.mxu0 0.0
        %840 = vmatprep.subr.mxu0 0.0
        %841 = vmatpush2.msra.mxu0 0.0
        %842 = vmatprep.subr.mxu0 0.0
        %843 = vmatpush2.msra.mxu0 0.0
        %844 = vmatprep.subr.mxu0 0.0
        %845 = vmatpush2.msra.mxu0 0.0
        %846 = vmatprep.subr.mxu0 0.0
        %847 = vmatpush2.msra.mxu0 0.0
        %848 = vmatprep.subr.mxu0 0.0
        %849 = vmatpush2.msra.mxu0 0.0
        %850 = vmatprep.subr.mxu0 0.0
        %851 = vmatpush2.msra.mxu0 0.0
        %852 = vmatprep.subr.mxu0 0.0
        %853 = vmatpush2.msra.mxu0 0.0
        %854 = vmatprep.subr.mxu0 0.0
        %855 = vmatpush2.msra.mxu0 0.0
        %856 = vmatprep.subr.mxu0 0.0
        %857 = vmatpush2.msra.mxu0 0.0
        %858 = vmatprep.mubr.f32.mxu0 0.0
        %859 = vmatmul.mubr.f32.gmra.mxu0 %v770
        %v860 = vpop.f32.mrf.mxu0
        %v861 = vadd.f32 0.0, %v860
        %v862 = vpop.f32.mrf.mxu0
        %863 = vmatprep.mubr.f32.mxu0 0.0
        %864 = vmatmul.mubr.f32.gmra.mxu0 %v771
        %v865 = vpop.f32.mrf.mxu0
        %v866 = vadd.f32 0.0, %v865
        %v867 = vpop.f32.mrf.mxu0
        %868 = vmatprep.mubr.f32.mxu0 0.0
        %869 = vmatmul.mubr.f32.gmra.mxu0 %v772
        %v870 = vpop.f32.mrf.mxu0
        %v871 = vadd.f32 0.0, %v870
        %v872 = vpop.f32.mrf.mxu0
        %873 = vmatprep.mubr.f32.mxu0 0.0
        %874 = vmatmul.mubr.f32.gmra.mxu0 %v773
        %v875 = vpop.f32.mrf.mxu0
        %v876 = vadd.f32 0.0, %v875
        %v877 = vpop.f32.mrf.mxu0
        %878 = vmatprep.mubr.f32.mxu0 0.0
        %879 = vmatmul.mubr.f32.gmra.mxu0 %v774
        %v880 = vpop.f32.mrf.mxu0
        %v881 = vadd.f32 0.0, %v880
        %v882 = vpop.f32.mrf.mxu0
        %883 = vmatprep.mubr.f32.mxu0 0.0
        %884 = vmatmul.mubr.f32.gmra.mxu0 %v775
        %v885 = vpop.f32.mrf.mxu0
        %v886 = vadd.f32 0.0, %v885
        %v887 = vpop.f32.mrf.mxu0
        %888 = vmatprep.mubr.f32.mxu0 0.0
        %889 = vmatmul.mubr.f32.gmra.mxu0 %v776
        %v890 = vpop.f32.mrf.mxu0
        %v891 = vadd.f32 0.0, %v890
        %v892 = vpop.f32.mrf.mxu0
        %893 = vdwg.mxu0
        %v894 = vadd.f32 %v763, %v861
        %v895 = vadd.f32 %v764, %v866
        %v896 = vadd.f32 %v765, %v871
        %v897 = vadd.f32 %v766, %v876
        %v898 = vadd.f32 %v767, %v881
        %v899 = vadd.f32 %v768, %v886
        %v900 = vadd.f32 %v769, %v891
        %v901 = vld [vmem:[%s241 + $0x28] sm:$0xff]
        %v902 = vld [vmem:[%s241 + $0x70] sm:$0xff]
        %v903 = vld [vmem:[%s241 + $0xb8] sm:$0xff]
        %v904 = vld [vmem:[%s241 + $0x100] sm:$0xff]
        %v905 = vld [vmem:[%s241 + $0x148] sm:$0xff]
        %v906 = vld [vmem:[%s241 + $0x190] sm:$0xff]
        %v907 = vld [vmem:[%s241 + $0x1d8] sm:$0x1]
        %s908 = scalar_lea.vmem %s248, 640
        %v909 = vld [vmem:[%s908] sm:$0xff]
        %v910 = vld [vmem:[%s908 + $0x8] sm:$0xff]
        %v911 = vld [vmem:[%s908 + $0x10] sm:$0xff]
        %v912 = vld [vmem:[%s908 + $0x18] sm:$0xff]
        %v913 = vld [vmem:[%s908 + $0x20] sm:$0xff]
        %v914 = vld [vmem:[%s908 + $0x28] sm:$0xff]
        %v915 = vld [vmem:[%s908 + $0x30] sm:$0xff]
        %v916 = vld [vmem:[%s908 + $0x38] sm:$0xff]
        %v917 = vld [vmem:[%s908 + $0x40] sm:$0xff]
        %v918 = vld [vmem:[%s908 + $0x48] sm:$0xff]
        %v919 = vld [vmem:[%s908 + $0x50] sm:$0xff]
        %v920 = vld [vmem:[%s908 + $0x58] sm:$0xff]
        %v921 = vld [vmem:[%s908 + $0x60] sm:$0xff]
        %v922 = vld [vmem:[%s908 + $0x68] sm:$0xff]
        %v923 = vld [vmem:[%s908 + $0x70] sm:$0xff]
        %v924 = vld [vmem:[%s908 + $0x78] sm:$0xff]
        %925 = vmatprep.subr.mxu0 0.0
        %926 = vmatpush1.msra.mxu0 %v924
        %927 = vmatprep.subr.mxu0 0.0
        %928 = vmatpush1.msra.mxu0 %v923
        %929 = vmatprep.subr.mxu0 0.0
        %930 = vmatpush1.msra.mxu0 %v922
        %931 = vmatprep.subr.mxu0 0.0
        %932 = vmatpush1.msra.mxu0 %v921
        %933 = vmatprep.subr.mxu0 0.0
        %934 = vmatpush1.msra.mxu0 %v920
        %935 = vmatprep.subr.mxu0 0.0
        %936 = vmatpush1.msra.mxu0 %v919
        %937 = vmatprep.subr.mxu0 0.0
        %938 = vmatpush1.msra.mxu0 %v918
        %939 = vmatprep.subr.mxu0 0.0
        %940 = vmatpush1.msra.mxu0 %v917
        %941 = vmatprep.subr.mxu0 0.0
        %942 = vmatpush1.msra.mxu0 %v916
        %943 = vmatprep.subr.mxu0 0.0
        %944 = vmatpush1.msra.mxu0 %v915
        %945 = vmatprep.subr.mxu0 0.0
        %946 = vmatpush1.msra.mxu0 %v914
        %947 = vmatprep.subr.mxu0 0.0
        %948 = vmatpush1.msra.mxu0 %v913
        %949 = vmatprep.subr.mxu0 0.0
        %950 = vmatpush1.msra.mxu0 %v912
        %951 = vmatprep.subr.mxu0 0.0
        %952 = vmatpush1.msra.mxu0 %v911
        %953 = vmatprep.subr.mxu0 0.0
        %954 = vmatpush1.msra.mxu0 %v910
        %955 = vmatprep.subr.mxu0 0.0
        %956 = vmatpush1.msra.mxu0 %v909
        %957 = vmatprep.subr.mxu0 0.0
        %958 = vmatpush2.msra.mxu0 0.0
        %959 = vmatprep.subr.mxu0 0.0
        %960 = vmatpush2.msra.mxu0 0.0
        %961 = vmatprep.subr.mxu0 0.0
        %962 = vmatpush2.msra.mxu0 0.0
        %963 = vmatprep.subr.mxu0 0.0
        %964 = vmatpush2.msra.mxu0 0.0
        %965 = vmatprep.subr.mxu0 0.0
        %966 = vmatpush2.msra.mxu0 0.0
        %967 = vmatprep.subr.mxu0 0.0
        %968 = vmatpush2.msra.mxu0 0.0
        %969 = vmatprep.subr.mxu0 0.0
        %970 = vmatpush2.msra.mxu0 0.0
        %971 = vmatprep.subr.mxu0 0.0
        %972 = vmatpush2.msra.mxu0 0.0
        %973 = vmatprep.subr.mxu0 0.0
        %974 = vmatpush2.msra.mxu0 0.0
        %975 = vmatprep.subr.mxu0 0.0
        %976 = vmatpush2.msra.mxu0 0.0
        %977 = vmatprep.subr.mxu0 0.0
        %978 = vmatpush2.msra.mxu0 0.0
        %979 = vmatprep.subr.mxu0 0.0
        %980 = vmatpush2.msra.mxu0 0.0
        %981 = vmatprep.subr.mxu0 0.0
        %982 = vmatpush2.msra.mxu0 0.0
        %983 = vmatprep.subr.mxu0 0.0
        %984 = vmatpush2.msra.mxu0 0.0
        %985 = vmatprep.subr.mxu0 0.0
        %986 = vmatpush2.msra.mxu0 0.0
        %987 = vmatprep.subr.mxu0 0.0
        %988 = vmatpush2.msra.mxu0 0.0
        %989 = vmatprep.mubr.f32.mxu0 0.0
        %990 = vmatmul.mubr.f32.gmra.mxu0 %v901
        %v991 = vpop.f32.mrf.mxu0
        %v992 = vadd.f32 0.0, %v991
        %v993 = vpop.f32.mrf.mxu0
        %994 = vmatprep.mubr.f32.mxu0 0.0
        %995 = vmatmul.mubr.f32.gmra.mxu0 %v902
        %v996 = vpop.f32.mrf.mxu0
        %v997 = vadd.f32 0.0, %v996
        %v998 = vpop.f32.mrf.mxu0
        %999 = vmatprep.mubr.f32.mxu0 0.0
        %1000 = vmatmul.mubr.f32.gmra.mxu0 %v903
        %v1001 = vpop.f32.mrf.mxu0
        %v1002 = vadd.f32 0.0, %v1001
        %v1003 = vpop.f32.mrf.mxu0
        %1004 = vmatprep.mubr.f32.mxu0 0.0
        %1005 = vmatmul.mubr.f32.gmra.mxu0 %v904
        %v1006 = vpop.f32.mrf.mxu0
        %v1007 = vadd.f32 0.0, %v1006
        %v1008 = vpop.f32.mrf.mxu0
        %1009 = vmatprep.mubr.f32.mxu0 0.0
        %1010 = vmatmul.mubr.f32.gmra.mxu0 %v905
        %v1011 = vpop.f32.mrf.mxu0
        %v1012 = vadd.f32 0.0, %v1011
        %v1013 = vpop.f32.mrf.mxu0
        %1014 = vmatprep.mubr.f32.mxu0 0.0
        %1015 = vmatmul.mubr.f32.gmra.mxu0 %v906
        %v1016 = vpop.f32.mrf.mxu0
        %v1017 = vadd.f32 0.0, %v1016
        %v1018 = vpop.f32.mrf.mxu0
        %1019 = vmatprep.mubr.f32.mxu0 0.0
        %1020 = vmatmul.mubr.f32.gmra.mxu0 %v907
        %v1021 = vpop.f32.mrf.mxu0
        %v1022 = vadd.f32 0.0, %v1021
        %v1023 = vpop.f32.mrf.mxu0
        %1024 = vdwg.mxu0
        %v1025 = vadd.f32 %v894, %v992
        %v1026 = vadd.f32 %v895, %v997
        %v1027 = vadd.f32 %v896, %v1002
        %v1028 = vadd.f32 %v897, %v1007
        %v1029 = vadd.f32 %v898, %v1012
        %v1030 = vadd.f32 %v899, %v1017
        %v1031 = vadd.f32 %v900, %v1022
        %v1032 = vld [vmem:[%s241 + $0x30] sm:$0xff]
        %v1033 = vld [vmem:[%s241 + $0x78] sm:$0xff]
        %v1034 = vld [vmem:[%s241 + $0xc0] sm:$0xff]
        %v1035 = vld [vmem:[%s241 + $0x108] sm:$0xff]
        %v1036 = vld [vmem:[%s241 + $0x150] sm:$0xff]
        %v1037 = vld [vmem:[%s241 + $0x198] sm:$0xff]
        %v1038 = vld [vmem:[%s241 + $0x1e0] sm:$0x1]
        %s1039 = scalar_lea.vmem %s248, 768
        %v1040 = vld [vmem:[%s1039] sm:$0xff]
        %v1041 = vld [vmem:[%s1039 + $0x8] sm:$0xff]
        %v1042 = vld [vmem:[%s1039 + $0x10] sm:$0xff]
        %v1043 = vld [vmem:[%s1039 + $0x18] sm:$0xff]
        %v1044 = vld [vmem:[%s1039 + $0x20] sm:$0xff]
        %v1045 = vld [vmem:[%s1039 + $0x28] sm:$0xff]
        %v1046 = vld [vmem:[%s1039 + $0x30] sm:$0xff]
        %v1047 = vld [vmem:[%s1039 + $0x38] sm:$0xff]
        %v1048 = vld [vmem:[%s1039 + $0x40] sm:$0xff]
        %v1049 = vld [vmem:[%s1039 + $0x48] sm:$0xff]
        %v1050 = vld [vmem:[%s1039 + $0x50] sm:$0xff]
        %v1051 = vld [vmem:[%s1039 + $0x58] sm:$0xff]
        %v1052 = vld [vmem:[%s1039 + $0x60] sm:$0xff]
        %v1053 = vld [vmem:[%s1039 + $0x68] sm:$0xff]
        %v1054 = vld [vmem:[%s1039 + $0x70] sm:$0xff]
        %v1055 = vld [vmem:[%s1039 + $0x78] sm:$0xff]
        %1056 = vmatprep.subr.mxu0 0.0
        %1057 = vmatpush1.msra.mxu0 %v1055
        %1058 = vmatprep.subr.mxu0 0.0
        %1059 = vmatpush1.msra.mxu0 %v1054
        %1060 = vmatprep.subr.mxu0 0.0
        %1061 = vmatpush1.msra.mxu0 %v1053
        %1062 = vmatprep.subr.mxu0 0.0
        %1063 = vmatpush1.msra.mxu0 %v1052
        %1064 = vmatprep.subr.mxu0 0.0
        %1065 = vmatpush1.msra.mxu0 %v1051
        %1066 = vmatprep.subr.mxu0 0.0
        %1067 = vmatpush1.msra.mxu0 %v1050
        %1068 = vmatprep.subr.mxu0 0.0
        %1069 = vmatpush1.msra.mxu0 %v1049
        %1070 = vmatprep.subr.mxu0 0.0
        %1071 = vmatpush1.msra.mxu0 %v1048
        %1072 = vmatprep.subr.mxu0 0.0
        %1073 = vmatpush1.msra.mxu0 %v1047
        %1074 = vmatprep.subr.mxu0 0.0
        %1075 = vmatpush1.msra.mxu0 %v1046
        %1076 = vmatprep.subr.mxu0 0.0
        %1077 = vmatpush1.msra.mxu0 %v1045
        %1078 = vmatprep.subr.mxu0 0.0
        %1079 = vmatpush1.msra.mxu0 %v1044
        %1080 = vmatprep.subr.mxu0 0.0
        %1081 = vmatpush1.msra.mxu0 %v1043
        %1082 = vmatprep.subr.mxu0 0.0
        %1083 = vmatpush1.msra.mxu0 %v1042
        %1084 = vmatprep.subr.mxu0 0.0
        %1085 = vmatpush1.msra.mxu0 %v1041
        %1086 = vmatprep.subr.mxu0 0.0
        %1087 = vmatpush1.msra.mxu0 %v1040
        %1088 = vmatprep.subr.mxu0 0.0
        %1089 = vmatpush2.msra.mxu0 0.0
        %1090 = vmatprep.subr.mxu0 0.0
        %1091 = vmatpush2.msra.mxu0 0.0
        %1092 = vmatprep.subr.mxu0 0.0
        %1093 = vmatpush2.msra.mxu0 0.0
        %1094 = vmatprep.subr.mxu0 0.0
        %1095 = vmatpush2.msra.mxu0 0.0
        %1096 = vmatprep.subr.mxu0 0.0
        %1097 = vmatpush2.msra.mxu0 0.0
        %1098 = vmatprep.subr.mxu0 0.0
        %1099 = vmatpush2.msra.mxu0 0.0
        %1100 = vmatprep.subr.mxu0 0.0
        %1101 = vmatpush2.msra.mxu0 0.0
        %1102 = vmatprep.subr.mxu0 0.0
        %1103 = vmatpush2.msra.mxu0 0.0
        %1104 = vmatprep.subr.mxu0 0.0
        %1105 = vmatpush2.msra.mxu0 0.0
        %1106 = vmatprep.subr.mxu0 0.0
        %1107 = vmatpush2.msra.mxu0 0.0
        %1108 = vmatprep.subr.mxu0 0.0
        %1109 = vmatpush2.msra.mxu0 0.0
        %1110 = vmatprep.subr.mxu0 0.0
        %1111 = vmatpush2.msra.mxu0 0.0
        %1112 = vmatprep.subr.mxu0 0.0
        %1113 = vmatpush2.msra.mxu0 0.0
        %1114 = vmatprep.subr.mxu0 0.0
        %1115 = vmatpush2.msra.mxu0 0.0
        %1116 = vmatprep.subr.mxu0 0.0
        %1117 = vmatpush2.msra.mxu0 0.0
        %1118 = vmatprep.subr.mxu0 0.0
        %1119 = vmatpush2.msra.mxu0 0.0
        %1120 = vmatprep.mubr.f32.mxu0 0.0
        %1121 = vmatmul.mubr.f32.gmra.mxu0 %v1032
        %v1122 = vpop.f32.mrf.mxu0
        %v1123 = vadd.f32 0.0, %v1122
        %v1124 = vpop.f32.mrf.mxu0
        %1125 = vmatprep.mubr.f32.mxu0 0.0
        %1126 = vmatmul.mubr.f32.gmra.mxu0 %v1033
        %v1127 = vpop.f32.mrf.mxu0
        %v1128 = vadd.f32 0.0, %v1127
        %v1129 = vpop.f32.mrf.mxu0
        %1130 = vmatprep.mubr.f32.mxu0 0.0
        %1131 = vmatmul.mubr.f32.gmra.mxu0 %v1034
        %v1132 = vpop.f32.mrf.mxu0
        %v1133 = vadd.f32 0.0, %v1132
        %v1134 = vpop.f32.mrf.mxu0
        %1135 = vmatprep.mubr.f32.mxu0 0.0
        %1136 = vmatmul.mubr.f32.gmra.mxu0 %v1035
        %v1137 = vpop.f32.mrf.mxu0
        %v1138 = vadd.f32 0.0, %v1137
        %v1139 = vpop.f32.mrf.mxu0
        %1140 = vmatprep.mubr.f32.mxu0 0.0
        %1141 = vmatmul.mubr.f32.gmra.mxu0 %v1036
        %v1142 = vpop.f32.mrf.mxu0
        %v1143 = vadd.f32 0.0, %v1142
        %v1144 = vpop.f32.mrf.mxu0
        %1145 = vmatprep.mubr.f32.mxu0 0.0
        %1146 = vmatmul.mubr.f32.gmra.mxu0 %v1037
        %v1147 = vpop.f32.mrf.mxu0
        %v1148 = vadd.f32 0.0, %v1147
        %v1149 = vpop.f32.mrf.mxu0
        %1150 = vmatprep.mubr.f32.mxu0 0.0
        %1151 = vmatmul.mubr.f32.gmra.mxu0 %v1038
        %v1152 = vpop.f32.mrf.mxu0
        %v1153 = vadd.f32 0.0, %v1152
        %v1154 = vpop.f32.mrf.mxu0
        %1155 = vdwg.mxu0
        %v1156 = vadd.f32 %v1025, %v1123
        %v1157 = vadd.f32 %v1026, %v1128
        %v1158 = vadd.f32 %v1027, %v1133
        %v1159 = vadd.f32 %v1028, %v1138
        %v1160 = vadd.f32 %v1029, %v1143
        %v1161 = vadd.f32 %v1030, %v1148
        %v1162 = vadd.f32 %v1031, %v1153
        %v1163 = vld [vmem:[%s241 + $0x38] sm:$0xff]
        %v1164 = vld [vmem:[%s241 + $0x80] sm:$0xff]
        %v1165 = vld [vmem:[%s241 + $0xc8] sm:$0xff]
        %v1166 = vld [vmem:[%s241 + $0x110] sm:$0xff]
        %v1167 = vld [vmem:[%s241 + $0x158] sm:$0xff]
        %v1168 = vld [vmem:[%s241 + $0x1a0] sm:$0xff]
        %v1169 = vld [vmem:[%s241 + $0x1e8] sm:$0x1]
        %s1170 = scalar_lea.vmem %s248, 896
        %v1171 = vld [vmem:[%s1170] sm:$0xff]
        %v1172 = vld [vmem:[%s1170 + $0x8] sm:$0xff]
        %v1173 = vld [vmem:[%s1170 + $0x10] sm:$0xff]
        %v1174 = vld [vmem:[%s1170 + $0x18] sm:$0xff]
        %v1175 = vld [vmem:[%s1170 + $0x20] sm:$0xff]
        %v1176 = vld [vmem:[%s1170 + $0x28] sm:$0xff]
        %v1177 = vld [vmem:[%s1170 + $0x30] sm:$0xff]
        %v1178 = vld [vmem:[%s1170 + $0x38] sm:$0xff]
        %v1179 = vld [vmem:[%s1170 + $0x40] sm:$0xff]
        %v1180 = vld [vmem:[%s1170 + $0x48] sm:$0xff]
        %v1181 = vld [vmem:[%s1170 + $0x50] sm:$0xff]
        %v1182 = vld [vmem:[%s1170 + $0x58] sm:$0xff]
        %v1183 = vld [vmem:[%s1170 + $0x60] sm:$0xff]
        %v1184 = vld [vmem:[%s1170 + $0x68] sm:$0xff]
        %v1185 = vld [vmem:[%s1170 + $0x70] sm:$0xff]
        %v1186 = vld [vmem:[%s1170 + $0x78] sm:$0xff]
        %1187 = vmatprep.subr.mxu0 0.0
        %1188 = vmatpush1.msra.mxu0 %v1186
        %1189 = vmatprep.subr.mxu0 0.0
        %1190 = vmatpush1.msra.mxu0 %v1185
        %1191 = vmatprep.subr.mxu0 0.0
        %1192 = vmatpush1.msra.mxu0 %v1184
        %1193 = vmatprep.subr.mxu0 0.0
        %1194 = vmatpush1.msra.mxu0 %v1183
        %1195 = vmatprep.subr.mxu0 0.0
        %1196 = vmatpush1.msra.mxu0 %v1182
        %1197 = vmatprep.subr.mxu0 0.0
        %1198 = vmatpush1.msra.mxu0 %v1181
        %1199 = vmatprep.subr.mxu0 0.0
        %1200 = vmatpush1.msra.mxu0 %v1180
        %1201 = vmatprep.subr.mxu0 0.0
        %1202 = vmatpush1.msra.mxu0 %v1179
        %1203 = vmatprep.subr.mxu0 0.0
        %1204 = vmatpush1.msra.mxu0 %v1178
        %1205 = vmatprep.subr.mxu0 0.0
        %1206 = vmatpush1.msra.mxu0 %v1177
        %1207 = vmatprep.subr.mxu0 0.0
        %1208 = vmatpush1.msra.mxu0 %v1176
        %1209 = vmatprep.subr.mxu0 0.0
        %1210 = vmatpush1.msra.mxu0 %v1175
        %1211 = vmatprep.subr.mxu0 0.0
        %1212 = vmatpush1.msra.mxu0 %v1174
        %1213 = vmatprep.subr.mxu0 0.0
        %1214 = vmatpush1.msra.mxu0 %v1173
        %1215 = vmatprep.subr.mxu0 0.0
        %1216 = vmatpush1.msra.mxu0 %v1172
        %1217 = vmatprep.subr.mxu0 0.0
        %1218 = vmatpush1.msra.mxu0 %v1171
        %1219 = vmatprep.subr.mxu0 0.0
        %1220 = vmatpush2.msra.mxu0 0.0
        %1221 = vmatprep.subr.mxu0 0.0
        %1222 = vmatpush2.msra.mxu0 0.0
        %1223 = vmatprep.subr.mxu0 0.0
        %1224 = vmatpush2.msra.mxu0 0.0
        %1225 = vmatprep.subr.mxu0 0.0
        %1226 = vmatpush2.msra.mxu0 0.0
        %1227 = vmatprep.subr.mxu0 0.0
        %1228 = vmatpush2.msra.mxu0 0.0
        %1229 = vmatprep.subr.mxu0 0.0
        %1230 = vmatpush2.msra.mxu0 0.0
        %1231 = vmatprep.subr.mxu0 0.0
        %1232 = vmatpush2.msra.mxu0 0.0
        %1233 = vmatprep.subr.mxu0 0.0
        %1234 = vmatpush2.msra.mxu0 0.0
        %1235 = vmatprep.subr.mxu0 0.0
        %1236 = vmatpush2.msra.mxu0 0.0
        %1237 = vmatprep.subr.mxu0 0.0
        %1238 = vmatpush2.msra.mxu0 0.0
        %1239 = vmatprep.subr.mxu0 0.0
        %1240 = vmatpush2.msra.mxu0 0.0
        %1241 = vmatprep.subr.mxu0 0.0
        %1242 = vmatpush2.msra.mxu0 0.0
        %1243 = vmatprep.subr.mxu0 0.0
        %1244 = vmatpush2.msra.mxu0 0.0
        %1245 = vmatprep.subr.mxu0 0.0
        %1246 = vmatpush2.msra.mxu0 0.0
        %1247 = vmatprep.subr.mxu0 0.0
        %1248 = vmatpush2.msra.mxu0 0.0
        %1249 = vmatprep.subr.mxu0 0.0
        %1250 = vmatpush2.msra.mxu0 0.0
        %1251 = vmatprep.mubr.f32.mxu0 0.0
        %1252 = vmatmul.mubr.f32.gmra.mxu0 %v1163
        %v1253 = vpop.f32.mrf.mxu0
        %v1254 = vadd.f32 0.0, %v1253
        %v1255 = vpop.f32.mrf.mxu0
        %1256 = vmatprep.mubr.f32.mxu0 0.0
        %1257 = vmatmul.mubr.f32.gmra.mxu0 %v1164
        %v1258 = vpop.f32.mrf.mxu0
        %v1259 = vadd.f32 0.0, %v1258
        %v1260 = vpop.f32.mrf.mxu0
        %1261 = vmatprep.mubr.f32.mxu0 0.0
        %1262 = vmatmul.mubr.f32.gmra.mxu0 %v1165
        %v1263 = vpop.f32.mrf.mxu0
        %v1264 = vadd.f32 0.0, %v1263
        %v1265 = vpop.f32.mrf.mxu0
        %1266 = vmatprep.mubr.f32.mxu0 0.0
        %1267 = vmatmul.mubr.f32.gmra.mxu0 %v1166
        %v1268 = vpop.f32.mrf.mxu0
        %v1269 = vadd.f32 0.0, %v1268
        %v1270 = vpop.f32.mrf.mxu0
        %1271 = vmatprep.mubr.f32.mxu0 0.0
        %1272 = vmatmul.mubr.f32.gmra.mxu0 %v1167
        %v1273 = vpop.f32.mrf.mxu0
        %v1274 = vadd.f32 0.0, %v1273
        %v1275 = vpop.f32.mrf.mxu0
        %1276 = vmatprep.mubr.f32.mxu0 0.0
        %1277 = vmatmul.mubr.f32.gmra.mxu0 %v1168
        %v1278 = vpop.f32.mrf.mxu0
        %v1279 = vadd.f32 0.0, %v1278
        %v1280 = vpop.f32.mrf.mxu0
        %1281 = vmatprep.mubr.f32.mxu0 0.0
        %1282 = vmatmul.mubr.f32.gmra.mxu0 %v1169
        %v1283 = vpop.f32.mrf.mxu0
        %v1284 = vadd.f32 0.0, %v1283
        %v1285 = vpop.f32.mrf.mxu0
        %1286 = vdwg.mxu0
        %v1287 = vadd.f32 %v1156, %v1254
        %v1288 = vadd.f32 %v1157, %v1259
        %v1289 = vadd.f32 %v1158, %v1264
        %v1290 = vadd.f32 %v1159, %v1269
        %v1291 = vadd.f32 %v1160, %v1274
        %v1292 = vadd.f32 %v1161, %v1279
        %v1293 = vadd.f32 %v1162, %v1284
        %v1294 = vld [vmem:[%s241 + $0x40] sm:$0xff]
        %v1295 = vld [vmem:[%s241 + $0x88] sm:$0xff]
        %v1296 = vld [vmem:[%s241 + $0xd0] sm:$0xff]
        %v1297 = vld [vmem:[%s241 + $0x118] sm:$0xff]
        %v1298 = vld [vmem:[%s241 + $0x160] sm:$0xff]
        %v1299 = vld [vmem:[%s241 + $0x1a8] sm:$0xff]
        %v1300 = vld [vmem:[%s241 + $0x1f0] sm:$0x1]
        %s1301 = scalar_lea.vmem %s248, 1024
        %v1302 = vld [vmem:[%s1301] sm:$0xff]
        %v1303 = vld [vmem:[%s1301 + $0x8] sm:$0xff]
        %v1304 = vld [vmem:[%s1301 + $0x10] sm:$0xff]
        %v1305 = vld [vmem:[%s1301 + $0x18] sm:$0xff]
        %v1306 = vld [vmem:[%s1301 + $0x20] sm:$0xff]
        %v1307 = vld [vmem:[%s1301 + $0x28] sm:$0xff]
        %v1308 = vld [vmem:[%s1301 + $0x30] sm:$0xff]
        %v1309 = vld [vmem:[%s1301 + $0x38] sm:$0xff]
        %v1310 = vld [vmem:[%s1301 + $0x40] sm:$0xff]
        %v1311 = vld [vmem:[%s1301 + $0x48] sm:$0xff]
        %v1312 = vld [vmem:[%s1301 + $0x50] sm:$0xff]
        %v1313 = vld [vmem:[%s1301 + $0x58] sm:$0xff]
        %v1314 = vld [vmem:[%s1301 + $0x60] sm:$0xff]
        %v1315 = vld [vmem:[%s1301 + $0x68] sm:$0xff]
        %v1316 = vld [vmem:[%s1301 + $0x70] sm:$0xff]
        %v1317 = vld [vmem:[%s1301 + $0x78] sm:$0xff]
        %1318 = vmatprep.subr.mxu0 0.0
        %1319 = vmatpush1.msra.mxu0 %v1317
        %1320 = vmatprep.subr.mxu0 0.0
        %1321 = vmatpush1.msra.mxu0 %v1316
        %1322 = vmatprep.subr.mxu0 0.0
        %1323 = vmatpush1.msra.mxu0 %v1315
        %1324 = vmatprep.subr.mxu0 0.0
        %1325 = vmatpush1.msra.mxu0 %v1314
        %1326 = vmatprep.subr.mxu0 0.0
        %1327 = vmatpush1.msra.mxu0 %v1313
        %1328 = vmatprep.subr.mxu0 0.0
        %1329 = vmatpush1.msra.mxu0 %v1312
        %1330 = vmatprep.subr.mxu0 0.0
        %1331 = vmatpush1.msra.mxu0 %v1311
        %1332 = vmatprep.subr.mxu0 0.0
        %1333 = vmatpush1.msra.mxu0 %v1310
        %1334 = vmatprep.subr.mxu0 0.0
        %1335 = vmatpush1.msra.mxu0 %v1309
        %1336 = vmatprep.subr.mxu0 0.0
        %1337 = vmatpush1.msra.mxu0 %v1308
        %1338 = vmatprep.subr.mxu0 0.0
        %1339 = vmatpush1.msra.mxu0 %v1307
        %1340 = vmatprep.subr.mxu0 0.0
        %1341 = vmatpush1.msra.mxu0 %v1306
        %1342 = vmatprep.subr.mxu0 0.0
        %1343 = vmatpush1.msra.mxu0 %v1305
        %1344 = vmatprep.subr.mxu0 0.0
        %1345 = vmatpush1.msra.mxu0 %v1304
        %1346 = vmatprep.subr.mxu0 0.0
        %1347 = vmatpush1.msra.mxu0 %v1303
        %1348 = vmatprep.subr.mxu0 0.0
        %1349 = vmatpush1.msra.mxu0 %v1302
        %1350 = vmatprep.subr.mxu0 0.0
        %1351 = vmatpush2.msra.mxu0 0.0
        %1352 = vmatprep.subr.mxu0 0.0
        %1353 = vmatpush2.msra.mxu0 0.0
        %1354 = vmatprep.subr.mxu0 0.0
        %1355 = vmatpush2.msra.mxu0 0.0
        %1356 = vmatprep.subr.mxu0 0.0
        %1357 = vmatpush2.msra.mxu0 0.0
        %1358 = vmatprep.subr.mxu0 0.0
        %1359 = vmatpush2.msra.mxu0 0.0
        %1360 = vmatprep.subr.mxu0 0.0
        %1361 = vmatpush2.msra.mxu0 0.0
        %1362 = vmatprep.subr.mxu0 0.0
        %1363 = vmatpush2.msra.mxu0 0.0
        %1364 = vmatprep.subr.mxu0 0.0
        %1365 = vmatpush2.msra.mxu0 0.0
        %1366 = vmatprep.subr.mxu0 0.0
        %1367 = vmatpush2.msra.mxu0 0.0
        %1368 = vmatprep.subr.mxu0 0.0
        %1369 = vmatpush2.msra.mxu0 0.0
        %1370 = vmatprep.subr.mxu0 0.0
        %1371 = vmatpush2.msra.mxu0 0.0
        %1372 = vmatprep.subr.mxu0 0.0
        %1373 = vmatpush2.msra.mxu0 0.0
        %1374 = vmatprep.subr.mxu0 0.0
        %1375 = vmatpush2.msra.mxu0 0.0
        %1376 = vmatprep.subr.mxu0 0.0
        %1377 = vmatpush2.msra.mxu0 0.0
        %1378 = vmatprep.subr.mxu0 0.0
        %1379 = vmatpush2.msra.mxu0 0.0
        %1380 = vmatprep.subr.mxu0 0.0
        %1381 = vmatpush2.msra.mxu0 0.0
        %1382 = vmatprep.mubr.f32.mxu0 0.0
        %1383 = vmatmul.mubr.f32.gmra.mxu0 %v1294
        %v1384 = vpop.f32.mrf.mxu0
        %v1385 = vadd.f32 0.0, %v1384
        %v1386 = vpop.f32.mrf.mxu0
        %1387 = vmatprep.mubr.f32.mxu0 0.0
        %1388 = vmatmul.mubr.f32.gmra.mxu0 %v1295
        %v1389 = vpop.f32.mrf.mxu0
        %v1390 = vadd.f32 0.0, %v1389
        %v1391 = vpop.f32.mrf.mxu0
        %1392 = vmatprep.mubr.f32.mxu0 0.0
        %1393 = vmatmul.mubr.f32.gmra.mxu0 %v1296
        %v1394 = vpop.f32.mrf.mxu0
        %v1395 = vadd.f32 0.0, %v1394
        %v1396 = vpop.f32.mrf.mxu0
        %1397 = vmatprep.mubr.f32.mxu0 0.0
        %1398 = vmatmul.mubr.f32.gmra.mxu0 %v1297
        %v1399 = vpop.f32.mrf.mxu0
        %v1400 = vadd.f32 0.0, %v1399
        %v1401 = vpop.f32.mrf.mxu0
        %1402 = vmatprep.mubr.f32.mxu0 0.0
        %1403 = vmatmul.mubr.f32.gmra.mxu0 %v1298
        %v1404 = vpop.f32.mrf.mxu0
        %v1405 = vadd.f32 0.0, %v1404
        %v1406 = vpop.f32.mrf.mxu0
        %1407 = vmatprep.mubr.f32.mxu0 0.0
        %1408 = vmatmul.mubr.f32.gmra.mxu0 %v1299
        %v1409 = vpop.f32.mrf.mxu0
        %v1410 = vadd.f32 0.0, %v1409
        %v1411 = vpop.f32.mrf.mxu0
        %1412 = vmatprep.mubr.f32.mxu0 0.0
        %1413 = vmatmul.mubr.f32.gmra.mxu0 %v1300
        %v1414 = vpop.f32.mrf.mxu0
        %v1415 = vadd.f32 0.0, %v1414
        %v1416 = vpop.f32.mrf.mxu0
        %1417 = vdwg.mxu0
        %v1418 = vadd.f32 %v1287, %v1385
        %v1419 = vadd.f32 %v1288, %v1390
        %v1420 = vadd.f32 %v1289, %v1395
        %v1421 = vadd.f32 %v1290, %v1400
        %v1422 = vadd.f32 %v1291, %v1405
        %v1423 = vadd.f32 %v1292, %v1410
        %v1424 = vadd.f32 %v1293, %v1415
        %v1425 = vadd.f32 %v1418, %v1419
        %v1426 = vadd.f32 %v1425, %v1420
        %v1427 = vadd.f32 %v1426, %v1421
        %v1428 = vadd.f32 %v1427, %v1422
        %v1429 = vadd.f32 %v1428, %v1423
        %vm1430 = vcmask 1040384
        %v1431 = vsel %vm1430, %v1424, 0.0
        %v1432 = vadd.f32 %v1429, %v1431
        %v1433 = vrot.slane %v1432, 4
        %v1434 = vadd.f32 %v1432, %v1433
        %v1435 = vrot.slane %v1434, 2
        %v1436 = vadd.f32 %v1434, %v1435
        %v1437 = vrot.slane %v1436, 1
        %v1438 = vadd.f32 %v1436, %v1437
        %v1439 = vmul.f32 %v1438, 0.020408163
        %v1440 = vmul.f32 %v1418, %v1418
        %v1441 = vmul.f32 %v1419, %v1419
        %v1442 = vmul.f32 %v1420, %v1420
        %v1443 = vmul.f32 %v1421, %v1421
        %v1444 = vmul.f32 %v1422, %v1422
        %v1445 = vmul.f32 %v1423, %v1423
        %v1446 = vmul.f32 %v1424, %v1424
        %v1447 = vadd.f32 %v1440, %v1441
        %v1448 = vadd.f32 %v1447, %v1442
        %v1449 = vadd.f32 %v1448, %v1443
        %v1450 = vadd.f32 %v1449, %v1444
        %v1451 = vadd.f32 %v1450, %v1445
        %v1452 = vsel %vm1430, %v1446, 0.0
        %v1453 = vadd.f32 %v1451, %v1452
        %v1454 = vrot.slane %v1453, 4
        %v1455 = vadd.f32 %v1453, %v1454
        %v1456 = vrot.slane %v1455, 2
        %v1457 = vadd.f32 %v1455, %v1456
        %v1458 = vrot.slane %v1457, 1
        %v1459 = vadd.f32 %v1457, %v1458
        %v1460 = vmul.f32 %v1459, 0.020408163
        %v1461 = vmul.f32 %v1439, %v1439
        %v1462 = vsub.f32 %v1460, %v1461
        %v1463 = vsub.f32 %v1418, %v1439
        %v1464 = vsub.f32 %v1419, %v1439
        %v1465 = vsub.f32 %v1420, %v1439
        %v1466 = vsub.f32 %v1421, %v1439
        %v1467 = vsub.f32 %v1422, %v1439
        %v1468 = vsub.f32 %v1423, %v1439
        %v1469 = vsub.f32 %v1424, %v1439
        %v1470 = vadd.f32 %v1462, 1e-05
        %v1471 = vrsqrt.pop %v1470
        %v1472 = vmul.f32 %v1463, %v1471
        %v1473 = vmul.f32 %v1464, %v1471
        %v1474 = vmul.f32 %v1465, %v1471
        %v1475 = vmul.f32 %v1466, %v1471
        %v1476 = vmul.f32 %v1467, %v1471
        %v1477 = vmul.f32 %v1468, %v1471
        %v1478 = vmul.f32 %v1469, %v1471
        %v1479 = vld [vmem:[%s253] sm:$0x1]
        %v1481 = vlaneseq
        %v1482 = vshrl.u32 %v1481, 7
        %v1483 = vsub.s32 0, %v1482
        %v1484 = vrot.slane %v1479, %v1483
        %v1486 = vmul.f32 %v1472, %v1484
        %v1487 = vmul.f32 %v1473, %v1484
        %v1488 = vmul.f32 %v1474, %v1484
        %v1489 = vmul.f32 %v1475, %v1484
        %v1490 = vmul.f32 %v1476, %v1484
        %v1491 = vmul.f32 %v1477, %v1484
        %v1492 = vmul.f32 %v1478, %v1484
        %v1493 = vld [vmem:[%s258] sm:$0x1]
        %v1495 = vlaneseq
        %v1496 = vshrl.u32 %v1495, 7
        %v1497 = vsub.s32 0, %v1496
        %v1498 = vrot.slane %v1493, %v1497
        %v1500 = vadd.f32 %v1486, %v1498
        %v1501 = vadd.f32 %v1487, %v1498
        %v1502 = vadd.f32 %v1488, %v1498
        %v1503 = vadd.f32 %v1489, %v1498
        %v1504 = vadd.f32 %v1490, %v1498
        %v1505 = vadd.f32 %v1491, %v1498
        %v1506 = vadd.f32 %v1492, %v1498
        %v1507 = vmax.f32 %v1500, 0.0
        %v1508 = vmax.f32 %v1501, 0.0
        %v1509 = vmax.f32 %v1502, 0.0
        %v1510 = vmax.f32 %v1503, 0.0
        %v1511 = vmax.f32 %v1504, 0.0
        %v1512 = vmax.f32 %v1505, 0.0
        %v1513 = vmax.f32 %v1506, 0.0
        %1514 = vst [vmem:[%s235] sm:$0xff] %v1507
        %1515 = vst [vmem:[%s235 + $0x10] sm:$0xff] %v1508
        %1516 = vst [vmem:[%s235 + $0x20] sm:$0xff] %v1509
        %1517 = vst [vmem:[%s235 + $0x30] sm:$0xff] %v1510
        %1518 = vst [vmem:[%s235 + $0x40] sm:$0xff] %v1511
        %1519 = vst [vmem:[%s235 + $0x50] sm:$0xff] %v1512
        %1520 = vst [vmem:[%s235 + $0x60] sm:$0x1] %v1513
        %s1521 = scalar_lea.vmem %s241, 504
        %v1522 = vld [vmem:[%s1521] sm:$0xff]
        %v1523 = vld [vmem:[%s1521 + $0x48] sm:$0xff]
        %v1524 = vld [vmem:[%s1521 + $0x90] sm:$0xff]
        %v1525 = vld [vmem:[%s1521 + $0xd8] sm:$0xff]
        %v1526 = vld [vmem:[%s1521 + $0x120] sm:$0xff]
        %v1527 = vld [vmem:[%s1521 + $0x168] sm:$0xff]
        %v1528 = vld [vmem:[%s1521 + $0x1b0] sm:$0x1]
        %s1529 = scalar_lea.vmem %s248, 1152
        %v1530 = vld [vmem:[%s1529] sm:$0xff]
        %v1531 = vld [vmem:[%s1529 + $0x8] sm:$0xff]
        %v1532 = vld [vmem:[%s1529 + $0x10] sm:$0xff]
        %v1533 = vld [vmem:[%s1529 + $0x18] sm:$0xff]
        %v1534 = vld [vmem:[%s1529 + $0x20] sm:$0xff]
        %v1535 = vld [vmem:[%s1529 + $0x28] sm:$0xff]
        %v1536 = vld [vmem:[%s1529 + $0x30] sm:$0xff]
        %v1537 = vld [vmem:[%s1529 + $0x38] sm:$0xff]
        %v1538 = vld [vmem:[%s1529 + $0x40] sm:$0xff]
        %v1539 = vld [vmem:[%s1529 + $0x48] sm:$0xff]
        %v1540 = vld [vmem:[%s1529 + $0x50] sm:$0xff]
        %v1541 = vld [vmem:[%s1529 + $0x58] sm:$0xff]
        %v1542 = vld [vmem:[%s1529 + $0x60] sm:$0xff]
        %v1543 = vld [vmem:[%s1529 + $0x68] sm:$0xff]
        %v1544 = vld [vmem:[%s1529 + $0x70] sm:$0xff]
        %v1545 = vld [vmem:[%s1529 + $0x78] sm:$0xff]
        %v1546 = vld [vmem:[%s1521 + $0x8] sm:$0xff]
        %v1547 = vld [vmem:[%s1521 + $0x50] sm:$0xff]
        %v1548 = vld [vmem:[%s1521 + $0x98] sm:$0xff]
        %v1549 = vld [vmem:[%s1521 + $0xe0] sm:$0xff]
        %v1550 = vld [vmem:[%s1521 + $0x128] sm:$0xff]
        %v1551 = vld [vmem:[%s1521 + $0x170] sm:$0xff]
        %v1552 = vld [vmem:[%s1521 + $0x1b8] sm:$0x1]
        %s1553 = scalar_lea.vmem %s248, 1280
        %v1554 = vld [vmem:[%s1553] sm:$0xff]
        %v1555 = vld [vmem:[%s1553 + $0x8] sm:$0xff]
        %v1556 = vld [vmem:[%s1553 + $0x10] sm:$0xff]
        %v1557 = vld [vmem:[%s1553 + $0x18] sm:$0xff]
        %v1558 = vld [vmem:[%s1553 + $0x20] sm:$0xff]
        %v1559 = vld [vmem:[%s1553 + $0x28] sm:$0xff]
        %v1560 = vld [vmem:[%s1553 + $0x30] sm:$0xff]
        %v1561 = vld [vmem:[%s1553 + $0x38] sm:$0xff]
        %v1562 = vld [vmem:[%s1553 + $0x40] sm:$0xff]
        %v1563 = vld [vmem:[%s1553 + $0x48] sm:$0xff]
        %v1564 = vld [vmem:[%s1553 + $0x50] sm:$0xff]
        %v1565 = vld [vmem:[%s1553 + $0x58] sm:$0xff]
        %v1566 = vld [vmem:[%s1553 + $0x60] sm:$0xff]
        %v1567 = vld [vmem:[%s1553 + $0x68] sm:$0xff]
        %v1568 = vld [vmem:[%s1553 + $0x70] sm:$0xff]
        %v1569 = vld [vmem:[%s1553 + $0x78] sm:$0xff]
        %1570 = vmatprep.subr.mxu0 0.0
        %1571 = vmatpush1.msra.mxu0 %v1569
        %1572 = vmatprep.subr.mxu0 0.0
        %1573 = vmatpush1.msra.mxu0 %v1568
        %1574 = vmatprep.subr.mxu0 0.0
        %1575 = vmatpush1.msra.mxu0 %v1567
        %1576 = vmatprep.subr.mxu0 0.0
        %1577 = vmatpush1.msra.mxu0 %v1566
        %1578 = vmatprep.subr.mxu0 0.0
        %1579 = vmatpush1.msra.mxu0 %v1565
        %1580 = vmatprep.subr.mxu0 0.0
        %1581 = vmatpush1.msra.mxu0 %v1564
        %1582 = vmatprep.subr.mxu0 0.0
        %1583 = vmatpush1.msra.mxu0 %v1563
        %1584 = vmatprep.subr.mxu0 0.0
        %1585 = vmatpush1.msra.mxu0 %v1562
        %1586 = vmatprep.subr.mxu0 0.0
        %1587 = vmatpush1.msra.mxu0 %v1561
        %1588 = vmatprep.subr.mxu0 0.0
        %1589 = vmatpush1.msra.mxu0 %v1560
        %1590 = vmatprep.subr.mxu0 0.0
        %1591 = vmatpush1.msra.mxu0 %v1559
        %1592 = vmatprep.subr.mxu0 0.0
        %1593 = vmatpush1.msra.mxu0 %v1558
        %1594 = vmatprep.subr.mxu0 0.0
        %1595 = vmatpush1.msra.mxu0 %v1557
        %1596 = vmatprep.subr.mxu0 0.0
        %1597 = vmatpush1.msra.mxu0 %v1556
        %1598 = vmatprep.subr.mxu0 0.0
        %1599 = vmatpush1.msra.mxu0 %v1555
        %1600 = vmatprep.subr.mxu0 0.0
        %1601 = vmatpush1.msra.mxu0 %v1554
        %1602 = vmatprep.subr.mxu0 0.0
        %1603 = vmatpush2.msra.mxu0 0.0
        %1604 = vmatprep.subr.mxu0 0.0
        %1605 = vmatpush2.msra.mxu0 0.0
        %1606 = vmatprep.subr.mxu0 0.0
        %1607 = vmatpush2.msra.mxu0 0.0
        %1608 = vmatprep.subr.mxu0 0.0
        %1609 = vmatpush2.msra.mxu0 0.0
        %1610 = vmatprep.subr.mxu0 0.0
        %1611 = vmatpush2.msra.mxu0 0.0
        %1612 = vmatprep.subr.mxu0 0.0
        %1613 = vmatpush2.msra.mxu0 0.0
        %1614 = vmatprep.subr.mxu0 0.0
        %1615 = vmatpush2.msra.mxu0 0.0
        %1616 = vmatprep.subr.mxu0 0.0
        %1617 = vmatpush2.msra.mxu0 0.0
        %1618 = vmatprep.subr.mxu0 0.0
        %1619 = vmatpush2.msra.mxu0 0.0
        %1620 = vmatprep.subr.mxu0 0.0
        %1621 = vmatpush2.msra.mxu0 0.0
        %1622 = vmatprep.subr.mxu0 0.0
        %1623 = vmatpush2.msra.mxu0 0.0
        %1624 = vmatprep.subr.mxu0 0.0
        %1625 = vmatpush2.msra.mxu0 0.0
        %1626 = vmatprep.subr.mxu0 0.0
        %1627 = vmatpush2.msra.mxu0 0.0
        %1628 = vmatprep.subr.mxu0 0.0
        %1629 = vmatpush2.msra.mxu0 0.0
        %1630 = vmatprep.subr.mxu0 0.0
        %1631 = vmatpush2.msra.mxu0 0.0
        %1632 = vmatprep.subr.mxu0 0.0
        %1633 = vmatpush2.msra.mxu0 0.0
        %1634 = vmatprep.mubr.f32.mxu0 0.0
        %1635 = vmatmul.mubr.f32.gmra.mxu0 %v1546
        %v1636 = vpop.f32.mrf.mxu0
        %v1637 = vadd.f32 0.0, %v1636
        %v1638 = vpop.f32.mrf.mxu0
        %1639 = vmatprep.mubr.f32.mxu0 0.0
        %1640 = vmatmul.mubr.f32.gmra.mxu0 %v1547
        %v1641 = vpop.f32.mrf.mxu0
        %v1642 = vadd.f32 0.0, %v1641
        %v1643 = vpop.f32.mrf.mxu0
        %1644 = vmatprep.mubr.f32.mxu0 0.0
        %1645 = vmatmul.mubr.f32.gmra.mxu0 %v1548
        %v1646 = vpop.f32.mrf.mxu0
        %v1647 = vadd.f32 0.0, %v1646
        %v1648 = vpop.f32.mrf.mxu0
        %1649 = vmatprep.mubr.f32.mxu0 0.0
        %1650 = vmatmul.mubr.f32.gmra.mxu0 %v1549
        %v1651 = vpop.f32.mrf.mxu0
        %v1652 = vadd.f32 0.0, %v1651
        %v1653 = vpop.f32.mrf.mxu0
        %1654 = vmatprep.mubr.f32.mxu0 0.0
        %1655 = vmatmul.mubr.f32.gmra.mxu0 %v1550
        %v1656 = vpop.f32.mrf.mxu0
        %v1657 = vadd.f32 0.0, %v1656
        %v1658 = vpop.f32.mrf.mxu0
        %1659 = vmatprep.mubr.f32.mxu0 0.0
        %1660 = vmatmul.mubr.f32.gmra.mxu0 %v1551
        %v1661 = vpop.f32.mrf.mxu0
        %v1662 = vadd.f32 0.0, %v1661
        %v1663 = vpop.f32.mrf.mxu0
        %1664 = vmatprep.mubr.f32.mxu0 0.0
        %1665 = vmatmul.mubr.f32.gmra.mxu0 %v1552
        %v1666 = vpop.f32.mrf.mxu0
        %v1667 = vadd.f32 0.0, %v1666
        %v1668 = vpop.f32.mrf.mxu0
        %1669 = vdwg.mxu0
        %1670 = vmatprep.subr.mxu0 0.0
        %1671 = vmatpush1.msra.mxu0 %v1545
        %1672 = vmatprep.subr.mxu0 0.0
        %1673 = vmatpush1.msra.mxu0 %v1544
        %1674 = vmatprep.subr.mxu0 0.0
        %1675 = vmatpush1.msra.mxu0 %v1543
        %1676 = vmatprep.subr.mxu0 0.0
        %1677 = vmatpush1.msra.mxu0 %v1542
        %1678 = vmatprep.subr.mxu0 0.0
        %1679 = vmatpush1.msra.mxu0 %v1541
        %1680 = vmatprep.subr.mxu0 0.0
        %1681 = vmatpush1.msra.mxu0 %v1540
        %1682 = vmatprep.subr.mxu0 0.0
        %1683 = vmatpush1.msra.mxu0 %v1539
        %1684 = vmatprep.subr.mxu0 0.0
        %1685 = vmatpush1.msra.mxu0 %v1538
        %1686 = vmatprep.subr.mxu0 0.0
        %1687 = vmatpush1.msra.mxu0 %v1537
        %1688 = vmatprep.subr.mxu0 0.0
        %1689 = vmatpush1.msra.mxu0 %v1536
        %1690 = vmatprep.subr.mxu0 0.0
        %1691 = vmatpush1.msra.mxu0 %v1535
        %1692 = vmatprep.subr.mxu0 0.0
        %1693 = vmatpush1.msra.mxu0 %v1534
        %1694 = vmatprep.subr.mxu0 0.0
        %1695 = vmatpush1.msra.mxu0 %v1533
        %1696 = vmatprep.subr.mxu0 0.0
        %1697 = vmatpush1.msra.mxu0 %v1532
        %1698 = vmatprep.subr.mxu0 0.0
        %1699 = vmatpush1.msra.mxu0 %v1531
        %1700 = vmatprep.subr.mxu0 0.0
        %1701 = vmatpush1.msra.mxu0 %v1530
        %1702 = vmatprep.subr.mxu0 0.0
        %1703 = vmatpush2.msra.mxu0 0.0
        %1704 = vmatprep.subr.mxu0 0.0
        %1705 = vmatpush2.msra.mxu0 0.0
        %1706 = vmatprep.subr.mxu0 0.0
        %1707 = vmatpush2.msra.mxu0 0.0
        %1708 = vmatprep.subr.mxu0 0.0
        %1709 = vmatpush2.msra.mxu0 0.0
        %1710 = vmatprep.subr.mxu0 0.0
        %1711 = vmatpush2.msra.mxu0 0.0
        %1712 = vmatprep.subr.mxu0 0.0
        %1713 = vmatpush2.msra.mxu0 0.0
        %1714 = vmatprep.subr.mxu0 0.0
        %1715 = vmatpush2.msra.mxu0 0.0
        %1716 = vmatprep.subr.mxu0 0.0
        %1717 = vmatpush2.msra.mxu0 0.0
        %1718 = vmatprep.subr.mxu0 0.0
        %1719 = vmatpush2.msra.mxu0 0.0
        %1720 = vmatprep.subr.mxu0 0.0
        %1721 = vmatpush2.msra.mxu0 0.0
        %1722 = vmatprep.subr.mxu0 0.0
        %1723 = vmatpush2.msra.mxu0 0.0
        %1724 = vmatprep.subr.mxu0 0.0
        %1725 = vmatpush2.msra.mxu0 0.0
        %1726 = vmatprep.subr.mxu0 0.0
        %1727 = vmatpush2.msra.mxu0 0.0
        %1728 = vmatprep.subr.mxu0 0.0
        %1729 = vmatpush2.msra.mxu0 0.0
        %1730 = vmatprep.subr.mxu0 0.0
        %1731 = vmatpush2.msra.mxu0 0.0
        %1732 = vmatprep.subr.mxu0 0.0
        %1733 = vmatpush2.msra.mxu0 0.0
        %1734 = vmatprep.mubr.f32.mxu0 0.0
        %1735 = vmatmul.mubr.f32.gmra.mxu0 %v1522
        %v1736 = vpop.f32.mrf.mxu0
        %v1737 = vadd.f32 %v1637, %v1736
        %v1738 = vpop.f32.mrf.mxu0
        %1739 = vmatprep.mubr.f32.mxu0 0.0
        %1740 = vmatmul.mubr.f32.gmra.mxu0 %v1523
        %v1741 = vpop.f32.mrf.mxu0
        %v1742 = vadd.f32 %v1642, %v1741
        %v1743 = vpop.f32.mrf.mxu0
        %1744 = vmatprep.mubr.f32.mxu0 0.0
        %1745 = vmatmul.mubr.f32.gmra.mxu0 %v1524
        %v1746 = vpop.f32.mrf.mxu0
        %v1747 = vadd.f32 %v1647, %v1746
        %v1748 = vpop.f32.mrf.mxu0
        %1749 = vmatprep.mubr.f32.mxu0 0.0
        %1750 = vmatmul.mubr.f32.gmra.mxu0 %v1525
        %v1751 = vpop.f32.mrf.mxu0
        %v1752 = vadd.f32 %v1652, %v1751
        %v1753 = vpop.f32.mrf.mxu0
        %1754 = vmatprep.mubr.f32.mxu0 0.0
        %1755 = vmatmul.mubr.f32.gmra.mxu0 %v1526
        %v1756 = vpop.f32.mrf.mxu0
        %v1757 = vadd.f32 %v1657, %v1756
        %v1758 = vpop.f32.mrf.mxu0
        %1759 = vmatprep.mubr.f32.mxu0 0.0
        %1760 = vmatmul.mubr.f32.gmra.mxu0 %v1527
        %v1761 = vpop.f32.mrf.mxu0
        %v1762 = vadd.f32 %v1662, %v1761
        %v1763 = vpop.f32.mrf.mxu0
        %1764 = vmatprep.mubr.f32.mxu0 0.0
        %1765 = vmatmul.mubr.f32.gmra.mxu0 %v1528
        %v1766 = vpop.f32.mrf.mxu0
        %v1767 = vadd.f32 %v1667, %v1766
        %v1768 = vpop.f32.mrf.mxu0
        %1769 = vdwg.mxu0
        %v1770 = vld [vmem:[%s1521 + $0x10] sm:$0xff]
        %v1771 = vld [vmem:[%s1521 + $0x58] sm:$0xff]
        %v1772 = vld [vmem:[%s1521 + $0xa0] sm:$0xff]
        %v1773 = vld [vmem:[%s1521 + $0xe8] sm:$0xff]
        %v1774 = vld [vmem:[%s1521 + $0x130] sm:$0xff]
        %v1775 = vld [vmem:[%s1521 + $0x178] sm:$0xff]
        %v1776 = vld [vmem:[%s1521 + $0x1c0] sm:$0x1]
        %s1777 = scalar_lea.vmem %s248, 1408
        %v1778 = vld [vmem:[%s1777] sm:$0xff]
        %v1779 = vld [vmem:[%s1777 + $0x8] sm:$0xff]
        %v1780 = vld [vmem:[%s1777 + $0x10] sm:$0xff]
        %v1781 = vld [vmem:[%s1777 + $0x18] sm:$0xff]
        %v1782 = vld [vmem:[%s1777 + $0x20] sm:$0xff]
        %v1783 = vld [vmem:[%s1777 + $0x28] sm:$0xff]
        %v1784 = vld [vmem:[%s1777 + $0x30] sm:$0xff]
        %v1785 = vld [vmem:[%s1777 + $0x38] sm:$0xff]
        %v1786 = vld [vmem:[%s1777 + $0x40] sm:$0xff]
        %v1787 = vld [vmem:[%s1777 + $0x48] sm:$0xff]
        %v1788 = vld [vmem:[%s1777 + $0x50] sm:$0xff]
        %v1789 = vld [vmem:[%s1777 + $0x58] sm:$0xff]
        %v1790 = vld [vmem:[%s1777 + $0x60] sm:$0xff]
        %v1791 = vld [vmem:[%s1777 + $0x68] sm:$0xff]
        %v1792 = vld [vmem:[%s1777 + $0x70] sm:$0xff]
        %v1793 = vld [vmem:[%s1777 + $0x78] sm:$0xff]
        %1794 = vmatprep.subr.mxu0 0.0
        %1795 = vmatpush1.msra.mxu0 %v1793
        %1796 = vmatprep.subr.mxu0 0.0
        %1797 = vmatpush1.msra.mxu0 %v1792
        %1798 = vmatprep.subr.mxu0 0.0
        %1799 = vmatpush1.msra.mxu0 %v1791
        %1800 = vmatprep.subr.mxu0 0.0
        %1801 = vmatpush1.msra.mxu0 %v1790
        %1802 = vmatprep.subr.mxu0 0.0
        %1803 = vmatpush1.msra.mxu0 %v1789
        %1804 = vmatprep.subr.mxu0 0.0
        %1805 = vmatpush1.msra.mxu0 %v1788
        %1806 = vmatprep.subr.mxu0 0.0
        %1807 = vmatpush1.msra.mxu0 %v1787
        %1808 = vmatprep.subr.mxu0 0.0
        %1809 = vmatpush1.msra.mxu0 %v1786
        %1810 = vmatprep.subr.mxu0 0.0
        %1811 = vmatpush1.msra.mxu0 %v1785
        %1812 = vmatprep.subr.mxu0 0.0
        %1813 = vmatpush1.msra.mxu0 %v1784
        %1814 = vmatprep.subr.mxu0 0.0
        %1815 = vmatpush1.msra.mxu0 %v1783
        %1816 = vmatprep.subr.mxu0 0.0
        %1817 = vmatpush1.msra.mxu0 %v1782
        %1818 = vmatprep.subr.mxu0 0.0
        %1819 = vmatpush1.msra.mxu0 %v1781
        %1820 = vmatprep.subr.mxu0 0.0
        %1821 = vmatpush1.msra.mxu0 %v1780
        %1822 = vmatprep.subr.mxu0 0.0
        %1823 = vmatpush1.msra.mxu0 %v1779
        %1824 = vmatprep.subr.mxu0 0.0
        %1825 = vmatpush1.msra.mxu0 %v1778
        %1826 = vmatprep.subr.mxu0 0.0
        %1827 = vmatpush2.msra.mxu0 0.0
        %1828 = vmatprep.subr.mxu0 0.0
        %1829 = vmatpush2.msra.mxu0 0.0
        %1830 = vmatprep.subr.mxu0 0.0
        %1831 = vmatpush2.msra.mxu0 0.0
        %1832 = vmatprep.subr.mxu0 0.0
        %1833 = vmatpush2.msra.mxu0 0.0
        %1834 = vmatprep.subr.mxu0 0.0
        %1835 = vmatpush2.msra.mxu0 0.0
        %1836 = vmatprep.subr.mxu0 0.0
        %1837 = vmatpush2.msra.mxu0 0.0
        %1838 = vmatprep.subr.mxu0 0.0
        %1839 = vmatpush2.msra.mxu0 0.0
        %1840 = vmatprep.subr.mxu0 0.0
        %1841 = vmatpush2.msra.mxu0 0.0
        %1842 = vmatprep.subr.mxu0 0.0
        %1843 = vmatpush2.msra.mxu0 0.0
        %1844 = vmatprep.subr.mxu0 0.0
        %1845 = vmatpush2.msra.mxu0 0.0
        %1846 = vmatprep.subr.mxu0 0.0
        %1847 = vmatpush2.msra.mxu0 0.0
        %1848 = vmatprep.subr.mxu0 0.0
        %1849 = vmatpush2.msra.mxu0 0.0
        %1850 = vmatprep.subr.mxu0 0.0
        %1851 = vmatpush2.msra.mxu0 0.0
        %1852 = vmatprep.subr.mxu0 0.0
        %1853 = vmatpush2.msra.mxu0 0.0
        %1854 = vmatprep.subr.mxu0 0.0
        %1855 = vmatpush2.msra.mxu0 0.0
        %1856 = vmatprep.subr.mxu0 0.0
        %1857 = vmatpush2.msra.mxu0 0.0
        %1858 = vmatprep.mubr.f32.mxu0 0.0
        %1859 = vmatmul.mubr.f32.gmra.mxu0 %v1770
        %v1860 = vpop.f32.mrf.mxu0
        %v1861 = vadd.f32 0.0, %v1860
        %v1862 = vpop.f32.mrf.mxu0
        %1863 = vmatprep.mubr.f32.mxu0 0.0
        %1864 = vmatmul.mubr.f32.gmra.mxu0 %v1771
        %v1865 = vpop.f32.mrf.mxu0
        %v1866 = vadd.f32 0.0, %v1865
        %v1867 = vpop.f32.mrf.mxu0
        %1868 = vmatprep.mubr.f32.mxu0 0.0
        %1869 = vmatmul.mubr.f32.gmra.mxu0 %v1772
        %v1870 = vpop.f32.mrf.mxu0
        %v1871 = vadd.f32 0.0, %v1870
        %v1872 = vpop.f32.mrf.mxu0
        %1873 = vmatprep.mubr.f32.mxu0 0.0
        %1874 = vmatmul.mubr.f32.gmra.mxu0 %v1773
        %v1875 = vpop.f32.mrf.mxu0
        %v1876 = vadd.f32 0.0, %v1875
        %v1877 = vpop.f32.mrf.mxu0
        %1878 = vmatprep.mubr.f32.mxu0 0.0
        %1879 = vmatmul.mubr.f32.gmra.mxu0 %v1774
        %v1880 = vpop.f32.mrf.mxu0
        %v1881 = vadd.f32 0.0, %v1880
        %v1882 = vpop.f32.mrf.mxu0
        %1883 = vmatprep.mubr.f32.mxu0 0.0
        %1884 = vmatmul.mubr.f32.gmra.mxu0 %v1775
        %v1885 = vpop.f32.mrf.mxu0
        %v1886 = vadd.f32 0.0, %v1885
        %v1887 = vpop.f32.mrf.mxu0
        %1888 = vmatprep.mubr.f32.mxu0 0.0
        %1889 = vmatmul.mubr.f32.gmra.mxu0 %v1776
        %v1890 = vpop.f32.mrf.mxu0
        %v1891 = vadd.f32 0.0, %v1890
        %v1892 = vpop.f32.mrf.mxu0
        %1893 = vdwg.mxu0
        %v1894 = vadd.f32 %v1737, %v1861
        %v1895 = vadd.f32 %v1742, %v1866
        %v1896 = vadd.f32 %v1747, %v1871
        %v1897 = vadd.f32 %v1752, %v1876
        %v1898 = vadd.f32 %v1757, %v1881
        %v1899 = vadd.f32 %v1762, %v1886
        %v1900 = vadd.f32 %v1767, %v1891
        %v1901 = vld [vmem:[%s1521 + $0x18] sm:$0xff]
        %v1902 = vld [vmem:[%s1521 + $0x60] sm:$0xff]
        %v1903 = vld [vmem:[%s1521 + $0xa8] sm:$0xff]
        %v1904 = vld [vmem:[%s1521 + $0xf0] sm:$0xff]
        %v1905 = vld [vmem:[%s1521 + $0x138] sm:$0xff]
        %v1906 = vld [vmem:[%s1521 + $0x180] sm:$0xff]
        %v1907 = vld [vmem:[%s1521 + $0x1c8] sm:$0x1]
        %s1908 = scalar_lea.vmem %s248, 1536
        %v1909 = vld [vmem:[%s1908] sm:$0xff]
        %v1910 = vld [vmem:[%s1908 + $0x8] sm:$0xff]
        %v1911 = vld [vmem:[%s1908 + $0x10] sm:$0xff]
        %v1912 = vld [vmem:[%s1908 + $0x18] sm:$0xff]
        %v1913 = vld [vmem:[%s1908 + $0x20] sm:$0xff]
        %v1914 = vld [vmem:[%s1908 + $0x28] sm:$0xff]
        %v1915 = vld [vmem:[%s1908 + $0x30] sm:$0xff]
        %v1916 = vld [vmem:[%s1908 + $0x38] sm:$0xff]
        %v1917 = vld [vmem:[%s1908 + $0x40] sm:$0xff]
        %v1918 = vld [vmem:[%s1908 + $0x48] sm:$0xff]
        %v1919 = vld [vmem:[%s1908 + $0x50] sm:$0xff]
        %v1920 = vld [vmem:[%s1908 + $0x58] sm:$0xff]
        %v1921 = vld [vmem:[%s1908 + $0x60] sm:$0xff]
        %v1922 = vld [vmem:[%s1908 + $0x68] sm:$0xff]
        %v1923 = vld [vmem:[%s1908 + $0x70] sm:$0xff]
        %v1924 = vld [vmem:[%s1908 + $0x78] sm:$0xff]
        %1925 = vmatprep.subr.mxu0 0.0
        %1926 = vmatpush1.msra.mxu0 %v1924
        %1927 = vmatprep.subr.mxu0 0.0
        %1928 = vmatpush1.msra.mxu0 %v1923
        %1929 = vmatprep.subr.mxu0 0.0
        %1930 = vmatpush1.msra.mxu0 %v1922
        %1931 = vmatprep.subr.mxu0 0.0
        %1932 = vmatpush1.msra.mxu0 %v1921
        %1933 = vmatprep.subr.mxu0 0.0
        %1934 = vmatpush1.msra.mxu0 %v1920
        %1935 = vmatprep.subr.mxu0 0.0
        %1936 = vmatpush1.msra.mxu0 %v1919
        %1937 = vmatprep.subr.mxu0 0.0
        %1938 = vmatpush1.msra.mxu0 %v1918
        %1939 = vmatprep.subr.mxu0 0.0
        %1940 = vmatpush1.msra.mxu0 %v1917
        %1941 = vmatprep.subr.mxu0 0.0
        %1942 = vmatpush1.msra.mxu0 %v1916
        %1943 = vmatprep.subr.mxu0 0.0
        %1944 = vmatpush1.msra.mxu0 %v1915
        %1945 = vmatprep.subr.mxu0 0.0
        %1946 = vmatpush1.msra.mxu0 %v1914
        %1947 = vmatprep.subr.mxu0 0.0
        %1948 = vmatpush1.msra.mxu0 %v1913
        %1949 = vmatprep.subr.mxu0 0.0
        %1950 = vmatpush1.msra.mxu0 %v1912
        %1951 = vmatprep.subr.mxu0 0.0
        %1952 = vmatpush1.msra.mxu0 %v1911
        %1953 = vmatprep.subr.mxu0 0.0
        %1954 = vmatpush1.msra.mxu0 %v1910
        %1955 = vmatprep.subr.mxu0 0.0
        %1956 = vmatpush1.msra.mxu0 %v1909
        %1957 = vmatprep.subr.mxu0 0.0
        %1958 = vmatpush2.msra.mxu0 0.0
        %1959 = vmatprep.subr.mxu0 0.0
        %1960 = vmatpush2.msra.mxu0 0.0
        %1961 = vmatprep.subr.mxu0 0.0
        %1962 = vmatpush2.msra.mxu0 0.0
        %1963 = vmatprep.subr.mxu0 0.0
        %1964 = vmatpush2.msra.mxu0 0.0
        %1965 = vmatprep.subr.mxu0 0.0
        %1966 = vmatpush2.msra.mxu0 0.0
        %1967 = vmatprep.subr.mxu0 0.0
        %1968 = vmatpush2.msra.mxu0 0.0
        %1969 = vmatprep.subr.mxu0 0.0
        %1970 = vmatpush2.msra.mxu0 0.0
        %1971 = vmatprep.subr.mxu0 0.0
        %1972 = vmatpush2.msra.mxu0 0.0
        %1973 = vmatprep.subr.mxu0 0.0
        %1974 = vmatpush2.msra.mxu0 0.0
        %1975 = vmatprep.subr.mxu0 0.0
        %1976 = vmatpush2.msra.mxu0 0.0
        %1977 = vmatprep.subr.mxu0 0.0
        %1978 = vmatpush2.msra.mxu0 0.0
        %1979 = vmatprep.subr.mxu0 0.0
        %1980 = vmatpush2.msra.mxu0 0.0
        %1981 = vmatprep.subr.mxu0 0.0
        %1982 = vmatpush2.msra.mxu0 0.0
        %1983 = vmatprep.subr.mxu0 0.0
        %1984 = vmatpush2.msra.mxu0 0.0
        %1985 = vmatprep.subr.mxu0 0.0
        %1986 = vmatpush2.msra.mxu0 0.0
        %1987 = vmatprep.subr.mxu0 0.0
        %1988 = vmatpush2.msra.mxu0 0.0
        %1989 = vmatprep.mubr.f32.mxu0 0.0
        %1990 = vmatmul.mubr.f32.gmra.mxu0 %v1901
        %v1991 = vpop.f32.mrf.mxu0
        %v1992 = vadd.f32 0.0, %v1991
        %v1993 = vpop.f32.mrf.mxu0
        %1994 = vmatprep.mubr.f32.mxu0 0.0
        %1995 = vmatmul.mubr.f32.gmra.mxu0 %v1902
        %v1996 = vpop.f32.mrf.mxu0
        %v1997 = vadd.f32 0.0, %v1996
        %v1998 = vpop.f32.mrf.mxu0
        %1999 = vmatprep.mubr.f32.mxu0 0.0
        %2000 = vmatmul.mubr.f32.gmra.mxu0 %v1903
        %v2001 = vpop.f32.mrf.mxu0
        %v2002 = vadd.f32 0.0, %v2001
        %v2003 = vpop.f32.mrf.mxu0
        %2004 = vmatprep.mubr.f32.mxu0 0.0
        %2005 = vmatmul.mubr.f32.gmra.mxu0 %v1904
        %v2006 = vpop.f32.mrf.mxu0
        %v2007 = vadd.f32 0.0, %v2006
        %v2008 = vpop.f32.mrf.mxu0
        %2009 = vmatprep.mubr.f32.mxu0 0.0
        %2010 = vmatmul.mubr.f32.gmra.mxu0 %v1905
        %v2011 = vpop.f32.mrf.mxu0
        %v2012 = vadd.f32 0.0, %v2011
        %v2013 = vpop.f32.mrf.mxu0
        %2014 = vmatprep.mubr.f32.mxu0 0.0
        %2015 = vmatmul.mubr.f32.gmra.mxu0 %v1906
        %v2016 = vpop.f32.mrf.mxu0
        %v2017 = vadd.f32 0.0, %v2016
        %v2018 = vpop.f32.mrf.mxu0
        %2019 = vmatprep.mubr.f32.mxu0 0.0
        %2020 = vmatmul.mubr.f32.gmra.mxu0 %v1907
        %v2021 = vpop.f32.mrf.mxu0
        %v2022 = vadd.f32 0.0, %v2021
        %v2023 = vpop.f32.mrf.mxu0
        %2024 = vdwg.mxu0
        %v2025 = vadd.f32 %v1894, %v1992
        %v2026 = vadd.f32 %v1895, %v1997
        %v2027 = vadd.f32 %v1896, %v2002
        %v2028 = vadd.f32 %v1897, %v2007
        %v2029 = vadd.f32 %v1898, %v2012
        %v2030 = vadd.f32 %v1899, %v2017
        %v2031 = vadd.f32 %v1900, %v2022
        %v2032 = vld [vmem:[%s1521 + $0x20] sm:$0xff]
        %v2033 = vld [vmem:[%s1521 + $0x68] sm:$0xff]
        %v2034 = vld [vmem:[%s1521 + $0xb0] sm:$0xff]
        %v2035 = vld [vmem:[%s1521 + $0xf8] sm:$0xff]
        %v2036 = vld [vmem:[%s1521 + $0x140] sm:$0xff]
        %v2037 = vld [vmem:[%s1521 + $0x188] sm:$0xff]
        %v2038 = vld [vmem:[%s1521 + $0x1d0] sm:$0x1]
        %s2039 = scalar_lea.vmem %s248, 1664
        %v2040 = vld [vmem:[%s2039] sm:$0xff]
        %v2041 = vld [vmem:[%s2039 + $0x8] sm:$0xff]
        %v2042 = vld [vmem:[%s2039 + $0x10] sm:$0xff]
        %v2043 = vld [vmem:[%s2039 + $0x18] sm:$0xff]
        %v2044 = vld [vmem:[%s2039 + $0x20] sm:$0xff]
        %v2045 = vld [vmem:[%s2039 + $0x28] sm:$0xff]
        %v2046 = vld [vmem:[%s2039 + $0x30] sm:$0xff]
        %v2047 = vld [vmem:[%s2039 + $0x38] sm:$0xff]
        %v2048 = vld [vmem:[%s2039 + $0x40] sm:$0xff]
        %v2049 = vld [vmem:[%s2039 + $0x48] sm:$0xff]
        %v2050 = vld [vmem:[%s2039 + $0x50] sm:$0xff]
        %v2051 = vld [vmem:[%s2039 + $0x58] sm:$0xff]
        %v2052 = vld [vmem:[%s2039 + $0x60] sm:$0xff]
        %v2053 = vld [vmem:[%s2039 + $0x68] sm:$0xff]
        %v2054 = vld [vmem:[%s2039 + $0x70] sm:$0xff]
        %v2055 = vld [vmem:[%s2039 + $0x78] sm:$0xff]
        %2056 = vmatprep.subr.mxu0 0.0
        %2057 = vmatpush1.msra.mxu0 %v2055
        %2058 = vmatprep.subr.mxu0 0.0
        %2059 = vmatpush1.msra.mxu0 %v2054
        %2060 = vmatprep.subr.mxu0 0.0
        %2061 = vmatpush1.msra.mxu0 %v2053
        %2062 = vmatprep.subr.mxu0 0.0
        %2063 = vmatpush1.msra.mxu0 %v2052
        %2064 = vmatprep.subr.mxu0 0.0
        %2065 = vmatpush1.msra.mxu0 %v2051
        %2066 = vmatprep.subr.mxu0 0.0
        %2067 = vmatpush1.msra.mxu0 %v2050
        %2068 = vmatprep.subr.mxu0 0.0
        %2069 = vmatpush1.msra.mxu0 %v2049
        %2070 = vmatprep.subr.mxu0 0.0
        %2071 = vmatpush1.msra.mxu0 %v2048
        %2072 = vmatprep.subr.mxu0 0.0
        %2073 = vmatpush1.msra.mxu0 %v2047
        %2074 = vmatprep.subr.mxu0 0.0
        %2075 = vmatpush1.msra.mxu0 %v2046
        %2076 = vmatprep.subr.mxu0 0.0
        %2077 = vmatpush1.msra.mxu0 %v2045
        %2078 = vmatprep.subr.mxu0 0.0
        %2079 = vmatpush1.msra.mxu0 %v2044
        %2080 = vmatprep.subr.mxu0 0.0
        %2081 = vmatpush1.msra.mxu0 %v2043
        %2082 = vmatprep.subr.mxu0 0.0
        %2083 = vmatpush1.msra.mxu0 %v2042
        %2084 = vmatprep.subr.mxu0 0.0
        %2085 = vmatpush1.msra.mxu0 %v2041
        %2086 = vmatprep.subr.mxu0 0.0
        %2087 = vmatpush1.msra.mxu0 %v2040
        %2088 = vmatprep.subr.mxu0 0.0
        %2089 = vmatpush2.msra.mxu0 0.0
        %2090 = vmatprep.subr.mxu0 0.0
        %2091 = vmatpush2.msra.mxu0 0.0
        %2092 = vmatprep.subr.mxu0 0.0
        %2093 = vmatpush2.msra.mxu0 0.0
        %2094 = vmatprep.subr.mxu0 0.0
        %2095 = vmatpush2.msra.mxu0 0.0
        %2096 = vmatprep.subr.mxu0 0.0
        %2097 = vmatpush2.msra.mxu0 0.0
        %2098 = vmatprep.subr.mxu0 0.0
        %2099 = vmatpush2.msra.mxu0 0.0
        %2100 = vmatprep.subr.mxu0 0.0
        %2101 = vmatpush2.msra.mxu0 0.0
        %2102 = vmatprep.subr.mxu0 0.0
        %2103 = vmatpush2.msra.mxu0 0.0
        %2104 = vmatprep.subr.mxu0 0.0
        %2105 = vmatpush2.msra.mxu0 0.0
        %2106 = vmatprep.subr.mxu0 0.0
        %2107 = vmatpush2.msra.mxu0 0.0
        %2108 = vmatprep.subr.mxu0 0.0
        %2109 = vmatpush2.msra.mxu0 0.0
        %2110 = vmatprep.subr.mxu0 0.0
        %2111 = vmatpush2.msra.mxu0 0.0
        %2112 = vmatprep.subr.mxu0 0.0
        %2113 = vmatpush2.msra.mxu0 0.0
        %2114 = vmatprep.subr.mxu0 0.0
        %2115 = vmatpush2.msra.mxu0 0.0
        %2116 = vmatprep.subr.mxu0 0.0
        %2117 = vmatpush2.msra.mxu0 0.0
        %2118 = vmatprep.subr.mxu0 0.0
        %2119 = vmatpush2.msra.mxu0 0.0
        %2120 = vmatprep.mubr.f32.mxu0 0.0
        %2121 = vmatmul.mubr.f32.gmra.mxu0 %v2032
        %v2122 = vpop.f32.mrf.mxu0
        %v2123 = vadd.f32 0.0, %v2122
        %v2124 = vpop.f32.mrf.mxu0
        %2125 = vmatprep.mubr.f32.mxu0 0.0
        %2126 = vmatmul.mubr.f32.gmra.mxu0 %v2033
        %v2127 = vpop.f32.mrf.mxu0
        %v2128 = vadd.f32 0.0, %v2127
        %v2129 = vpop.f32.mrf.mxu0
        %2130 = vmatprep.mubr.f32.mxu0 0.0
        %2131 = vmatmul.mubr.f32.gmra.mxu0 %v2034
        %v2132 = vpop.f32.mrf.mxu0
        %v2133 = vadd.f32 0.0, %v2132
        %v2134 = vpop.f32.mrf.mxu0
        %2135 = vmatprep.mubr.f32.mxu0 0.0
        %2136 = vmatmul.mubr.f32.gmra.mxu0 %v2035
        %v2137 = vpop.f32.mrf.mxu0
        %v2138 = vadd.f32 0.0, %v2137
        %v2139 = vpop.f32.mrf.mxu0
        %2140 = vmatprep.mubr.f32.mxu0 0.0
        %2141 = vmatmul.mubr.f32.gmra.mxu0 %v2036
        %v2142 = vpop.f32.mrf.mxu0
        %v2143 = vadd.f32 0.0, %v2142
        %v2144 = vpop.f32.mrf.mxu0
        %2145 = vmatprep.mubr.f32.mxu0 0.0
        %2146 = vmatmul.mubr.f32.gmra.mxu0 %v2037
        %v2147 = vpop.f32.mrf.mxu0
        %v2148 = vadd.f32 0.0, %v2147
        %v2149 = vpop.f32.mrf.mxu0
        %2150 = vmatprep.mubr.f32.mxu0 0.0
        %2151 = vmatmul.mubr.f32.gmra.mxu0 %v2038
        %v2152 = vpop.f32.mrf.mxu0
        %v2153 = vadd.f32 0.0, %v2152
        %v2154 = vpop.f32.mrf.mxu0
        %2155 = vdwg.mxu0
        %v2156 = vadd.f32 %v2025, %v2123
        %v2157 = vadd.f32 %v2026, %v2128
        %v2158 = vadd.f32 %v2027, %v2133
        %v2159 = vadd.f32 %v2028, %v2138
        %v2160 = vadd.f32 %v2029, %v2143
        %v2161 = vadd.f32 %v2030, %v2148
        %v2162 = vadd.f32 %v2031, %v2153
        %v2163 = vld [vmem:[%s1521 + $0x28] sm:$0xff]
        %v2164 = vld [vmem:[%s1521 + $0x70] sm:$0xff]
        %v2165 = vld [vmem:[%s1521 + $0xb8] sm:$0xff]
        %v2166 = vld [vmem:[%s1521 + $0x100] sm:$0xff]
        %v2167 = vld [vmem:[%s1521 + $0x148] sm:$0xff]
        %v2168 = vld [vmem:[%s1521 + $0x190] sm:$0xff]
        %v2169 = vld [vmem:[%s1521 + $0x1d8] sm:$0x1]
        %s2170 = scalar_lea.vmem %s248, 1792
        %v2171 = vld [vmem:[%s2170] sm:$0xff]
        %v2172 = vld [vmem:[%s2170 + $0x8] sm:$0xff]
        %v2173 = vld [vmem:[%s2170 + $0x10] sm:$0xff]
        %v2174 = vld [vmem:[%s2170 + $0x18] sm:$0xff]
        %v2175 = vld [vmem:[%s2170 + $0x20] sm:$0xff]
        %v2176 = vld [vmem:[%s2170 + $0x28] sm:$0xff]
        %v2177 = vld [vmem:[%s2170 + $0x30] sm:$0xff]
        %v2178 = vld [vmem:[%s2170 + $0x38] sm:$0xff]
        %v2179 = vld [vmem:[%s2170 + $0x40] sm:$0xff]
        %v2180 = vld [vmem:[%s2170 + $0x48] sm:$0xff]
        %v2181 = vld [vmem:[%s2170 + $0x50] sm:$0xff]
        %v2182 = vld [vmem:[%s2170 + $0x58] sm:$0xff]
        %v2183 = vld [vmem:[%s2170 + $0x60] sm:$0xff]
        %v2184 = vld [vmem:[%s2170 + $0x68] sm:$0xff]
        %v2185 = vld [vmem:[%s2170 + $0x70] sm:$0xff]
        %v2186 = vld [vmem:[%s2170 + $0x78] sm:$0xff]
        %2187 = vmatprep.subr.mxu0 0.0
        %2188 = vmatpush1.msra.mxu0 %v2186
        %2189 = vmatprep.subr.mxu0 0.0
        %2190 = vmatpush1.msra.mxu0 %v2185
        %2191 = vmatprep.subr.mxu0 0.0
        %2192 = vmatpush1.msra.mxu0 %v2184
        %2193 = vmatprep.subr.mxu0 0.0
        %2194 = vmatpush1.msra.mxu0 %v2183
        %2195 = vmatprep.subr.mxu0 0.0
        %2196 = vmatpush1.msra.mxu0 %v2182
        %2197 = vmatprep.subr.mxu0 0.0
        %2198 = vmatpush1.msra.mxu0 %v2181
        %2199 = vmatprep.subr.mxu0 0.0
        %2200 = vmatpush1.msra.mxu0 %v2180
        %2201 = vmatprep.subr.mxu0 0.0
        %2202 = vmatpush1.msra.mxu0 %v2179
        %2203 = vmatprep.subr.mxu0 0.0
        %2204 = vmatpush1.msra.mxu0 %v2178
        %2205 = vmatprep.subr.mxu0 0.0
        %2206 = vmatpush1.msra.mxu0 %v2177
        %2207 = vmatprep.subr.mxu0 0.0
        %2208 = vmatpush1.msra.mxu0 %v2176
        %2209 = vmatprep.subr.mxu0 0.0
        %2210 = vmatpush1.msra.mxu0 %v2175
        %2211 = vmatprep.subr.mxu0 0.0
        %2212 = vmatpush1.msra.mxu0 %v2174
        %2213 = vmatprep.subr.mxu0 0.0
        %2214 = vmatpush1.msra.mxu0 %v2173
        %2215 = vmatprep.subr.mxu0 0.0
        %2216 = vmatpush1.msra.mxu0 %v2172
        %2217 = vmatprep.subr.mxu0 0.0
        %2218 = vmatpush1.msra.mxu0 %v2171
        %2219 = vmatprep.subr.mxu0 0.0
        %2220 = vmatpush2.msra.mxu0 0.0
        %2221 = vmatprep.subr.mxu0 0.0
        %2222 = vmatpush2.msra.mxu0 0.0
        %2223 = vmatprep.subr.mxu0 0.0
        %2224 = vmatpush2.msra.mxu0 0.0
        %2225 = vmatprep.subr.mxu0 0.0
        %2226 = vmatpush2.msra.mxu0 0.0
        %2227 = vmatprep.subr.mxu0 0.0
        %2228 = vmatpush2.msra.mxu0 0.0
        %2229 = vmatprep.subr.mxu0 0.0
        %2230 = vmatpush2.msra.mxu0 0.0
        %2231 = vmatprep.subr.mxu0 0.0
        %2232 = vmatpush2.msra.mxu0 0.0
        %2233 = vmatprep.subr.mxu0 0.0
        %2234 = vmatpush2.msra.mxu0 0.0
        %2235 = vmatprep.subr.mxu0 0.0
        %2236 = vmatpush2.msra.mxu0 0.0
        %2237 = vmatprep.subr.mxu0 0.0
        %2238 = vmatpush2.msra.mxu0 0.0
        %2239 = vmatprep.subr.mxu0 0.0
        %2240 = vmatpush2.msra.mxu0 0.0
        %2241 = vmatprep.subr.mxu0 0.0
        %2242 = vmatpush2.msra.mxu0 0.0
        %2243 = vmatprep.subr.mxu0 0.0
        %2244 = vmatpush2.msra.mxu0 0.0
        %2245 = vmatprep.subr.mxu0 0.0
        %2246 = vmatpush2.msra.mxu0 0.0
        %2247 = vmatprep.subr.mxu0 0.0
        %2248 = vmatpush2.msra.mxu0 0.0
        %2249 = vmatprep.subr.mxu0 0.0
        %2250 = vmatpush2.msra.mxu0 0.0
        %2251 = vmatprep.mubr.f32.mxu0 0.0
        %2252 = vmatmul.mubr.f32.gmra.mxu0 %v2163
        %v2253 = vpop.f32.mrf.mxu0
        %v2254 = vadd.f32 0.0, %v2253
        %v2255 = vpop.f32.mrf.mxu0
        %2256 = vmatprep.mubr.f32.mxu0 0.0
        %2257 = vmatmul.mubr.f32.gmra.mxu0 %v2164
        %v2258 = vpop.f32.mrf.mxu0
        %v2259 = vadd.f32 0.0, %v2258
        %v2260 = vpop.f32.mrf.mxu0
        %2261 = vmatprep.mubr.f32.mxu0 0.0
        %2262 = vmatmul.mubr.f32.gmra.mxu0 %v2165
        %v2263 = vpop.f32.mrf.mxu0
        %v2264 = vadd.f32 0.0, %v2263
        %v2265 = vpop.f32.mrf.mxu0
        %2266 = vmatprep.mubr.f32.mxu0 0.0
        %2267 = vmatmul.mubr.f32.gmra.mxu0 %v2166
        %v2268 = vpop.f32.mrf.mxu0
        %v2269 = vadd.f32 0.0, %v2268
        %v2270 = vpop.f32.mrf.mxu0
        %2271 = vmatprep.mubr.f32.mxu0 0.0
        %2272 = vmatmul.mubr.f32.gmra.mxu0 %v2167
        %v2273 = vpop.f32.mrf.mxu0
        %v2274 = vadd.f32 0.0, %v2273
        %v2275 = vpop.f32.mrf.mxu0
        %2276 = vmatprep.mubr.f32.mxu0 0.0
        %2277 = vmatmul.mubr.f32.gmra.mxu0 %v2168
        %v2278 = vpop.f32.mrf.mxu0
        %v2279 = vadd.f32 0.0, %v2278
        %v2280 = vpop.f32.mrf.mxu0
        %2281 = vmatprep.mubr.f32.mxu0 0.0
        %2282 = vmatmul.mubr.f32.gmra.mxu0 %v2169
        %v2283 = vpop.f32.mrf.mxu0
        %v2284 = vadd.f32 0.0, %v2283
        %v2285 = vpop.f32.mrf.mxu0
        %2286 = vdwg.mxu0
        %v2287 = vadd.f32 %v2156, %v2254
        %v2288 = vadd.f32 %v2157, %v2259
        %v2289 = vadd.f32 %v2158, %v2264
        %v2290 = vadd.f32 %v2159, %v2269
        %v2291 = vadd.f32 %v2160, %v2274
        %v2292 = vadd.f32 %v2161, %v2279
        %v2293 = vadd.f32 %v2162, %v2284
        %v2294 = vld [vmem:[%s1521 + $0x30] sm:$0xff]
        %v2295 = vld [vmem:[%s1521 + $0x78] sm:$0xff]
        %v2296 = vld [vmem:[%s1521 + $0xc0] sm:$0xff]
        %v2297 = vld [vmem:[%s1521 + $0x108] sm:$0xff]
        %v2298 = vld [vmem:[%s1521 + $0x150] sm:$0xff]
        %v2299 = vld [vmem:[%s1521 + $0x198] sm:$0xff]
        %v2300 = vld [vmem:[%s1521 + $0x1e0] sm:$0x1]
        %s2301 = scalar_lea.vmem %s248, 1920
        %v2302 = vld [vmem:[%s2301] sm:$0xff]
        %v2303 = vld [vmem:[%s2301 + $0x8] sm:$0xff]
        %v2304 = vld [vmem:[%s2301 + $0x10] sm:$0xff]
        %v2305 = vld [vmem:[%s2301 + $0x18] sm:$0xff]
        %v2306 = vld [vmem:[%s2301 + $0x20] sm:$0xff]
        %v2307 = vld [vmem:[%s2301 + $0x28] sm:$0xff]
        %v2308 = vld [vmem:[%s2301 + $0x30] sm:$0xff]
        %v2309 = vld [vmem:[%s2301 + $0x38] sm:$0xff]
        %v2310 = vld [vmem:[%s2301 + $0x40] sm:$0xff]
        %v2311 = vld [vmem:[%s2301 + $0x48] sm:$0xff]
        %v2312 = vld [vmem:[%s2301 + $0x50] sm:$0xff]
        %v2313 = vld [vmem:[%s2301 + $0x58] sm:$0xff]
        %v2314 = vld [vmem:[%s2301 + $0x60] sm:$0xff]
        %v2315 = vld [vmem:[%s2301 + $0x68] sm:$0xff]
        %v2316 = vld [vmem:[%s2301 + $0x70] sm:$0xff]
        %v2317 = vld [vmem:[%s2301 + $0x78] sm:$0xff]
        %2318 = vmatprep.subr.mxu0 0.0
        %2319 = vmatpush1.msra.mxu0 %v2317
        %2320 = vmatprep.subr.mxu0 0.0
        %2321 = vmatpush1.msra.mxu0 %v2316
        %2322 = vmatprep.subr.mxu0 0.0
        %2323 = vmatpush1.msra.mxu0 %v2315
        %2324 = vmatprep.subr.mxu0 0.0
        %2325 = vmatpush1.msra.mxu0 %v2314
        %2326 = vmatprep.subr.mxu0 0.0
        %2327 = vmatpush1.msra.mxu0 %v2313
        %2328 = vmatprep.subr.mxu0 0.0
        %2329 = vmatpush1.msra.mxu0 %v2312
        %2330 = vmatprep.subr.mxu0 0.0
        %2331 = vmatpush1.msra.mxu0 %v2311
        %2332 = vmatprep.subr.mxu0 0.0
        %2333 = vmatpush1.msra.mxu0 %v2310
        %2334 = vmatprep.subr.mxu0 0.0
        %2335 = vmatpush1.msra.mxu0 %v2309
        %2336 = vmatprep.subr.mxu0 0.0
        %2337 = vmatpush1.msra.mxu0 %v2308
        %2338 = vmatprep.subr.mxu0 0.0
        %2339 = vmatpush1.msra.mxu0 %v2307
        %2340 = vmatprep.subr.mxu0 0.0
        %2341 = vmatpush1.msra.mxu0 %v2306
        %2342 = vmatprep.subr.mxu0 0.0
        %2343 = vmatpush1.msra.mxu0 %v2305
        %2344 = vmatprep.subr.mxu0 0.0
        %2345 = vmatpush1.msra.mxu0 %v2304
        %2346 = vmatprep.subr.mxu0 0.0
        %2347 = vmatpush1.msra.mxu0 %v2303
        %2348 = vmatprep.subr.mxu0 0.0
        %2349 = vmatpush1.msra.mxu0 %v2302
        %2350 = vmatprep.subr.mxu0 0.0
        %2351 = vmatpush2.msra.mxu0 0.0
        %2352 = vmatprep.subr.mxu0 0.0
        %2353 = vmatpush2.msra.mxu0 0.0
        %2354 = vmatprep.subr.mxu0 0.0
        %2355 = vmatpush2.msra.mxu0 0.0
        %2356 = vmatprep.subr.mxu0 0.0
        %2357 = vmatpush2.msra.mxu0 0.0
        %2358 = vmatprep.subr.mxu0 0.0
        %2359 = vmatpush2.msra.mxu0 0.0
        %2360 = vmatprep.subr.mxu0 0.0
        %2361 = vmatpush2.msra.mxu0 0.0
        %2362 = vmatprep.subr.mxu0 0.0
        %2363 = vmatpush2.msra.mxu0 0.0
        %2364 = vmatprep.subr.mxu0 0.0
        %2365 = vmatpush2.msra.mxu0 0.0
        %2366 = vmatprep.subr.mxu0 0.0
        %2367 = vmatpush2.msra.mxu0 0.0
        %2368 = vmatprep.subr.mxu0 0.0
        %2369 = vmatpush2.msra.mxu0 0.0
        %2370 = vmatprep.subr.mxu0 0.0
        %2371 = vmatpush2.msra.mxu0 0.0
        %2372 = vmatprep.subr.mxu0 0.0
        %2373 = vmatpush2.msra.mxu0 0.0
        %2374 = vmatprep.subr.mxu0 0.0
        %2375 = vmatpush2.msra.mxu0 0.0
        %2376 = vmatprep.subr.mxu0 0.0
        %2377 = vmatpush2.msra.mxu0 0.0
        %2378 = vmatprep.subr.mxu0 0.0
        %2379 = vmatpush2.msra.mxu0 0.0
        %2380 = vmatprep.subr.mxu0 0.0
        %2381 = vmatpush2.msra.mxu0 0.0
        %2382 = vmatprep.mubr.f32.mxu0 0.0
        %2383 = vmatmul.mubr.f32.gmra.mxu0 %v2294
        %v2384 = vpop.f32.mrf.mxu0
        %v2385 = vadd.f32 0.0, %v2384
        %v2386 = vpop.f32.mrf.mxu0
        %2387 = vmatprep.mubr.f32.mxu0 0.0
        %2388 = vmatmul.mubr.f32.gmra.mxu0 %v2295
        %v2389 = vpop.f32.mrf.mxu0
        %v2390 = vadd.f32 0.0, %v2389
        %v2391 = vpop.f32.mrf.mxu0
        %2392 = vmatprep.mubr.f32.mxu0 0.0
        %2393 = vmatmul.mubr.f32.gmra.mxu0 %v2296
        %v2394 = vpop.f32.mrf.mxu0
        %v2395 = vadd.f32 0.0, %v2394
        %v2396 = vpop.f32.mrf.mxu0
        %2397 = vmatprep.mubr.f32.mxu0 0.0
        %2398 = vmatmul.mubr.f32.gmra.mxu0 %v2297
        %v2399 = vpop.f32.mrf.mxu0
        %v2400 = vadd.f32 0.0, %v2399
        %v2401 = vpop.f32.mrf.mxu0
        %2402 = vmatprep.mubr.f32.mxu0 0.0
        %2403 = vmatmul.mubr.f32.gmra.mxu0 %v2298
        %v2404 = vpop.f32.mrf.mxu0
        %v2405 = vadd.f32 0.0, %v2404
        %v2406 = vpop.f32.mrf.mxu0
        %2407 = vmatprep.mubr.f32.mxu0 0.0
        %2408 = vmatmul.mubr.f32.gmra.mxu0 %v2299
        %v2409 = vpop.f32.mrf.mxu0
        %v2410 = vadd.f32 0.0, %v2409
        %v2411 = vpop.f32.mrf.mxu0
        %2412 = vmatprep.mubr.f32.mxu0 0.0
        %2413 = vmatmul.mubr.f32.gmra.mxu0 %v2300
        %v2414 = vpop.f32.mrf.mxu0
        %v2415 = vadd.f32 0.0, %v2414
        %v2416 = vpop.f32.mrf.mxu0
        %2417 = vdwg.mxu0
        %v2418 = vadd.f32 %v2287, %v2385
        %v2419 = vadd.f32 %v2288, %v2390
        %v2420 = vadd.f32 %v2289, %v2395
        %v2421 = vadd.f32 %v2290, %v2400
        %v2422 = vadd.f32 %v2291, %v2405
        %v2423 = vadd.f32 %v2292, %v2410
        %v2424 = vadd.f32 %v2293, %v2415
        %v2425 = vld [vmem:[%s1521 + $0x38] sm:$0xff]
        %v2426 = vld [vmem:[%s1521 + $0x80] sm:$0xff]
        %v2427 = vld [vmem:[%s1521 + $0xc8] sm:$0xff]
        %v2428 = vld [vmem:[%s1521 + $0x110] sm:$0xff]
        %v2429 = vld [vmem:[%s1521 + $0x158] sm:$0xff]
        %v2430 = vld [vmem:[%s1521 + $0x1a0] sm:$0xff]
        %v2431 = vld [vmem:[%s1521 + $0x1e8] sm:$0x1]
        %s2432 = scalar_lea.vmem %s248, 2048
        %v2433 = vld [vmem:[%s2432] sm:$0xff]
        %v2434 = vld [vmem:[%s2432 + $0x8] sm:$0xff]
        %v2435 = vld [vmem:[%s2432 + $0x10] sm:$0xff]
        %v2436 = vld [vmem:[%s2432 + $0x18] sm:$0xff]
        %v2437 = vld [vmem:[%s2432 + $0x20] sm:$0xff]
        %v2438 = vld [vmem:[%s2432 + $0x28] sm:$0xff]
        %v2439 = vld [vmem:[%s2432 + $0x30] sm:$0xff]
        %v2440 = vld [vmem:[%s2432 + $0x38] sm:$0xff]
        %v2441 = vld [vmem:[%s2432 + $0x40] sm:$0xff]
        %v2442 = vld [vmem:[%s2432 + $0x48] sm:$0xff]
        %v2443 = vld [vmem:[%s2432 + $0x50] sm:$0xff]
        %v2444 = vld [vmem:[%s2432 + $0x58] sm:$0xff]
        %v2445 = vld [vmem:[%s2432 + $0x60] sm:$0xff]
        %v2446 = vld [vmem:[%s2432 + $0x68] sm:$0xff]
        %v2447 = vld [vmem:[%s2432 + $0x70] sm:$0xff]
        %v2448 = vld [vmem:[%s2432 + $0x78] sm:$0xff]
        %2449 = vmatprep.subr.mxu0 0.0
        %2450 = vmatpush1.msra.mxu0 %v2448
        %2451 = vmatprep.subr.mxu0 0.0
        %2452 = vmatpush1.msra.mxu0 %v2447
        %2453 = vmatprep.subr.mxu0 0.0
        %2454 = vmatpush1.msra.mxu0 %v2446
        %2455 = vmatprep.subr.mxu0 0.0
        %2456 = vmatpush1.msra.mxu0 %v2445
        %2457 = vmatprep.subr.mxu0 0.0
        %2458 = vmatpush1.msra.mxu0 %v2444
        %2459 = vmatprep.subr.mxu0 0.0
        %2460 = vmatpush1.msra.mxu0 %v2443
        %2461 = vmatprep.subr.mxu0 0.0
        %2462 = vmatpush1.msra.mxu0 %v2442
        %2463 = vmatprep.subr.mxu0 0.0
        %2464 = vmatpush1.msra.mxu0 %v2441
        %2465 = vmatprep.subr.mxu0 0.0
        %2466 = vmatpush1.msra.mxu0 %v2440
        %2467 = vmatprep.subr.mxu0 0.0
        %2468 = vmatpush1.msra.mxu0 %v2439
        %2469 = vmatprep.subr.mxu0 0.0
        %2470 = vmatpush1.msra.mxu0 %v2438
        %2471 = vmatprep.subr.mxu0 0.0
        %2472 = vmatpush1.msra.mxu0 %v2437
        %2473 = vmatprep.subr.mxu0 0.0
        %2474 = vmatpush1.msra.mxu0 %v2436
        %2475 = vmatprep.subr.mxu0 0.0
        %2476 = vmatpush1.msra.mxu0 %v2435
        %2477 = vmatprep.subr.mxu0 0.0
        %2478 = vmatpush1.msra.mxu0 %v2434
        %2479 = vmatprep.subr.mxu0 0.0
        %2480 = vmatpush1.msra.mxu0 %v2433
        %2481 = vmatprep.subr.mxu0 0.0
        %2482 = vmatpush2.msra.mxu0 0.0
        %2483 = vmatprep.subr.mxu0 0.0
        %2484 = vmatpush2.msra.mxu0 0.0
        %2485 = vmatprep.subr.mxu0 0.0
        %2486 = vmatpush2.msra.mxu0 0.0
        %2487 = vmatprep.subr.mxu0 0.0
        %2488 = vmatpush2.msra.mxu0 0.0
        %2489 = vmatprep.subr.mxu0 0.0
        %2490 = vmatpush2.msra.mxu0 0.0
        %2491 = vmatprep.subr.mxu0 0.0
        %2492 = vmatpush2.msra.mxu0 0.0
        %2493 = vmatprep.subr.mxu0 0.0
        %2494 = vmatpush2.msra.mxu0 0.0
        %2495 = vmatprep.subr.mxu0 0.0
        %2496 = vmatpush2.msra.mxu0 0.0
        %2497 = vmatprep.subr.mxu0 0.0
        %2498 = vmatpush2.msra.mxu0 0.0
        %2499 = vmatprep.subr.mxu0 0.0
        %2500 = vmatpush2.msra.mxu0 0.0
        %2501 = vmatprep.subr.mxu0 0.0
        %2502 = vmatpush2.msra.mxu0 0.0
        %2503 = vmatprep.subr.mxu0 0.0
        %2504 = vmatpush2.msra.mxu0 0.0
        %2505 = vmatprep.subr.mxu0 0.0
        %2506 = vmatpush2.msra.mxu0 0.0
        %2507 = vmatprep.subr.mxu0 0.0
        %2508 = vmatpush2.msra.mxu0 0.0
        %2509 = vmatprep.subr.mxu0 0.0
        %2510 = vmatpush2.msra.mxu0 0.0
        %2511 = vmatprep.subr.mxu0 0.0
        %2512 = vmatpush2.msra.mxu0 0.0
        %2513 = vmatprep.mubr.f32.mxu0 0.0
        %2514 = vmatmul.mubr.f32.gmra.mxu0 %v2425
        %v2515 = vpop.f32.mrf.mxu0
        %v2516 = vadd.f32 0.0, %v2515
        %v2517 = vpop.f32.mrf.mxu0
        %2518 = vmatprep.mubr.f32.mxu0 0.0
        %2519 = vmatmul.mubr.f32.gmra.mxu0 %v2426
        %v2520 = vpop.f32.mrf.mxu0
        %v2521 = vadd.f32 0.0, %v2520
        %v2522 = vpop.f32.mrf.mxu0
        %2523 = vmatprep.mubr.f32.mxu0 0.0
        %2524 = vmatmul.mubr.f32.gmra.mxu0 %v2427
        %v2525 = vpop.f32.mrf.mxu0
        %v2526 = vadd.f32 0.0, %v2525
        %v2527 = vpop.f32.mrf.mxu0
        %2528 = vmatprep.mubr.f32.mxu0 0.0
        %2529 = vmatmul.mubr.f32.gmra.mxu0 %v2428
        %v2530 = vpop.f32.mrf.mxu0
        %v2531 = vadd.f32 0.0, %v2530
        %v2532 = vpop.f32.mrf.mxu0
        %2533 = vmatprep.mubr.f32.mxu0 0.0
        %2534 = vmatmul.mubr.f32.gmra.mxu0 %v2429
        %v2535 = vpop.f32.mrf.mxu0
        %v2536 = vadd.f32 0.0, %v2535
        %v2537 = vpop.f32.mrf.mxu0
        %2538 = vmatprep.mubr.f32.mxu0 0.0
        %2539 = vmatmul.mubr.f32.gmra.mxu0 %v2430
        %v2540 = vpop.f32.mrf.mxu0
        %v2541 = vadd.f32 0.0, %v2540
        %v2542 = vpop.f32.mrf.mxu0
        %2543 = vmatprep.mubr.f32.mxu0 0.0
        %2544 = vmatmul.mubr.f32.gmra.mxu0 %v2431
        %v2545 = vpop.f32.mrf.mxu0
        %v2546 = vadd.f32 0.0, %v2545
        %v2547 = vpop.f32.mrf.mxu0
        %2548 = vdwg.mxu0
        %v2549 = vadd.f32 %v2418, %v2516
        %v2550 = vadd.f32 %v2419, %v2521
        %v2551 = vadd.f32 %v2420, %v2526
        %v2552 = vadd.f32 %v2421, %v2531
        %v2553 = vadd.f32 %v2422, %v2536
        %v2554 = vadd.f32 %v2423, %v2541
        %v2555 = vadd.f32 %v2424, %v2546
        %v2556 = vld [vmem:[%s1521 + $0x40] sm:$0xff]
        %v2557 = vld [vmem:[%s1521 + $0x88] sm:$0xff]
        %v2558 = vld [vmem:[%s1521 + $0xd0] sm:$0xff]
        %v2559 = vld [vmem:[%s1521 + $0x118] sm:$0xff]
        %v2560 = vld [vmem:[%s1521 + $0x160] sm:$0xff]
        %v2561 = vld [vmem:[%s1521 + $0x1a8] sm:$0xff]
        %v2562 = vld [vmem:[%s1521 + $0x1f0] sm:$0x1]
        %s2563 = scalar_lea.vmem %s248, 2176
        %v2564 = vld [vmem:[%s2563] sm:$0xff]
        %v2565 = vld [vmem:[%s2563 + $0x8] sm:$0xff]
        %v2566 = vld [vmem:[%s2563 + $0x10] sm:$0xff]
        %v2567 = vld [vmem:[%s2563 + $0x18] sm:$0xff]
        %v2568 = vld [vmem:[%s2563 + $0x20] sm:$0xff]
        %v2569 = vld [vmem:[%s2563 + $0x28] sm:$0xff]
        %v2570 = vld [vmem:[%s2563 + $0x30] sm:$0xff]
        %v2571 = vld [vmem:[%s2563 + $0x38] sm:$0xff]
        %v2572 = vld [vmem:[%s2563 + $0x40] sm:$0xff]
        %v2573 = vld [vmem:[%s2563 + $0x48] sm:$0xff]
        %v2574 = vld [vmem:[%s2563 + $0x50] sm:$0xff]
        %v2575 = vld [vmem:[%s2563 + $0x58] sm:$0xff]
        %v2576 = vld [vmem:[%s2563 + $0x60] sm:$0xff]
        %v2577 = vld [vmem:[%s2563 + $0x68] sm:$0xff]
        %v2578 = vld [vmem:[%s2563 + $0x70] sm:$0xff]
        %v2579 = vld [vmem:[%s2563 + $0x78] sm:$0xff]
        %2580 = vmatprep.subr.mxu0 0.0
        %2581 = vmatpush1.msra.mxu0 %v2579
        %2582 = vmatprep.subr.mxu0 0.0
        %2583 = vmatpush1.msra.mxu0 %v2578
        %2584 = vmatprep.subr.mxu0 0.0
        %2585 = vmatpush1.msra.mxu0 %v2577
        %2586 = vmatprep.subr.mxu0 0.0
        %2587 = vmatpush1.msra.mxu0 %v2576
        %2588 = vmatprep.subr.mxu0 0.0
        %2589 = vmatpush1.msra.mxu0 %v2575
        %2590 = vmatprep.subr.mxu0 0.0
        %2591 = vmatpush1.msra.mxu0 %v2574
        %2592 = vmatprep.subr.mxu0 0.0
        %2593 = vmatpush1.msra.mxu0 %v2573
        %2594 = vmatprep.subr.mxu0 0.0
        %2595 = vmatpush1.msra.mxu0 %v2572
        %2596 = vmatprep.subr.mxu0 0.0
        %2597 = vmatpush1.msra.mxu0 %v2571
        %2598 = vmatprep.subr.mxu0 0.0
        %2599 = vmatpush1.msra.mxu0 %v2570
        %2600 = vmatprep.subr.mxu0 0.0
        %2601 = vmatpush1.msra.mxu0 %v2569
        %2602 = vmatprep.subr.mxu0 0.0
        %2603 = vmatpush1.msra.mxu0 %v2568
        %2604 = vmatprep.subr.mxu0 0.0
        %2605 = vmatpush1.msra.mxu0 %v2567
        %2606 = vmatprep.subr.mxu0 0.0
        %2607 = vmatpush1.msra.mxu0 %v2566
        %2608 = vmatprep.subr.mxu0 0.0
        %2609 = vmatpush1.msra.mxu0 %v2565
        %2610 = vmatprep.subr.mxu0 0.0
        %2611 = vmatpush1.msra.mxu0 %v2564
        %2612 = vmatprep.subr.mxu0 0.0
        %2613 = vmatpush2.msra.mxu0 0.0
        %2614 = vmatprep.subr.mxu0 0.0
        %2615 = vmatpush2.msra.mxu0 0.0
        %2616 = vmatprep.subr.mxu0 0.0
        %2617 = vmatpush2.msra.mxu0 0.0
        %2618 = vmatprep.subr.mxu0 0.0
        %2619 = vmatpush2.msra.mxu0 0.0
        %2620 = vmatprep.subr.mxu0 0.0
        %2621 = vmatpush2.msra.mxu0 0.0
        %2622 = vmatprep.subr.mxu0 0.0
        %2623 = vmatpush2.msra.mxu0 0.0
        %2624 = vmatprep.subr.mxu0 0.0
        %2625 = vmatpush2.msra.mxu0 0.0
        %2626 = vmatprep.subr.mxu0 0.0
        %2627 = vmatpush2.msra.mxu0 0.0
        %2628 = vmatprep.subr.mxu0 0.0
        %2629 = vmatpush2.msra.mxu0 0.0
        %2630 = vmatprep.subr.mxu0 0.0
        %2631 = vmatpush2.msra.mxu0 0.0
        %2632 = vmatprep.subr.mxu0 0.0
        %2633 = vmatpush2.msra.mxu0 0.0
        %2634 = vmatprep.subr.mxu0 0.0
        %2635 = vmatpush2.msra.mxu0 0.0
        %2636 = vmatprep.subr.mxu0 0.0
        %2637 = vmatpush2.msra.mxu0 0.0
        %2638 = vmatprep.subr.mxu0 0.0
        %2639 = vmatpush2.msra.mxu0 0.0
        %2640 = vmatprep.subr.mxu0 0.0
        %2641 = vmatpush2.msra.mxu0 0.0
        %2642 = vmatprep.subr.mxu0 0.0
        %2643 = vmatpush2.msra.mxu0 0.0
        %2644 = vmatprep.mubr.f32.mxu0 0.0
        %2645 = vmatmul.mubr.f32.gmra.mxu0 %v2556
        %v2646 = vpop.f32.mrf.mxu0
        %v2647 = vadd.f32 0.0, %v2646
        %v2648 = vpop.f32.mrf.mxu0
        %2649 = vmatprep.mubr.f32.mxu0 0.0
        %2650 = vmatmul.mubr.f32.gmra.mxu0 %v2557
        %v2651 = vpop.f32.mrf.mxu0
        %v2652 = vadd.f32 0.0, %v2651
        %v2653 = vpop.f32.mrf.mxu0
        %2654 = vmatprep.mubr.f32.mxu0 0.0
        %2655 = vmatmul.mubr.f32.gmra.mxu0 %v2558
        %v2656 = vpop.f32.mrf.mxu0
        %v2657 = vadd.f32 0.0, %v2656
        %v2658 = vpop.f32.mrf.mxu0
        %2659 = vmatprep.mubr.f32.mxu0 0.0
        %2660 = vmatmul.mubr.f32.gmra.mxu0 %v2559
        %v2661 = vpop.f32.mrf.mxu0
        %v2662 = vadd.f32 0.0, %v2661
        %v2663 = vpop.f32.mrf.mxu0
        %2664 = vmatprep.mubr.f32.mxu0 0.0
        %2665 = vmatmul.mubr.f32.gmra.mxu0 %v2560
        %v2666 = vpop.f32.mrf.mxu0
        %v2667 = vadd.f32 0.0, %v2666
        %v2668 = vpop.f32.mrf.mxu0
        %2669 = vmatprep.mubr.f32.mxu0 0.0
        %2670 = vmatmul.mubr.f32.gmra.mxu0 %v2561
        %v2671 = vpop.f32.mrf.mxu0
        %v2672 = vadd.f32 0.0, %v2671
        %v2673 = vpop.f32.mrf.mxu0
        %2674 = vmatprep.mubr.f32.mxu0 0.0
        %2675 = vmatmul.mubr.f32.gmra.mxu0 %v2562
        %v2676 = vpop.f32.mrf.mxu0
        %v2677 = vadd.f32 0.0, %v2676
        %v2678 = vpop.f32.mrf.mxu0
        %2679 = vdwg.mxu0
        %v2680 = vadd.f32 %v2549, %v2647
        %v2681 = vadd.f32 %v2550, %v2652
        %v2682 = vadd.f32 %v2551, %v2657
        %v2683 = vadd.f32 %v2552, %v2662
        %v2684 = vadd.f32 %v2553, %v2667
        %v2685 = vadd.f32 %v2554, %v2672
        %v2686 = vadd.f32 %v2555, %v2677
        %v2687 = vadd.f32 %v2680, %v2681
        %v2688 = vadd.f32 %v2687, %v2682
        %v2689 = vadd.f32 %v2688, %v2683
        %v2690 = vadd.f32 %v2689, %v2684
        %v2691 = vadd.f32 %v2690, %v2685
        %v2692 = vsel %vm1430, %v2686, 0.0
        %v2693 = vadd.f32 %v2691, %v2692
        %v2694 = vrot.slane %v2693, 4
        %v2695 = vadd.f32 %v2693, %v2694
        %v2696 = vrot.slane %v2695, 2
        %v2697 = vadd.f32 %v2695, %v2696
        %v2698 = vrot.slane %v2697, 1
        %v2699 = vadd.f32 %v2697, %v2698
        %v2700 = vmul.f32 %v2699, 0.020408163
        %v2701 = vmul.f32 %v2680, %v2680
        %v2702 = vmul.f32 %v2681, %v2681
        %v2703 = vmul.f32 %v2682, %v2682
        %v2704 = vmul.f32 %v2683, %v2683
        %v2705 = vmul.f32 %v2684, %v2684
        %v2706 = vmul.f32 %v2685, %v2685
        %v2707 = vmul.f32 %v2686, %v2686
        %v2708 = vadd.f32 %v2701, %v2702
        %v2709 = vadd.f32 %v2708, %v2703
        %v2710 = vadd.f32 %v2709, %v2704
        %v2711 = vadd.f32 %v2710, %v2705
        %v2712 = vadd.f32 %v2711, %v2706
        %v2713 = vsel %vm1430, %v2707, 0.0
        %v2714 = vadd.f32 %v2712, %v2713
        %v2715 = vrot.slane %v2714, 4
        %v2716 = vadd.f32 %v2714, %v2715
        %v2717 = vrot.slane %v2716, 2
        %v2718 = vadd.f32 %v2716, %v2717
        %v2719 = vrot.slane %v2718, 1
        %v2720 = vadd.f32 %v2718, %v2719
        %v2721 = vmul.f32 %v2720, 0.020408163
        %v2722 = vmul.f32 %v2700, %v2700
        %v2723 = vsub.f32 %v2721, %v2722
        %v2724 = vsub.f32 %v2680, %v2700
        %v2725 = vsub.f32 %v2681, %v2700
        %v2726 = vsub.f32 %v2682, %v2700
        %v2727 = vsub.f32 %v2683, %v2700
        %v2728 = vsub.f32 %v2684, %v2700
        %v2729 = vsub.f32 %v2685, %v2700
        %v2730 = vsub.f32 %v2686, %v2700
        %v2731 = vadd.f32 %v2723, 1e-05
        %v2732 = vrsqrt.pop %v2731
        %v2733 = vmul.f32 %v2724, %v2732
        %v2734 = vmul.f32 %v2725, %v2732
        %v2735 = vmul.f32 %v2726, %v2732
        %v2736 = vmul.f32 %v2727, %v2732
        %v2737 = vmul.f32 %v2728, %v2732
        %v2738 = vmul.f32 %v2729, %v2732
        %v2739 = vmul.f32 %v2730, %v2732
        %s2740 = scalar_lea.vmem %s253, 1
        %v2741 = vld [vmem:[%s2740] sm:$0x1]
        %v2743 = vlaneseq
        %v2744 = vshrl.u32 %v2743, 7
        %v2745 = vsub.s32 0, %v2744
        %v2746 = vrot.slane %v2741, %v2745
        %v2748 = vmul.f32 %v2733, %v2746
        %v2749 = vmul.f32 %v2734, %v2746
        %v2750 = vmul.f32 %v2735, %v2746
        %v2751 = vmul.f32 %v2736, %v2746
        %v2752 = vmul.f32 %v2737, %v2746
        %v2753 = vmul.f32 %v2738, %v2746
        %v2754 = vmul.f32 %v2739, %v2746
        %s2755 = scalar_lea.vmem %s258, 1
        %v2756 = vld [vmem:[%s2755] sm:$0x1]
        %v2758 = vlaneseq
        %v2759 = vshrl.u32 %v2758, 7
        %v2760 = vsub.s32 0, %v2759
        %v2761 = vrot.slane %v2756, %v2760
        %v2763 = vadd.f32 %v2748, %v2761
        %v2764 = vadd.f32 %v2749, %v2761
        %v2765 = vadd.f32 %v2750, %v2761
        %v2766 = vadd.f32 %v2751, %v2761
        %v2767 = vadd.f32 %v2752, %v2761
        %v2768 = vadd.f32 %v2753, %v2761
        %v2769 = vadd.f32 %v2754, %v2761
        %v2770 = vmax.f32 %v2763, 0.0
        %v2771 = vmax.f32 %v2764, 0.0
        %v2772 = vmax.f32 %v2765, 0.0
        %v2773 = vmax.f32 %v2766, 0.0
        %v2774 = vmax.f32 %v2767, 0.0
        %v2775 = vmax.f32 %v2768, 0.0
        %v2776 = vmax.f32 %v2769, 0.0
        %2777 = vst [vmem:[%s235 + $0x8] sm:$0xff] %v2770
        %2778 = vst [vmem:[%s235 + $0x18] sm:$0xff] %v2771
        %2779 = vst [vmem:[%s235 + $0x28] sm:$0xff] %v2772
        %2780 = vst [vmem:[%s235 + $0x38] sm:$0xff] %v2773
        %2781 = vst [vmem:[%s235 + $0x48] sm:$0xff] %v2774
        %2782 = vst [vmem:[%s235 + $0x58] sm:$0xff] %v2775
        %2783 = vst [vmem:[%s235 + $0x68] sm:$0x1] %v2776
        %s2784 = sand.u32 %s127, 1
        %s2785 = sand.u32 %s127, 1
        %s2786 = smul.addr %s2785, 112
        %s2787 = scalar_lea.vmem [#allocation2], %s2786
        // Predicated region
        $region37: #{conv_bn_relu.1} parent=35 // pred_check
          %p2788 = pneg %p137
        $region38: #{conv_bn_relu.1} parent=35 // pred_check_branch
          %2790 = sbr.rel (%p2788) target = $region40
        $region39: #{conv_bn_relu.1} parent=35 // pred_region
          %s2791 = smul.u32 2, %s15
          %s2792 = smul.addr %s2791, 8
          %s2793 = scalar_lea.vmem %s4, %s2792
          // Predicated region
          $region41: #{conv_bn_relu.1} parent=39 // pred_check
            _
          $region42: #{conv_bn_relu.1} parent=39 // pred_check_branch
            %2795 = sbr.rel (0) target = $region44
          $region43: #{conv_bn_relu.1} parent=39 // pred_region
            // Predicated region
            $region45: #{conv_bn_relu.1} parent=43 // pred_check
              _
            $region46: #{conv_bn_relu.1} parent=43 // pred_check_branch
              %2797 = sbr.rel (0) target = $region48
            $region47: #{conv_bn_relu.1} parent=43 // pred_region
              loop: start=0, step=1, limit=1
              $region49: #{conv_bn_relu.1} parent=47 // loop_pre_header
                _
              $region50: #{conv_bn_relu.1} parent=47 // loop_header
                %s2799 = sphi 0, %s2803
                %p2800 = scmp.ge.s32.totalorder %s2799, 1
                %s2804 = sphi %s2787, %s2787
                %s2805 = sphi %s2793, %s2793
              $region51: #{conv_bn_relu.1} parent=47 // loop_header_branch
                %2802 = sbr.rel (%p2800) target = $region55
              $region52: #{conv_bn_relu.1} parent=47 // loop_body
                %v2806 = vld [vmem:[%s2804] sm:$0xff]
                %2807 = vst [vmem:[%s2805] sm:$0xff] %v2806
                %v2808 = vld [vmem:[%s2804 + $0x8] sm:$0xff]
                %2809 = vst [vmem:[%s2805 + $0x8] sm:$0xff] %v2808
                %v2810 = vld [vmem:[%s2804 + $0x10] sm:$0xff]
                %2811 = vst [vmem:[%s2805 + $0x20] sm:$0xff] %v2810
                %v2812 = vld [vmem:[%s2804 + $0x18] sm:$0xff]
                %2813 = vst [vmem:[%s2805 + $0x28] sm:$0xff] %v2812
                %v2814 = vld [vmem:[%s2804 + $0x20] sm:$0xff]
                %2815 = vst [vmem:[%s2805 + $0x40] sm:$0xff] %v2814
                %v2816 = vld [vmem:[%s2804 + $0x28] sm:$0xff]
                %2817 = vst [vmem:[%s2805 + $0x48] sm:$0xff] %v2816
                %v2818 = vld [vmem:[%s2804 + $0x30] sm:$0xff]
                %2819 = vst [vmem:[%s2805 + $0x60] sm:$0xff] %v2818
                %v2820 = vld [vmem:[%s2804 + $0x38] sm:$0xff]
                %2821 = vst [vmem:[%s2805 + $0x68] sm:$0xff] %v2820
                %v2822 = vld [vmem:[%s2804 + $0x40] sm:$0xff]
                %2823 = vst [vmem:[%s2805 + $0x80] sm:$0xff] %v2822
                %v2824 = vld [vmem:[%s2804 + $0x48] sm:$0xff]
                %2825 = vst [vmem:[%s2805 + $0x88] sm:$0xff] %v2824
                %v2826 = vld [vmem:[%s2804 + $0x50] sm:$0xff]
                %2827 = vst [vmem:[%s2805 + $0xa0] sm:$0xff] %v2826
                %v2828 = vld [vmem:[%s2804 + $0x58] sm:$0xff]
                %2829 = vst [vmem:[%s2805 + $0xa8] sm:$0xff] %v2828
                %v2830 = vld [vmem:[%s2804 + $0x60] sm:$0xff]
                %2831 = vst [vmem:[%s2805 + $0xc0] sm:$0xff] %v2830
                %v2832 = vld [vmem:[%s2804 + $0x68] sm:$0xff]
                %2833 = vst [vmem:[%s2805 + $0xc8] sm:$0xff] %v2832
              $region53: #{conv_bn_relu.1} parent=47 // loop_footer
                %s2803 = sadd.s32 1, %s2799
              $region54: #{conv_bn_relu.1} parent=47 // loop_footer_branch
                %2798 = sbr.rel target = $region50
              $region55: #{conv_bn_relu.1} parent=47 // loop_exit
                _
            $region48: #{conv_bn_relu.1} parent=43 // pred_fallthru
              _
            // Predicated region
            $region56: #{conv_bn_relu.1} parent=43 // pred_check
              _
            $region57: #{conv_bn_relu.1} parent=43 // pred_check_branch
              %2835 = sbr.rel target = $region59
            $region58: #{conv_bn_relu.1} parent=43 // pred_region
              _
            $region59: #{conv_bn_relu.1} parent=43 // pred_fallthru
              _
          $region44: #{conv_bn_relu.1} parent=39 // pred_fallthru
            _
          %2836 = vnop
        $region40: #{conv_bn_relu.1} parent=35 // pred_fallthru
          _
      $region36: #{conv_bn_relu.1} parent=5 // pred_fallthru
        _
      %p2837 = scmp.le.s32.totalorder 2, %s10
      // Predicated region
      $region60: #{conv_bn_relu.1} parent=5 // pred_check
        %p2838 = pneg %p2837
      $region61: #{conv_bn_relu.1} parent=5 // pred_check_branch
        %2840 = sbr.rel (%p2838) target = $region63
      $region62: #{conv_bn_relu.1} parent=5 // pred_region
        %s2841 = ssub.s32 %s10, 2
        // Predicated region
        $region64: #{conv_bn_relu.1} parent=62 // pred_check
          %p2842 = pneg %p143
        $region65: #{conv_bn_relu.1} parent=62 // pred_check_branch
          %2844 = sbr.rel (%p2842) target = $region67
        $region66: #{conv_bn_relu.1} parent=62 // pred_region
          %s2845 = sand.u32 %s128, 1
          %s2846 = sand.u32 %s128, 1
          %s2847 = smul.addr %s2846, 112
          %s2848 = scalar_lea.vmem [#allocation2], %s2847
        $region67: #{conv_bn_relu.1} parent=62 // pred_fallthru
          _
      $region63: #{conv_bn_relu.1} parent=5 // pred_fallthru
        _
    $region6: #{conv_bn_relu.1} parent=1 // loop_footer
      %s14 = sadd.s32 1, %s10
    $region7: #{conv_bn_relu.1} parent=1 // loop_footer_branch
      %9 = sbr.rel target = $region3
    $region8: #{conv_bn_relu.1} parent=1 // loop_exit
      _

</llo_original>
